<compile_context>
chip_gen: v7x
topology: tpu7x:2x2x1
jax: 0.10.0
libtpu: 0.0.40
codegen_flags: <defaults>
</compile_context>

<pallas_src>
import functools

import jax
import jax.numpy as jnp
from jax import lax
from jax.experimental import pallas as pl
from jax.experimental.pallas import tpu as pltpu


def bigru_kernel(x_ref,
                 wih_f_ref, whh_f_ref, bx_f_ref, bhn_f_ref,
                 wih_b_ref, bx_b_ref, bhn_b_ref,
                 wlin_f_ref, wlin_b_ref, blin_ref,
                 out_ref, *, P, B, M, H):
    # x arrives time-major and batch-padded: (P, B, M). Merging the leading
    # dims is a free relayout (last dim / lanes untouched).
    xs = x_ref[...].reshape(P * B, M)

    # Hoisted per-gate input projections for the whole sequence (one MXU pass
    # per gate), with the h-independent r/z parts of b_hh already folded in.
    def proj(w_ref, b_ref, gate):
        return (jnp.dot(xs, w_ref[gate], preferred_element_type=jnp.float32)
                + b_ref[gate])                                 # (P*B, H)

    xw_r = proj(wih_f_ref, bx_f_ref, 0)
    xw_z = proj(wih_f_ref, bx_f_ref, 1)
    xw_n = proj(wih_f_ref, bx_f_ref, 2)

    whh_r = whh_f_ref[0]
    whh_z = whh_f_ref[1]
    whh_n = whh_f_ref[2]
    bhn_f = bhn_f_ref[...]                                     # (1, H)

    # Forward recurrence, fully unrolled: P is a small static trip count and
    # B == 8, so every slice below is static and sublane-tile aligned.
    h = jnp.zeros((B, H), jnp.float32)
    for t in range(P):
        lo = t * B
        hr = jnp.dot(h, whh_r, preferred_element_type=jnp.float32)
        hz = jnp.dot(h, whh_z, preferred_element_type=jnp.float32)
        hn = jnp.dot(h, whh_n, preferred_element_type=jnp.float32)
        r = jax.nn.sigmoid(xw_r[lo:lo + B] + hr)
        z = jax.nn.sigmoid(xw_z[lo:lo + B] + hz)
        n = jnp.tanh(xw_n[lo:lo + B] + r * (hn + bhn_f))
        h = (1.0 - z) * n + z * h
    h_f = h

    # Backward direction: out[:, -1, hidR:] is exactly one GRU step from
    # h0 = 0 on x[-1]; with h0 = 0 every h @ W_hh term vanishes, so
    # W_hh_backward is never needed and h_new = (1 - z) * n.
    x_last = x_ref[P - 1]                                      # (B, M)
    xbr = (jnp.dot(x_last, wih_b_ref[0], preferred_element_type=jnp.float32)
           + bx_b_ref[0])
    xbz = (jnp.dot(x_last, wih_b_ref[1], preferred_element_type=jnp.float32)
           + bx_b_ref[1])
    xbn = (jnp.dot(x_last, wih_b_ref[2], preferred_element_type=jnp.float32)
           + bx_b_ref[2])
    r_b = jax.nn.sigmoid(xbr)
    z_b = jax.nn.sigmoid(xbz)
    n_b = jnp.tanh(xbn + r_b * bhn_b_ref[...])
    h_b = (1.0 - z_b) * n_b

    # Final Linear on concat(h_f, h_b), expressed as split-weight matmuls so no
    # lane-shuffle concatenation is needed.
    res = (jnp.dot(h_f, wlin_f_ref[...], preferred_element_type=jnp.float32)
           + jnp.dot(h_b, wlin_b_ref[...], preferred_element_type=jnp.float32)
           + blin_ref[...])
    out_ref[...] = res.astype(out_ref.dtype)


def _gate_major(wih, whh, bih, bhh, H):
    """Split PyTorch-layout [r|z|n] columns into gate-major stacks and fold the
    h-independent r/z parts of b_hh into the input-side bias."""
    def split3(a):
        return a[..., :H], a[..., H:2 * H], a[..., 2 * H:]
    wih_r, wih_z, wih_n = split3(wih)
    whh_r, whh_z, whh_n = split3(whh)
    bih_r, bih_z, bih_n = split3(bih)
    bhh_r, bhh_z, bhh_n = split3(bhh)
    wih_s = jnp.stack([wih_r, wih_z, wih_n])                   # (3, M, H)
    whh_s = jnp.stack([whh_r, whh_z, whh_n])                   # (3, H, H)
    bx_s = jnp.stack([bih_r + bhh_r, bih_z + bhh_z, bih_n])    # (3, 1, H)
    return wih_s, whh_s, bx_s, bhh_n                           # bhh_n: (1, H)


@jax.jit
def bigru_forward(x, params):
    B, P, M = x.shape
    H = params["whh_f"].shape[0]

    # Gate-major repack + bias folding (plain XLA, fused into this jit).
    wih_f, whh_f, bx_f, bhn_f = _gate_major(
        params["wih_f"], params["whh_f"], params["bih_f"], params["bhh_f"], H)
    wih_b, _whh_b, bx_b, bhn_b = _gate_major(
        params["wih_b"], params["whh_b"], params["bih_b"], params["bhh_b"], H)
    wlin_f = params["wlin"][:H]                                # (H, M)
    wlin_b = params["wlin"][H:]                                # (H, M)
    blin = params["blin"]                                      # (1, M)

    # Time-major layout + sublane (batch) padding to 8 rows; both happen during
    # HBM staging outside the kernel. Padded rows are independent per-row work
    # that rides along in the same vregs / MXU pushes and is sliced off below.
    Bp = ((B + 7) // 8) * 8
    x_tm = jnp.transpose(x, (1, 0, 2))                         # (P, B, M)
    x_tm = jnp.pad(x_tm, ((0, 0), (0, Bp - B), (0, 0)))

    kernel = functools.partial(bigru_kernel, P=P, B=Bp, M=M, H=H)
    vmem = pl.BlockSpec(memory_space=pltpu.MemorySpace.VMEM)
    args = (x_tm, wih_f, whh_f, bx_f, bhn_f,
            wih_b, bx_b, bhn_b, wlin_f, wlin_b, blin)
    # TODO(synk): if B / P scale to production sizes, add a parallel grid over
    # batch tiles (v7x has 2 TensorCores) and chunk the xw precompute over time
    # to stay inside the 64 MiB v7x VMEM budget.
    out = pl.pallas_call(
        kernel,
        out_shape=jax.ShapeDtypeStruct((Bp, M), jnp.float32),
        in_specs=[vmem] * len(args),
        out_specs=vmem,
    )(*args)
    # torch.squeeze(res[:, -1, :]) removes any size-1 dims.
    return jnp.squeeze(out[:B])


def bigru_reference(x, params):
    """Pure-JAX reference of the full PyTorch forward (for verification)."""
    B, P, M = x.shape
    H = params["whh_f"].shape[0]

    def run_dir(xseq, wih, whh, bih, bhh):
        def step(h, xt):
            xw = xt @ wih + bih[0]
            hw = h @ whh + bhh[0]
            r = jax.nn.sigmoid(xw[:, :H] + hw[:, :H])
            z = jax.nn.sigmoid(xw[:, H:2 * H] + hw[:, H:2 * H])
            n = jnp.tanh(xw[:, 2 * H:] + r * hw[:, 2 * H:])
            hn = (1.0 - z) * n + z * h
            return hn, hn

        h0 = jnp.zeros((B, H), jnp.float32)
        _, hs = lax.scan(step, h0, jnp.transpose(xseq, (1, 0, 2)))
        return jnp.transpose(hs, (1, 0, 2))                    # (B, P, H)

    out_f = run_dir(x, params["wih_f"], params["whh_f"],
                    params["bih_f"], params["bhh_f"])
    out_b = run_dir(x[:, ::-1, :], params["wih_b"], params["whh_b"],
                    params["bih_b"], params["bhh_b"])[:, ::-1, :]
    out = jnp.concatenate([out_f, out_b], axis=-1)             # (B, P, 2H)
    res = out @ params["wlin"] + params["blin"][0]             # (B, P, M)
    return jnp.squeeze(res[:, -1, :])


def init_params(key, n_val, hidRNN):
    M, H = n_val, hidRNN
    k_gru = 1.0 / jnp.sqrt(jnp.float32(H))
    k_lin = 1.0 / jnp.sqrt(jnp.float32(2 * H))
    keys = jax.random.split(key, 10)
    u = lambda k, shape, scale: jax.random.uniform(
        k, shape, jnp.float32, -scale, scale)
    return {
        "wih_f": u(keys[0], (M, 3 * H), k_gru),
        "whh_f": u(keys[1], (H, 3 * H), k_gru),
        "bih_f": u(keys[2], (1, 3 * H), k_gru),
        "bhh_f": u(keys[3], (1, 3 * H), k_gru),
        "wih_b": u(keys[4], (M, 3 * H), k_gru),
        "whh_b": u(keys[5], (H, 3 * H), k_gru),
        "bih_b": u(keys[6], (1, 3 * H), k_gru),
        "bhh_b": u(keys[7], (1, 3 * H), k_gru),
        "wlin":  u(keys[8], (2 * H, M), k_lin),
        "blin":  u(keys[9], (1, M), k_lin),
    }


if __name__ == "__main__":
    n_val, window, hidRNN = 4, 8, 32        # m, P, hidR
    batch = 2

    key = jax.random.PRNGKey(0)
    k_param, k_x = jax.random.split(key)
    params = init_params(k_param, n_val, hidRNN)
    x = jax.random.normal(k_x, (batch, window, n_val), jnp.float32)

    out = jax.block_until_ready(bigru_forward(x, params))
    ref = jax.block_until_ready(bigru_reference(x, params))

    assert out.shape == ref.shape, (out.shape, ref.shape)
    assert jnp.allclose(out, ref, rtol=1e-5, atol=1e-5), (
        f"max abs err {jnp.max(jnp.abs(out - ref))}")

    print("KERNEL_OK")
</pallas_src>

<mosaic_0001>
module attributes {stable_mosaic.version = 11 : i64} {
  func.func @bigru_kernel(%arg0: memref<8x8x4xf32, #tpu.memory_space<vmem>>, %arg1: memref<3x4x32xf32, #tpu.memory_space<vmem>>, %arg2: memref<3x32x32xf32, #tpu.memory_space<vmem>>, %arg3: memref<3x1x32xf32, #tpu.memory_space<vmem>>, %arg4: memref<1x32xf32, #tpu.memory_space<vmem>>, %arg5: memref<3x4x32xf32, #tpu.memory_space<vmem>>, %arg6: memref<3x1x32xf32, #tpu.memory_space<vmem>>, %arg7: memref<1x32xf32, #tpu.memory_space<vmem>>, %arg8: memref<32x4xf32, #tpu.memory_space<vmem>>, %arg9: memref<32x4xf32, #tpu.memory_space<vmem>>, %arg10: memref<1x4xf32, #tpu.memory_space<vmem>>, %arg11: memref<8x4xf32, #tpu.memory_space<vmem>>) attributes {dimension_semantics = [], scalar_prefetch = 0 : i64, scratch_operands = 0 : i64, tpu.core_type = #tpu.core_type<tc>} {
    %c0 = arith.constant 0 : index
    %c0_0 = arith.constant 0 : index
    %c0_1 = arith.constant 0 : index
    %0 = vector.load %arg0[%c0, %c0_0, %c0_1] : memref<8x8x4xf32, #tpu.memory_space<vmem>>, vector<8x8x4xf32>
    %1 = vector.shape_cast %0 : vector<8x8x4xf32> to vector<64x4xf32>
    %c0_2 = arith.constant 0 : index
    %c0_3 = arith.constant 0 : index
    %c0_4 = arith.constant 0 : index
    %2 = vector.load %arg1[%c0_2, %c0_3, %c0_4] : memref<3x4x32xf32, #tpu.memory_space<vmem>>, vector<1x4x32xf32>
    %3 = vector.shape_cast %2 : vector<1x4x32xf32> to vector<4x32xf32>
    %cst = arith.constant dense<0.000000e+00> : vector<64x32xf32>
    %4 = tpu.matmul %1, %3, %cst {dimension_numbers = #tpu.dot_dimension_numbers<[1], [0], [0], [1], [0, 0, 1, 1], [], []>} : vector<64x4xf32>, vector<4x32xf32>, vector<64x32xf32> -> vector<64x32xf32>
    %c0_5 = arith.constant 0 : index
    %c0_6 = arith.constant 0 : index
    %c0_7 = arith.constant 0 : index
    %5 = vector.load %arg3[%c0_5, %c0_6, %c0_7] : memref<3x1x32xf32, #tpu.memory_space<vmem>>, vector<1x1x32xf32>
    %6 = vector.shape_cast %5 : vector<1x1x32xf32> to vector<1x32xf32>
    %7 = vector.broadcast %6 : vector<1x32xf32> to vector<64x32xf32>
    %8 = arith.addf %4, %7 : vector<64x32xf32>
    %c1 = arith.constant 1 : index
    %c0_8 = arith.constant 0 : index
    %c0_9 = arith.constant 0 : index
    %9 = vector.load %arg1[%c1, %c0_8, %c0_9] : memref<3x4x32xf32, #tpu.memory_space<vmem>>, vector<1x4x32xf32>
    %10 = vector.shape_cast %9 : vector<1x4x32xf32> to vector<4x32xf32>
    %cst_10 = arith.constant dense<0.000000e+00> : vector<64x32xf32>
    %11 = tpu.matmul %1, %10, %cst_10 {dimension_numbers = #tpu.dot_dimension_numbers<[1], [0], [0], [1], [0, 0, 1, 1], [], []>} : vector<64x4xf32>, vector<4x32xf32>, vector<64x32xf32> -> vector<64x32xf32>
    %c1_11 = arith.constant 1 : index
    %c0_12 = arith.constant 0 : index
    %c0_13 = arith.constant 0 : index
    %12 = vector.load %arg3[%c1_11, %c0_12, %c0_13] : memref<3x1x32xf32, #tpu.memory_space<vmem>>, vector<1x1x32xf32>
    %13 = vector.shape_cast %12 : vector<1x1x32xf32> to vector<1x32xf32>
    %14 = vector.broadcast %13 : vector<1x32xf32> to vector<64x32xf32>
    %15 = arith.addf %11, %14 : vector<64x32xf32>
    %c2 = arith.constant 2 : index
    %c0_14 = arith.constant 0 : index
    %c0_15 = arith.constant 0 : index
    %16 = vector.load %arg1[%c2, %c0_14, %c0_15] : memref<3x4x32xf32, #tpu.memory_space<vmem>>, vector<1x4x32xf32>
    %17 = vector.shape_cast %16 : vector<1x4x32xf32> to vector<4x32xf32>
    %cst_16 = arith.constant dense<0.000000e+00> : vector<64x32xf32>
    %18 = tpu.matmul %1, %17, %cst_16 {dimension_numbers = #tpu.dot_dimension_numbers<[1], [0], [0], [1], [0, 0, 1, 1], [], []>} : vector<64x4xf32>, vector<4x32xf32>, vector<64x32xf32> -> vector<64x32xf32>
    %c2_17 = arith.constant 2 : index
    %c0_18 = arith.constant 0 : index
    %c0_19 = arith.constant 0 : index
    %19 = vector.load %arg3[%c2_17, %c0_18, %c0_19] : memref<3x1x32xf32, #tpu.memory_space<vmem>>, vector<1x1x32xf32>
    %20 = vector.shape_cast %19 : vector<1x1x32xf32> to vector<1x32xf32>
    %21 = vector.broadcast %20 : vector<1x32xf32> to vector<64x32xf32>
    %22 = arith.addf %18, %21 : vector<64x32xf32>
    %c0_20 = arith.constant 0 : index
    %c0_21 = arith.constant 0 : index
    %c0_22 = arith.constant 0 : index
    %23 = vector.load %arg2[%c0_20, %c0_21, %c0_22] : memref<3x32x32xf32, #tpu.memory_space<vmem>>, vector<1x32x32xf32>
    %24 = vector.shape_cast %23 : vector<1x32x32xf32> to vector<32x32xf32>
    %c1_23 = arith.constant 1 : index
    %c0_24 = arith.constant 0 : index
    %c0_25 = arith.constant 0 : index
    %25 = vector.load %arg2[%c1_23, %c0_24, %c0_25] : memref<3x32x32xf32, #tpu.memory_space<vmem>>, vector<1x32x32xf32>
    %26 = vector.shape_cast %25 : vector<1x32x32xf32> to vector<32x32xf32>
    %c2_26 = arith.constant 2 : index
    %c0_27 = arith.constant 0 : index
    %c0_28 = arith.constant 0 : index
    %27 = vector.load %arg2[%c2_26, %c0_27, %c0_28] : memref<3x32x32xf32, #tpu.memory_space<vmem>>, vector<1x32x32xf32>
    %28 = vector.shape_cast %27 : vector<1x32x32xf32> to vector<32x32xf32>
    %c0_29 = arith.constant 0 : index
    %c0_30 = arith.constant 0 : index
    %29 = vector.load %arg4[%c0_29, %c0_30] : memref<1x32xf32, #tpu.memory_space<vmem>>, vector<1x32xf32>
    %cst_31 = arith.constant 0.000000e+00 : f32
    %30 = vector.broadcast %cst_31 : f32 to vector<8x32xf32>
    %cst_32 = arith.constant dense<0.000000e+00> : vector<8x32xf32>
    %31 = tpu.matmul %30, %24, %cst_32 {dimension_numbers = #tpu.dot_dimension_numbers<[1], [0], [0], [1], [0, 0, 1, 1], [], []>} : vector<8x32xf32>, vector<32x32xf32>, vector<8x32xf32> -> vector<8x32xf32>
    %cst_33 = arith.constant dense<0.000000e+00> : vector<8x32xf32>
    %32 = tpu.matmul %30, %26, %cst_33 {dimension_numbers = #tpu.dot_dimension_numbers<[1], [0], [0], [1], [0, 0, 1, 1], [], []>} : vector<8x32xf32>, vector<32x32xf32>, vector<8x32xf32> -> vector<8x32xf32>
    %cst_34 = arith.constant dense<0.000000e+00> : vector<8x32xf32>
    %33 = tpu.matmul %30, %28, %cst_34 {dimension_numbers = #tpu.dot_dimension_numbers<[1], [0], [0], [1], [0, 0, 1, 1], [], []>} : vector<8x32xf32>, vector<32x32xf32>, vector<8x32xf32> -> vector<8x32xf32>
    %34 = vector.extract_strided_slice %8 {offsets = [0, 0], sizes = [8, 32], strides = [1, 1]} : vector<64x32xf32> to vector<8x32xf32>
    %35 = arith.addf %34, %31 : vector<8x32xf32>
    %36 = arith.negf %35 : vector<8x32xf32>
    %37 = math.exp %36 : vector<8x32xf32>
    %cst_35 = arith.constant 1.000000e+00 : f32
    %38 = vector.broadcast %cst_35 : f32 to vector<8x32xf32>
    %39 = arith.addf %38, %37 : vector<8x32xf32>
    %40 = arith.divf %38, %39 : vector<8x32xf32>
    %41 = vector.extract_strided_slice %15 {offsets = [0, 0], sizes = [8, 32], strides = [1, 1]} : vector<64x32xf32> to vector<8x32xf32>
    %42 = arith.addf %41, %32 : vector<8x32xf32>
    %43 = arith.negf %42 : vector<8x32xf32>
    %44 = math.exp %43 : vector<8x32xf32>
    %cst_36 = arith.constant 1.000000e+00 : f32
    %45 = vector.broadcast %cst_36 : f32 to vector<8x32xf32>
    %46 = arith.addf %45, %44 : vector<8x32xf32>
    %47 = arith.divf %45, %46 : vector<8x32xf32>
    %48 = vector.extract_strided_slice %22 {offsets = [0, 0], sizes = [8, 32], strides = [1, 1]} : vector<64x32xf32> to vector<8x32xf32>
    %49 = vector.broadcast %29 : vector<1x32xf32> to vector<8x32xf32>
    %50 = arith.addf %33, %49 : vector<8x32xf32>
    %51 = arith.mulf %40, %50 : vector<8x32xf32>
    %52 = arith.addf %48, %51 : vector<8x32xf32>
    %53 = math.tanh %52 : vector<8x32xf32>
    %cst_37 = arith.constant 1.000000e+00 : f32
    %54 = vector.broadcast %cst_37 : f32 to vector<8x32xf32>
    %55 = arith.subf %54, %47 : vector<8x32xf32>
    %56 = arith.mulf %55, %53 : vector<8x32xf32>
    %57 = arith.mulf %47, %30 : vector<8x32xf32>
    %58 = arith.addf %56, %57 : vector<8x32xf32>
    %cst_38 = arith.constant dense<0.000000e+00> : vector<8x32xf32>
    %59 = tpu.matmul %58, %24, %cst_38 {dimension_numbers = #tpu.dot_dimension_numbers<[1], [0], [0], [1], [0, 0, 1, 1], [], []>} : vector<8x32xf32>, vector<32x32xf32>, vector<8x32xf32> -> vector<8x32xf32>
    %cst_39 = arith.constant dense<0.000000e+00> : vector<8x32xf32>
    %60 = tpu.matmul %58, %26, %cst_39 {dimension_numbers = #tpu.dot_dimension_numbers<[1], [0], [0], [1], [0, 0, 1, 1], [], []>} : vector<8x32xf32>, vector<32x32xf32>, vector<8x32xf32> -> vector<8x32xf32>
    %cst_40 = arith.constant dense<0.000000e+00> : vector<8x32xf32>
    %61 = tpu.matmul %58, %28, %cst_40 {dimension_numbers = #tpu.dot_dimension_numbers<[1], [0], [0], [1], [0, 0, 1, 1], [], []>} : vector<8x32xf32>, vector<32x32xf32>, vector<8x32xf32> -> vector<8x32xf32>
    %62 = vector.extract_strided_slice %8 {offsets = [8, 0], sizes = [8, 32], strides = [1, 1]} : vector<64x32xf32> to vector<8x32xf32>
    %63 = arith.addf %62, %59 : vector<8x32xf32>
    %64 = arith.negf %63 : vector<8x32xf32>
    %65 = math.exp %64 : vector<8x32xf32>
    %cst_41 = arith.constant 1.000000e+00 : f32
    %66 = vector.broadcast %cst_41 : f32 to vector<8x32xf32>
    %67 = arith.addf %66, %65 : vector<8x32xf32>
    %68 = arith.divf %66, %67 : vector<8x32xf32>
    %69 = vector.extract_strided_slice %15 {offsets = [8, 0], sizes = [8, 32], strides = [1, 1]} : vector<64x32xf32> to vector<8x32xf32>
    %70 = arith.addf %69, %60 : vector<8x32xf32>
    %71 = arith.negf %70 : vector<8x32xf32>
    %72 = math.exp %71 : vector<8x32xf32>
    %cst_42 = arith.constant 1.000000e+00 : f32
    %73 = vector.broadcast %cst_42 : f32 to vector<8x32xf32>
    %74 = arith.addf %73, %72 : vector<8x32xf32>
    %75 = arith.divf %73, %74 : vector<8x32xf32>
    %76 = vector.extract_strided_slice %22 {offsets = [8, 0], sizes = [8, 32], strides = [1, 1]} : vector<64x32xf32> to vector<8x32xf32>
    %77 = vector.broadcast %29 : vector<1x32xf32> to vector<8x32xf32>
    %78 = arith.addf %61, %77 : vector<8x32xf32>
    %79 = arith.mulf %68, %78 : vector<8x32xf32>
    %80 = arith.addf %76, %79 : vector<8x32xf32>
    %81 = math.tanh %80 : vector<8x32xf32>
    %cst_43 = arith.constant 1.000000e+00 : f32
    %82 = vector.broadcast %cst_43 : f32 to vector<8x32xf32>
    %83 = arith.subf %82, %75 : vector<8x32xf32>
    %84 = arith.mulf %83, %81 : vector<8x32xf32>
    %85 = arith.mulf %75, %58 : vector<8x32xf32>
    %86 = arith.addf %84, %85 : vector<8x32xf32>
    %cst_44 = arith.constant dense<0.000000e+00> : vector<8x32xf32>
    %87 = tpu.matmul %86, %24, %cst_44 {dimension_numbers = #tpu.dot_dimension_numbers<[1], [0], [0], [1], [0, 0, 1, 1], [], []>} : vector<8x32xf32>, vector<32x32xf32>, vector<8x32xf32> -> vector<8x32xf32>
    %cst_45 = arith.constant dense<0.000000e+00> : vector<8x32xf32>
    %88 = tpu.matmul %86, %26, %cst_45 {dimension_numbers = #tpu.dot_dimension_numbers<[1], [0], [0], [1], [0, 0, 1, 1], [], []>} : vector<8x32xf32>, vector<32x32xf32>, vector<8x32xf32> -> vector<8x32xf32>
    %cst_46 = arith.constant dense<0.000000e+00> : vector<8x32xf32>
    %89 = tpu.matmul %86, %28, %cst_46 {dimension_numbers = #tpu.dot_dimension_numbers<[1], [0], [0], [1], [0, 0, 1, 1], [], []>} : vector<8x32xf32>, vector<32x32xf32>, vector<8x32xf32> -> vector<8x32xf32>
    %90 = vector.extract_strided_slice %8 {offsets = [16, 0], sizes = [8, 32], strides = [1, 1]} : vector<64x32xf32> to vector<8x32xf32>
    %91 = arith.addf %90, %87 : vector<8x32xf32>
    %92 = arith.negf %91 : vector<8x32xf32>
    %93 = math.exp %92 : vector<8x32xf32>
    %cst_47 = arith.constant 1.000000e+00 : f32
    %94 = vector.broadcast %cst_47 : f32 to vector<8x32xf32>
    %95 = arith.addf %94, %93 : vector<8x32xf32>
    %96 = arith.divf %94, %95 : vector<8x32xf32>
    %97 = vector.extract_strided_slice %15 {offsets = [16, 0], sizes = [8, 32], strides = [1, 1]} : vector<64x32xf32> to vector<8x32xf32>
    %98 = arith.addf %97, %88 : vector<8x32xf32>
    %99 = arith.negf %98 : vector<8x32xf32>
    %100 = math.exp %99 : vector<8x32xf32>
    %cst_48 = arith.constant 1.000000e+00 : f32
    %101 = vector.broadcast %cst_48 : f32 to vector<8x32xf32>
    %102 = arith.addf %101, %100 : vector<8x32xf32>
    %103 = arith.divf %101, %102 : vector<8x32xf32>
    %104 = vector.extract_strided_slice %22 {offsets = [16, 0], sizes = [8, 32], strides = [1, 1]} : vector<64x32xf32> to vector<8x32xf32>
    %105 = vector.broadcast %29 : vector<1x32xf32> to vector<8x32xf32>
    %106 = arith.addf %89, %105 : vector<8x32xf32>
    %107 = arith.mulf %96, %106 : vector<8x32xf32>
    %108 = arith.addf %104, %107 : vector<8x32xf32>
    %109 = math.tanh %108 : vector<8x32xf32>
    %cst_49 = arith.constant 1.000000e+00 : f32
    %110 = vector.broadcast %cst_49 : f32 to vector<8x32xf32>
    %111 = arith.subf %110, %103 : vector<8x32xf32>
    %112 = arith.mulf %111, %109 : vector<8x32xf32>
    %113 = arith.mulf %103, %86 : vector<8x32xf32>
    %114 = arith.addf %112, %113 : vector<8x32xf32>
    %cst_50 = arith.constant dense<0.000000e+00> : vector<8x32xf32>
    %115 = tpu.matmul %114, %24, %cst_50 {dimension_numbers = #tpu.dot_dimension_numbers<[1], [0], [0], [1], [0, 0, 1, 1], [], []>} : vector<8x32xf32>, vector<32x32xf32>, vector<8x32xf32> -> vector<8x32xf32>
    %cst_51 = arith.constant dense<0.000000e+00> : vector<8x32xf32>
    %116 = tpu.matmul %114, %26, %cst_51 {dimension_numbers = #tpu.dot_dimension_numbers<[1], [0], [0], [1], [0, 0, 1, 1], [], []>} : vector<8x32xf32>, vector<32x32xf32>, vector<8x32xf32> -> vector<8x32xf32>
    %cst_52 = arith.constant dense<0.000000e+00> : vector<8x32xf32>
    %117 = tpu.matmul %114, %28, %cst_52 {dimension_numbers = #tpu.dot_dimension_numbers<[1], [0], [0], [1], [0, 0, 1, 1], [], []>} : vector<8x32xf32>, vector<32x32xf32>, vector<8x32xf32> -> vector<8x32xf32>
    %118 = vector.extract_strided_slice %8 {offsets = [24, 0], sizes = [8, 32], strides = [1, 1]} : vector<64x32xf32> to vector<8x32xf32>
    %119 = arith.addf %118, %115 : vector<8x32xf32>
    %120 = arith.negf %119 : vector<8x32xf32>
    %121 = math.exp %120 : vector<8x32xf32>
    %cst_53 = arith.constant 1.000000e+00 : f32
    %122 = vector.broadcast %cst_53 : f32 to vector<8x32xf32>
    %123 = arith.addf %122, %121 : vector<8x32xf32>
    %124 = arith.divf %122, %123 : vector<8x32xf32>
    %125 = vector.extract_strided_slice %15 {offsets = [24, 0], sizes = [8, 32], strides = [1, 1]} : vector<64x32xf32> to vector<8x32xf32>
    %126 = arith.addf %125, %116 : vector<8x32xf32>
    %127 = arith.negf %126 : vector<8x32xf32>
    %128 = math.exp %127 : vector<8x32xf32>
    %cst_54 = arith.constant 1.000000e+00 : f32
    %129 = vector.broadcast %cst_54 : f32 to vector<8x32xf32>
    %130 = arith.addf %129, %128 : vector<8x32xf32>
    %131 = arith.divf %129, %130 : vector<8x32xf32>
    %132 = vector.extract_strided_slice %22 {offsets = [24, 0], sizes = [8, 32], strides = [1, 1]} : vector<64x32xf32> to vector<8x32xf32>
    %133 = vector.broadcast %29 : vector<1x32xf32> to vector<8x32xf32>
    %134 = arith.addf %117, %133 : vector<8x32xf32>
    %135 = arith.mulf %124, %134 : vector<8x32xf32>
    %136 = arith.addf %132, %135 : vector<8x32xf32>
    %137 = math.tanh %136 : vector<8x32xf32>
    %cst_55 = arith.constant 1.000000e+00 : f32
    %138 = vector.broadcast %cst_55 : f32 to vector<8x32xf32>
    %139 = arith.subf %138, %131 : vector<8x32xf32>
    %140 = arith.mulf %139, %137 : vector<8x32xf32>
    %141 = arith.mulf %131, %114 : vector<8x32xf32>
    %142 = arith.addf %140, %141 : vector<8x32xf32>
    %cst_56 = arith.constant dense<0.000000e+00> : vector<8x32xf32>
    %143 = tpu.matmul %142, %24, %cst_56 {dimension_numbers = #tpu.dot_dimension_numbers<[1], [0], [0], [1], [0, 0, 1, 1], [], []>} : vector<8x32xf32>, vector<32x32xf32>, vector<8x32xf32> -> vector<8x32xf32>
    %cst_57 = arith.constant dense<0.000000e+00> : vector<8x32xf32>
    %144 = tpu.matmul %142, %26, %cst_57 {dimension_numbers = #tpu.dot_dimension_numbers<[1], [0], [0], [1], [0, 0, 1, 1], [], []>} : vector<8x32xf32>, vector<32x32xf32>, vector<8x32xf32> -> vector<8x32xf32>
    %cst_58 = arith.constant dense<0.000000e+00> : vector<8x32xf32>
    %145 = tpu.matmul %142, %28, %cst_58 {dimension_numbers = #tpu.dot_dimension_numbers<[1], [0], [0], [1], [0, 0, 1, 1], [], []>} : vector<8x32xf32>, vector<32x32xf32>, vector<8x32xf32> -> vector<8x32xf32>
    %146 = vector.extract_strided_slice %8 {offsets = [32, 0], sizes = [8, 32], strides = [1, 1]} : vector<64x32xf32> to vector<8x32xf32>
    %147 = arith.addf %146, %143 : vector<8x32xf32>
    %148 = arith.negf %147 : vector<8x32xf32>
    %149 = math.exp %148 : vector<8x32xf32>
    %cst_59 = arith.constant 1.000000e+00 : f32
    %150 = vector.broadcast %cst_59 : f32 to vector<8x32xf32>
    %151 = arith.addf %150, %149 : vector<8x32xf32>
    %152 = arith.divf %150, %151 : vector<8x32xf32>
    %153 = vector.extract_strided_slice %15 {offsets = [32, 0], sizes = [8, 32], strides = [1, 1]} : vector<64x32xf32> to vector<8x32xf32>
    %154 = arith.addf %153, %144 : vector<8x32xf32>
    %155 = arith.negf %154 : vector<8x32xf32>
    %156 = math.exp %155 : vector<8x32xf32>
    %cst_60 = arith.constant 1.000000e+00 : f32
    %157 = vector.broadcast %cst_60 : f32 to vector<8x32xf32>
    %158 = arith.addf %157, %156 : vector<8x32xf32>
    %159 = arith.divf %157, %158 : vector<8x32xf32>
    %160 = vector.extract_strided_slice %22 {offsets = [32, 0], sizes = [8, 32], strides = [1, 1]} : vector<64x32xf32> to vector<8x32xf32>
    %161 = vector.broadcast %29 : vector<1x32xf32> to vector<8x32xf32>
    %162 = arith.addf %145, %161 : vector<8x32xf32>
    %163 = arith.mulf %152, %162 : vector<8x32xf32>
    %164 = arith.addf %160, %163 : vector<8x32xf32>
    %165 = math.tanh %164 : vector<8x32xf32>
    %cst_61 = arith.constant 1.000000e+00 : f32
    %166 = vector.broadcast %cst_61 : f32 to vector<8x32xf32>
    %167 = arith.subf %166, %159 : vector<8x32xf32>
    %168 = arith.mulf %167, %165 : vector<8x32xf32>
    %169 = arith.mulf %159, %142 : vector<8x32xf32>
    %170 = arith.addf %168, %169 : vector<8x32xf32>
    %cst_62 = arith.constant dense<0.000000e+00> : vector<8x32xf32>
    %171 = tpu.matmul %170, %24, %cst_62 {dimension_numbers = #tpu.dot_dimension_numbers<[1], [0], [0], [1], [0, 0, 1, 1], [], []>} : vector<8x32xf32>, vector<32x32xf32>, vector<8x32xf32> -> vector<8x32xf32>
    %cst_63 = arith.constant dense<0.000000e+00> : vector<8x32xf32>
    %172 = tpu.matmul %170, %26, %cst_63 {dimension_numbers = #tpu.dot_dimension_numbers<[1], [0], [0], [1], [0, 0, 1, 1], [], []>} : vector<8x32xf32>, vector<32x32xf32>, vector<8x32xf32> -> vector<8x32xf32>
    %cst_64 = arith.constant dense<0.000000e+00> : vector<8x32xf32>
    %173 = tpu.matmul %170, %28, %cst_64 {dimension_numbers = #tpu.dot_dimension_numbers<[1], [0], [0], [1], [0, 0, 1, 1], [], []>} : vector<8x32xf32>, vector<32x32xf32>, vector<8x32xf32> -> vector<8x32xf32>
    %174 = vector.extract_strided_slice %8 {offsets = [40, 0], sizes = [8, 32], strides = [1, 1]} : vector<64x32xf32> to vector<8x32xf32>
    %175 = arith.addf %174, %171 : vector<8x32xf32>
    %176 = arith.negf %175 : vector<8x32xf32>
    %177 = math.exp %176 : vector<8x32xf32>
    %cst_65 = arith.constant 1.000000e+00 : f32
    %178 = vector.broadcast %cst_65 : f32 to vector<8x32xf32>
    %179 = arith.addf %178, %177 : vector<8x32xf32>
    %180 = arith.divf %178, %179 : vector<8x32xf32>
    %181 = vector.extract_strided_slice %15 {offsets = [40, 0], sizes = [8, 32], strides = [1, 1]} : vector<64x32xf32> to vector<8x32xf32>
    %182 = arith.addf %181, %172 : vector<8x32xf32>
    %183 = arith.negf %182 : vector<8x32xf32>
    %184 = math.exp %183 : vector<8x32xf32>
    %cst_66 = arith.constant 1.000000e+00 : f32
    %185 = vector.broadcast %cst_66 : f32 to vector<8x32xf32>
    %186 = arith.addf %185, %184 : vector<8x32xf32>
    %187 = arith.divf %185, %186 : vector<8x32xf32>
    %188 = vector.extract_strided_slice %22 {offsets = [40, 0], sizes = [8, 32], strides = [1, 1]} : vector<64x32xf32> to vector<8x32xf32>
    %189 = vector.broadcast %29 : vector<1x32xf32> to vector<8x32xf32>
    %190 = arith.addf %173, %189 : vector<8x32xf32>
    %191 = arith.mulf %180, %190 : vector<8x32xf32>
    %192 = arith.addf %188, %191 : vector<8x32xf32>
    %193 = math.tanh %192 : vector<8x32xf32>
    %cst_67 = arith.constant 1.000000e+00 : f32
    %194 = vector.broadcast %cst_67 : f32 to vector<8x32xf32>
    %195 = arith.subf %194, %187 : vector<8x32xf32>
    %196 = arith.mulf %195, %193 : vector<8x32xf32>
    %197 = arith.mulf %187, %170 : vector<8x32xf32>
    %198 = arith.addf %196, %197 : vector<8x32xf32>
    %cst_68 = arith.constant dense<0.000000e+00> : vector<8x32xf32>
    %199 = tpu.matmul %198, %24, %cst_68 {dimension_numbers = #tpu.dot_dimension_numbers<[1], [0], [0], [1], [0, 0, 1, 1], [], []>} : vector<8x32xf32>, vector<32x32xf32>, vector<8x32xf32> -> vector<8x32xf32>
    %cst_69 = arith.constant dense<0.000000e+00> : vector<8x32xf32>
    %200 = tpu.matmul %198, %26, %cst_69 {dimension_numbers = #tpu.dot_dimension_numbers<[1], [0], [0], [1], [0, 0, 1, 1], [], []>} : vector<8x32xf32>, vector<32x32xf32>, vector<8x32xf32> -> vector<8x32xf32>
    %cst_70 = arith.constant dense<0.000000e+00> : vector<8x32xf32>
    %201 = tpu.matmul %198, %28, %cst_70 {dimension_numbers = #tpu.dot_dimension_numbers<[1], [0], [0], [1], [0, 0, 1, 1], [], []>} : vector<8x32xf32>, vector<32x32xf32>, vector<8x32xf32> -> vector<8x32xf32>
    %202 = vector.extract_strided_slice %8 {offsets = [48, 0], sizes = [8, 32], strides = [1, 1]} : vector<64x32xf32> to vector<8x32xf32>
    %203 = arith.addf %202, %199 : vector<8x32xf32>
    %204 = arith.negf %203 : vector<8x32xf32>
    %205 = math.exp %204 : vector<8x32xf32>
    %cst_71 = arith.constant 1.000000e+00 : f32
    %206 = vector.broadcast %cst_71 : f32 to vector<8x32xf32>
    %207 = arith.addf %206, %205 : vector<8x32xf32>
    %208 = arith.divf %206, %207 : vector<8x32xf32>
    %209 = vector.extract_strided_slice %15 {offsets = [48, 0], sizes = [8, 32], strides = [1, 1]} : vector<64x32xf32> to vector<8x32xf32>
    %210 = arith.addf %209, %200 : vector<8x32xf32>
    %211 = arith.negf %210 : vector<8x32xf32>
    %212 = math.exp %211 : vector<8x32xf32>
    %cst_72 = arith.constant 1.000000e+00 : f32
    %213 = vector.broadcast %cst_72 : f32 to vector<8x32xf32>
    %214 = arith.addf %213, %212 : vector<8x32xf32>
    %215 = arith.divf %213, %214 : vector<8x32xf32>
    %216 = vector.extract_strided_slice %22 {offsets = [48, 0], sizes = [8, 32], strides = [1, 1]} : vector<64x32xf32> to vector<8x32xf32>
    %217 = vector.broadcast %29 : vector<1x32xf32> to vector<8x32xf32>
    %218 = arith.addf %201, %217 : vector<8x32xf32>
    %219 = arith.mulf %208, %218 : vector<8x32xf32>
    %220 = arith.addf %216, %219 : vector<8x32xf32>
    %221 = math.tanh %220 : vector<8x32xf32>
    %cst_73 = arith.constant 1.000000e+00 : f32
    %222 = vector.broadcast %cst_73 : f32 to vector<8x32xf32>
    %223 = arith.subf %222, %215 : vector<8x32xf32>
    %224 = arith.mulf %223, %221 : vector<8x32xf32>
    %225 = arith.mulf %215, %198 : vector<8x32xf32>
    %226 = arith.addf %224, %225 : vector<8x32xf32>
    %cst_74 = arith.constant dense<0.000000e+00> : vector<8x32xf32>
    %227 = tpu.matmul %226, %24, %cst_74 {dimension_numbers = #tpu.dot_dimension_numbers<[1], [0], [0], [1], [0, 0, 1, 1], [], []>} : vector<8x32xf32>, vector<32x32xf32>, vector<8x32xf32> -> vector<8x32xf32>
    %cst_75 = arith.constant dense<0.000000e+00> : vector<8x32xf32>
    %228 = tpu.matmul %226, %26, %cst_75 {dimension_numbers = #tpu.dot_dimension_numbers<[1], [0], [0], [1], [0, 0, 1, 1], [], []>} : vector<8x32xf32>, vector<32x32xf32>, vector<8x32xf32> -> vector<8x32xf32>
    %cst_76 = arith.constant dense<0.000000e+00> : vector<8x32xf32>
    %229 = tpu.matmul %226, %28, %cst_76 {dimension_numbers = #tpu.dot_dimension_numbers<[1], [0], [0], [1], [0, 0, 1, 1], [], []>} : vector<8x32xf32>, vector<32x32xf32>, vector<8x32xf32> -> vector<8x32xf32>
    %230 = vector.extract_strided_slice %8 {offsets = [56, 0], sizes = [8, 32], strides = [1, 1]} : vector<64x32xf32> to vector<8x32xf32>
    %231 = arith.addf %230, %227 : vector<8x32xf32>
    %232 = arith.negf %231 : vector<8x32xf32>
    %233 = math.exp %232 : vector<8x32xf32>
    %cst_77 = arith.constant 1.000000e+00 : f32
    %234 = vector.broadcast %cst_77 : f32 to vector<8x32xf32>
    %235 = arith.addf %234, %233 : vector<8x32xf32>
    %236 = arith.divf %234, %235 : vector<8x32xf32>
    %237 = vector.extract_strided_slice %15 {offsets = [56, 0], sizes = [8, 32], strides = [1, 1]} : vector<64x32xf32> to vector<8x32xf32>
    %238 = arith.addf %237, %228 : vector<8x32xf32>
    %239 = arith.negf %238 : vector<8x32xf32>
    %240 = math.exp %239 : vector<8x32xf32>
    %cst_78 = arith.constant 1.000000e+00 : f32
    %241 = vector.broadcast %cst_78 : f32 to vector<8x32xf32>
    %242 = arith.addf %241, %240 : vector<8x32xf32>
    %243 = arith.divf %241, %242 : vector<8x32xf32>
    %244 = vector.extract_strided_slice %22 {offsets = [56, 0], sizes = [8, 32], strides = [1, 1]} : vector<64x32xf32> to vector<8x32xf32>
    %245 = vector.broadcast %29 : vector<1x32xf32> to vector<8x32xf32>
    %246 = arith.addf %229, %245 : vector<8x32xf32>
    %247 = arith.mulf %236, %246 : vector<8x32xf32>
    %248 = arith.addf %244, %247 : vector<8x32xf32>
    %249 = math.tanh %248 : vector<8x32xf32>
    %cst_79 = arith.constant 1.000000e+00 : f32
    %250 = vector.broadcast %cst_79 : f32 to vector<8x32xf32>
    %251 = arith.subf %250, %243 : vector<8x32xf32>
    %252 = arith.mulf %251, %249 : vector<8x32xf32>
    %253 = arith.mulf %243, %226 : vector<8x32xf32>
    %254 = arith.addf %252, %253 : vector<8x32xf32>
    %c7 = arith.constant 7 : index
    %c0_80 = arith.constant 0 : index
    %c0_81 = arith.constant 0 : index
    %255 = vector.load %arg0[%c7, %c0_80, %c0_81] : memref<8x8x4xf32, #tpu.memory_space<vmem>>, vector<1x8x4xf32>
    %256 = vector.shape_cast %255 : vector<1x8x4xf32> to vector<8x4xf32>
    %c0_82 = arith.constant 0 : index
    %c0_83 = arith.constant 0 : index
    %c0_84 = arith.constant 0 : index
    %257 = vector.load %arg5[%c0_82, %c0_83, %c0_84] : memref<3x4x32xf32, #tpu.memory_space<vmem>>, vector<1x4x32xf32>
    %258 = vector.shape_cast %257 : vector<1x4x32xf32> to vector<4x32xf32>
    %cst_85 = arith.constant dense<0.000000e+00> : vector<8x32xf32>
    %259 = tpu.matmul %256, %258, %cst_85 {dimension_numbers = #tpu.dot_dimension_numbers<[1], [0], [0], [1], [0, 0, 1, 1], [], []>} : vector<8x4xf32>, vector<4x32xf32>, vector<8x32xf32> -> vector<8x32xf32>
    %c0_86 = arith.constant 0 : index
    %c0_87 = arith.constant 0 : index
    %c0_88 = arith.constant 0 : index
    %260 = vector.load %arg6[%c0_86, %c0_87, %c0_88] : memref<3x1x32xf32, #tpu.memory_space<vmem>>, vector<1x1x32xf32>
    %261 = vector.shape_cast %260 : vector<1x1x32xf32> to vector<1x32xf32>
    %262 = vector.broadcast %261 : vector<1x32xf32> to vector<8x32xf32>
    %263 = arith.addf %259, %262 : vector<8x32xf32>
    %c1_89 = arith.constant 1 : index
    %c0_90 = arith.constant 0 : index
    %c0_91 = arith.constant 0 : index
    %264 = vector.load %arg5[%c1_89, %c0_90, %c0_91] : memref<3x4x32xf32, #tpu.memory_space<vmem>>, vector<1x4x32xf32>
    %265 = vector.shape_cast %264 : vector<1x4x32xf32> to vector<4x32xf32>
    %cst_92 = arith.constant dense<0.000000e+00> : vector<8x32xf32>
    %266 = tpu.matmul %256, %265, %cst_92 {dimension_numbers = #tpu.dot_dimension_numbers<[1], [0], [0], [1], [0, 0, 1, 1], [], []>} : vector<8x4xf32>, vector<4x32xf32>, vector<8x32xf32> -> vector<8x32xf32>
    %c1_93 = arith.constant 1 : index
    %c0_94 = arith.constant 0 : index
    %c0_95 = arith.constant 0 : index
    %267 = vector.load %arg6[%c1_93, %c0_94, %c0_95] : memref<3x1x32xf32, #tpu.memory_space<vmem>>, vector<1x1x32xf32>
    %268 = vector.shape_cast %267 : vector<1x1x32xf32> to vector<1x32xf32>
    %269 = vector.broadcast %268 : vector<1x32xf32> to vector<8x32xf32>
    %270 = arith.addf %266, %269 : vector<8x32xf32>
    %c2_96 = arith.constant 2 : index
    %c0_97 = arith.constant 0 : index
    %c0_98 = arith.constant 0 : index
    %271 = vector.load %arg5[%c2_96, %c0_97, %c0_98] : memref<3x4x32xf32, #tpu.memory_space<vmem>>, vector<1x4x32xf32>
    %272 = vector.shape_cast %271 : vector<1x4x32xf32> to vector<4x32xf32>
    %cst_99 = arith.constant dense<0.000000e+00> : vector<8x32xf32>
    %273 = tpu.matmul %256, %272, %cst_99 {dimension_numbers = #tpu.dot_dimension_numbers<[1], [0], [0], [1], [0, 0, 1, 1], [], []>} : vector<8x4xf32>, vector<4x32xf32>, vector<8x32xf32> -> vector<8x32xf32>
    %c2_100 = arith.constant 2 : index
    %c0_101 = arith.constant 0 : index
    %c0_102 = arith.constant 0 : index
    %274 = vector.load %arg6[%c2_100, %c0_101, %c0_102] : memref<3x1x32xf32, #tpu.memory_space<vmem>>, vector<1x1x32xf32>
    %275 = vector.shape_cast %274 : vector<1x1x32xf32> to vector<1x32xf32>
    %276 = vector.broadcast %275 : vector<1x32xf32> to vector<8x32xf32>
    %277 = arith.addf %273, %276 : vector<8x32xf32>
    %278 = arith.negf %263 : vector<8x32xf32>
    %279 = math.exp %278 : vector<8x32xf32>
    %cst_103 = arith.constant 1.000000e+00 : f32
    %280 = vector.broadcast %cst_103 : f32 to vector<8x32xf32>
    %281 = arith.addf %280, %279 : vector<8x32xf32>
    %282 = arith.divf %280, %281 : vector<8x32xf32>
    %283 = arith.negf %270 : vector<8x32xf32>
    %284 = math.exp %283 : vector<8x32xf32>
    %cst_104 = arith.constant 1.000000e+00 : f32
    %285 = vector.broadcast %cst_104 : f32 to vector<8x32xf32>
    %286 = arith.addf %285, %284 : vector<8x32xf32>
    %287 = arith.divf %285, %286 : vector<8x32xf32>
    %c0_105 = arith.constant 0 : index
    %c0_106 = arith.constant 0 : index
    %288 = vector.load %arg7[%c0_105, %c0_106] : memref<1x32xf32, #tpu.memory_space<vmem>>, vector<1x32xf32>
    %289 = vector.broadcast %288 : vector<1x32xf32> to vector<8x32xf32>
    %290 = arith.mulf %282, %289 : vector<8x32xf32>
    %291 = arith.addf %277, %290 : vector<8x32xf32>
    %292 = math.tanh %291 : vector<8x32xf32>
    %cst_107 = arith.constant 1.000000e+00 : f32
    %293 = vector.broadcast %cst_107 : f32 to vector<8x32xf32>
    %294 = arith.subf %293, %287 : vector<8x32xf32>
    %295 = arith.mulf %294, %292 : vector<8x32xf32>
    %c0_108 = arith.constant 0 : index
    %c0_109 = arith.constant 0 : index
    %296 = vector.load %arg8[%c0_108, %c0_109] : memref<32x4xf32, #tpu.memory_space<vmem>>, vector<32x4xf32>
    %cst_110 = arith.constant dense<0.000000e+00> : vector<8x4xf32>
    %297 = tpu.matmul %254, %296, %cst_110 {dimension_numbers = #tpu.dot_dimension_numbers<[1], [0], [0], [1], [0, 0, 1, 1], [], []>} : vector<8x32xf32>, vector<32x4xf32>, vector<8x4xf32> -> vector<8x4xf32>
    %c0_111 = arith.constant 0 : index
    %c0_112 = arith.constant 0 : index
    %298 = vector.load %arg9[%c0_111, %c0_112] : memref<32x4xf32, #tpu.memory_space<vmem>>, vector<32x4xf32>
    %cst_113 = arith.constant dense<0.000000e+00> : vector<8x4xf32>
    %299 = tpu.matmul %295, %298, %cst_113 {dimension_numbers = #tpu.dot_dimension_numbers<[1], [0], [0], [1], [0, 0, 1, 1], [], []>} : vector<8x32xf32>, vector<32x4xf32>, vector<8x4xf32> -> vector<8x4xf32>
    %300 = arith.addf %297, %299 : vector<8x4xf32>
    %c0_114 = arith.constant 0 : index
    %c0_115 = arith.constant 0 : index
    %301 = vector.load %arg10[%c0_114, %c0_115] : memref<1x4xf32, #tpu.memory_space<vmem>>, vector<1x4xf32>
    %302 = vector.broadcast %301 : vector<1x4xf32> to vector<8x4xf32>
    %303 = arith.addf %300, %302 : vector<8x4xf32>
    %c0_116 = arith.constant 0 : index
    %c0_117 = arith.constant 0 : index
    %304 = vector.load %arg11[%c0_116, %c0_117] : memref<8x4xf32, #tpu.memory_space<vmem>>, vector<8x4xf32>
    tpu.vector_store %arg11[%c0_116, %c0_117], %303 {strides = array<i32>} : memref<8x4xf32, #tpu.memory_space<vmem>>, vector<8x4xf32>,
    return
  }
}

</mosaic_0001>

<llo_original>
// kernel: bigru_forward.1
$region0: #{bigru_forward.1}
  #allocation0 [shape = 'u32[]', space=smem, size = 0x4, offset = 0x4, fixed_abs, tag = 'smem constant byte address 0x4 - core index']
  #allocation1 [shape = 'u32[144,128]{1,0:T(1,128)}', space=vmem, size = 0x12000, scoped, tag = 'internal scratch']
  %s0 = inlined_call_operand.vmem [shape: f32[8,8,4], index: 0, kind: input, shape index: {}]
  %s1 = inlined_call_operand.vmem [shape: f32[3,4,32], index: 1, kind: input, shape index: {}]
  %s2 = inlined_call_operand.vmem [shape: f32[3,32,32], index: 2, kind: input, shape index: {}]
  %s3 = inlined_call_operand.vmem [shape: f32[3,1,32], index: 3, kind: input, shape index: {}]
  %s4 = inlined_call_operand.vmem [shape: f32[1,32], index: 4, kind: input, shape index: {}]
  %s5 = inlined_call_operand.vmem [shape: f32[3,4,32], index: 5, kind: input, shape index: {}]
  %s6 = inlined_call_operand.vmem [shape: f32[3,1,32], index: 6, kind: input, shape index: {}]
  %s7 = inlined_call_operand.vmem [shape: f32[1,32], index: 7, kind: input, shape index: {}]
  %s8 = inlined_call_operand.vmem [shape: f32[32,4], index: 8, kind: input, shape index: {}]
  %s9 = inlined_call_operand.vmem [shape: f32[32,4], index: 9, kind: input, shape index: {}]
  %s10 = inlined_call_operand.vmem [shape: f32[1,4], index: 10, kind: input, shape index: {}]
  %s11 = inlined_call_operand.vmem [shape: f32[8,4], index: 11, kind: output, shape index: {}]
  %s12 = sld [smem:[#allocation0]]
  $region54: #{bigru_forward.1} parent=0
    _
  %s14 = ssub.s32 1, %s12
  %s15 = scalar_select 0, %s14, %s12
  // Predicated region
  $region2: #{bigru_forward.1} parent=0 // pred_check
    _
  $region3: #{bigru_forward.1} parent=0 // pred_check_branch
    %17 = sbr.rel (0) target = $region5
  $region4: #{bigru_forward.1} parent=0 // pred_region
    _
  $region5: #{bigru_forward.1} parent=0 // pred_fallthru
    _
  // Predicated region
  $region6: #{bigru_forward.1} parent=0 // pred_check
    _
  $region7: #{bigru_forward.1} parent=0 // pred_check_branch
    %19 = sbr.rel (0) target = $region9
  $region8: #{bigru_forward.1} parent=0 // pred_region
    _
  $region9: #{bigru_forward.1} parent=0 // pred_fallthru
    _
  // Predicated region
  $region10: #{bigru_forward.1} parent=0 // pred_check
    _
  $region11: #{bigru_forward.1} parent=0 // pred_check_branch
    %21 = sbr.rel (0) target = $region13
  $region12: #{bigru_forward.1} parent=0 // pred_region
    _
  $region13: #{bigru_forward.1} parent=0 // pred_fallthru
    _
  // Predicated region
  $region14: #{bigru_forward.1} parent=0 // pred_check
    _
  $region15: #{bigru_forward.1} parent=0 // pred_check_branch
    %23 = sbr.rel (0) target = $region17
  $region16: #{bigru_forward.1} parent=0 // pred_region
    _
  $region17: #{bigru_forward.1} parent=0 // pred_fallthru
    _
  // Predicated region
  $region18: #{bigru_forward.1} parent=0 // pred_check
    _
  $region19: #{bigru_forward.1} parent=0 // pred_check_branch
    %25 = sbr.rel (0) target = $region21
  $region20: #{bigru_forward.1} parent=0 // pred_region
    _
  $region21: #{bigru_forward.1} parent=0 // pred_fallthru
    _
  // Predicated region
  $region22: #{bigru_forward.1} parent=0 // pred_check
    _
  $region23: #{bigru_forward.1} parent=0 // pred_check_branch
    %27 = sbr.rel (0) target = $region25
  $region24: #{bigru_forward.1} parent=0 // pred_region
    _
  $region25: #{bigru_forward.1} parent=0 // pred_fallthru
    _
  // Predicated region
  $region26: #{bigru_forward.1} parent=0 // pred_check
    _
  $region27: #{bigru_forward.1} parent=0 // pred_check_branch
    %29 = sbr.rel (0) target = $region29
  $region28: #{bigru_forward.1} parent=0 // pred_region
    _
  $region29: #{bigru_forward.1} parent=0 // pred_fallthru
    _
  // Predicated region
  $region30: #{bigru_forward.1} parent=0 // pred_check
    _
  $region31: #{bigru_forward.1} parent=0 // pred_check_branch
    %31 = sbr.rel (0) target = $region33
  $region32: #{bigru_forward.1} parent=0 // pred_region
    _
  $region33: #{bigru_forward.1} parent=0 // pred_fallthru
    _
  // Predicated region
  $region34: #{bigru_forward.1} parent=0 // pred_check
    _
  $region35: #{bigru_forward.1} parent=0 // pred_check_branch
    %33 = sbr.rel (0) target = $region37
  $region36: #{bigru_forward.1} parent=0 // pred_region
    _
  $region37: #{bigru_forward.1} parent=0 // pred_fallthru
    _
  // Predicated region
  $region38: #{bigru_forward.1} parent=0 // pred_check
    _
  $region39: #{bigru_forward.1} parent=0 // pred_check_branch
    %35 = sbr.rel (0) target = $region41
  $region40: #{bigru_forward.1} parent=0 // pred_region
    _
  $region41: #{bigru_forward.1} parent=0 // pred_fallthru
    _
  // Predicated region
  $region42: #{bigru_forward.1} parent=0 // pred_check
    _
  $region43: #{bigru_forward.1} parent=0 // pred_check_branch
    %37 = sbr.rel (0) target = $region45
  $region44: #{bigru_forward.1} parent=0 // pred_region
    _
  $region45: #{bigru_forward.1} parent=0 // pred_fallthru
    _
  %v38 = vld [vmem:[%s0] sm:$0xff]
  %v39 = vld [vmem:[%s0 + $0x8] sm:$0xff]
  %v40 = vld [vmem:[%s0 + $0x10] sm:$0xff]
  %v41 = vld [vmem:[%s0 + $0x18] sm:$0xff]
  %v42 = vld [vmem:[%s0 + $0x20] sm:$0xff]
  %v43 = vld [vmem:[%s0 + $0x28] sm:$0xff]
  %v44 = vld [vmem:[%s0 + $0x30] sm:$0xff]
  %v45 = vld [vmem:[%s0 + $0x38] sm:$0xff]
  %v46 = vld [vmem:[%s1] sm:$0xf]
  %v47 = vld [vmem:[%s3] sm:$0x1]
  %v49 = vlaneseq
  %v50 = vshrl.u32 %v49, 7
  %v51 = vsub.s32 0, %v50
  %v52 = vrot.slane %v47, %v51
  %vm54 = vcmask 31744
  %v56 = vsel %vm54, %v38, 0
  %v59 = vsel %vm54, %v39, 0
  %v62 = vsel %vm54, %v40, 0
  %v65 = vsel %vm54, %v41, 0
  %v68 = vsel %vm54, %v42, 0
  %v71 = vsel %vm54, %v43, 0
  %v74 = vsel %vm54, %v44, 0
  %v77 = vsel %vm54, %v45, 0
  %vm79 = vcmask 1043456
  %v81 = vsel %vm79, %v46, 0
  %83 = vmatprep.subr.mxu0 0.0
  %84 = vmatpush1.msra.mxu0 %v81
  %85 = vmatprep.subr.mxu0 0.0
  %86 = vmatpush1.msra.mxu0 0.0
  %87 = vmatprep.subr.mxu0 0.0
  %88 = vmatpush1.msra.mxu0 0.0
  %89 = vmatprep.subr.mxu0 0.0
  %90 = vmatpush1.msra.mxu0 0.0
  %91 = vmatprep.subr.mxu0 0.0
  %92 = vmatpush1.msra.mxu0 0.0
  %93 = vmatprep.subr.mxu0 0.0
  %94 = vmatpush1.msra.mxu0 0.0
  %95 = vmatprep.subr.mxu0 0.0
  %96 = vmatpush1.msra.mxu0 0.0
  %97 = vmatprep.subr.mxu0 0.0
  %98 = vmatpush1.msra.mxu0 0.0
  %99 = vmatprep.subr.mxu0 0.0
  %100 = vmatpush1.msra.mxu0 0.0
  %101 = vmatprep.subr.mxu0 0.0
  %102 = vmatpush1.msra.mxu0 0.0
  %103 = vmatprep.subr.mxu0 0.0
  %104 = vmatpush1.msra.mxu0 0.0
  %105 = vmatprep.subr.mxu0 0.0
  %106 = vmatpush1.msra.mxu0 0.0
  %107 = vmatprep.subr.mxu0 0.0
  %108 = vmatpush1.msra.mxu0 0.0
  %109 = vmatprep.subr.mxu0 0.0
  %110 = vmatpush1.msra.mxu0 0.0
  %111 = vmatprep.subr.mxu0 0.0
  %112 = vmatpush1.msra.mxu0 0.0
  %113 = vmatprep.subr.mxu0 0.0
  %114 = vmatpush1.msra.mxu0 0.0
  %115 = vmatprep.subr.mxu0 0.0
  %116 = vmatpush1.msra.mxu0 0.0
  %117 = vmatprep.subr.mxu0 0.0
  %118 = vmatpush1.msra.mxu0 0.0
  %119 = vmatprep.subr.mxu0 0.0
  %120 = vmatpush1.msra.mxu0 0.0
  %121 = vmatprep.subr.mxu0 0.0
  %122 = vmatpush1.msra.mxu0 0.0
  %123 = vmatprep.subr.mxu0 0.0
  %124 = vmatpush1.msra.mxu0 0.0
  %125 = vmatprep.subr.mxu0 0.0
  %126 = vmatpush1.msra.mxu0 0.0
  %127 = vmatprep.subr.mxu0 0.0
  %128 = vmatpush1.msra.mxu0 0.0
  %129 = vmatprep.subr.mxu0 0.0
  %130 = vmatpush1.msra.mxu0 0.0
  %131 = vmatprep.subr.mxu0 0.0
  %132 = vmatpush1.msra.mxu0 0.0
  %133 = vmatprep.subr.mxu0 0.0
  %134 = vmatpush1.msra.mxu0 0.0
  %135 = vmatprep.subr.mxu0 0.0
  %136 = vmatpush1.msra.mxu0 0.0
  %137 = vmatprep.subr.mxu0 0.0
  %138 = vmatpush1.msra.mxu0 0.0
  %139 = vmatprep.subr.mxu0 0.0
  %140 = vmatpush1.msra.mxu0 0.0
  %141 = vmatprep.subr.mxu0 0.0
  %142 = vmatpush1.msra.mxu0 0.0
  %143 = vmatprep.subr.mxu0 0.0
  %144 = vmatpush1.msra.mxu0 0.0
  %145 = vmatprep.subr.mxu0 0.0
  %146 = vmatpush1.msra.mxu0 0.0
  %147 = vmatprep.mubr.f32.mxu0 0.0
  %148 = vmatmul.mubr.f32.gmra.mrb[0].mxu0 %v56
  %v149 = vpop.f32.mrb[0].mxu0
  %v150 = vadd.f32 %v52, %v149
  %v151 = vpop.f32.mrb[0].mxu0
  %152 = vmatprep.mubr.f32.mxu0 0.0
  %153 = vmatmul.mubr.f32.gmra.mrb[0].mxu0 %v59
  %v154 = vpop.f32.mrb[0].mxu0
  %v155 = vadd.f32 %v52, %v154
  %v156 = vpop.f32.mrb[0].mxu0
  %157 = vmatprep.mubr.f32.mxu0 0.0
  %158 = vmatmul.mubr.f32.gmra.mrb[0].mxu0 %v62
  %v159 = vpop.f32.mrb[0].mxu0
  %v160 = vadd.f32 %v52, %v159
  %v161 = vpop.f32.mrb[0].mxu0
  %162 = vmatprep.mubr.f32.mxu0 0.0
  %163 = vmatmul.mubr.f32.gmra.mrb[0].mxu0 %v65
  %v164 = vpop.f32.mrb[0].mxu0
  %v165 = vadd.f32 %v52, %v164
  %v166 = vpop.f32.mrb[0].mxu0
  %167 = vmatprep.mubr.f32.mxu0 0.0
  %168 = vmatmul.mubr.f32.gmra.mrb[0].mxu0 %v68
  %v169 = vpop.f32.mrb[0].mxu0
  %v170 = vadd.f32 %v52, %v169
  %v171 = vpop.f32.mrb[0].mxu0
  %172 = vmatprep.mubr.f32.mxu0 0.0
  %173 = vmatmul.mubr.f32.gmra.mrb[0].mxu0 %v71
  %v174 = vpop.f32.mrb[0].mxu0
  %v175 = vadd.f32 %v52, %v174
  %v176 = vpop.f32.mrb[0].mxu0
  %177 = vmatprep.mubr.f32.mxu0 0.0
  %178 = vmatmul.mubr.f32.gmra.mrb[0].mxu0 %v74
  %v179 = vpop.f32.mrb[0].mxu0
  %v180 = vadd.f32 %v52, %v179
  %v181 = vpop.f32.mrb[0].mxu0
  %182 = vmatprep.mubr.f32.mxu0 0.0
  %183 = vmatmul.mubr.f32.gmra.mrb[0].mxu0 %v77
  %v184 = vpop.f32.mrb[0].mxu0
  %v185 = vadd.f32 %v52, %v184
  %v186 = vpop.f32.mrb[0].mxu0
  %187 = vdwg.mxu0
  %s188 = scalar_lea.vmem %s1, 4
  %v189 = vld [vmem:[%s188] sm:$0xf]
  %s190 = scalar_lea.vmem %s3, 1
  %v191 = vld [vmem:[%s190] sm:$0x1]
  %v193 = vlaneseq
  %v194 = vshrl.u32 %v193, 7
  %v195 = vsub.s32 0, %v194
  %v196 = vrot.slane %v191, %v195
  %v199 = vsel %vm79, %v189, 0
  %201 = vmatprep.subr.mxu0 0.0
  %202 = vmatpush1.msra.mxu0 %v199
  %203 = vmatprep.subr.mxu0 0.0
  %204 = vmatpush1.msra.mxu0 0.0
  %205 = vmatprep.subr.mxu0 0.0
  %206 = vmatpush1.msra.mxu0 0.0
  %207 = vmatprep.subr.mxu0 0.0
  %208 = vmatpush1.msra.mxu0 0.0
  %209 = vmatprep.subr.mxu0 0.0
  %210 = vmatpush1.msra.mxu0 0.0
  %211 = vmatprep.subr.mxu0 0.0
  %212 = vmatpush1.msra.mxu0 0.0
  %213 = vmatprep.subr.mxu0 0.0
  %214 = vmatpush1.msra.mxu0 0.0
  %215 = vmatprep.subr.mxu0 0.0
  %216 = vmatpush1.msra.mxu0 0.0
  %217 = vmatprep.subr.mxu0 0.0
  %218 = vmatpush1.msra.mxu0 0.0
  %219 = vmatprep.subr.mxu0 0.0
  %220 = vmatpush1.msra.mxu0 0.0
  %221 = vmatprep.subr.mxu0 0.0
  %222 = vmatpush1.msra.mxu0 0.0
  %223 = vmatprep.subr.mxu0 0.0
  %224 = vmatpush1.msra.mxu0 0.0
  %225 = vmatprep.subr.mxu0 0.0
  %226 = vmatpush1.msra.mxu0 0.0
  %227 = vmatprep.subr.mxu0 0.0
  %228 = vmatpush1.msra.mxu0 0.0
  %229 = vmatprep.subr.mxu0 0.0
  %230 = vmatpush1.msra.mxu0 0.0
  %231 = vmatprep.subr.mxu0 0.0
  %232 = vmatpush1.msra.mxu0 0.0
  %233 = vmatprep.subr.mxu0 0.0
  %234 = vmatpush1.msra.mxu0 0.0
  %235 = vmatprep.subr.mxu0 0.0
  %236 = vmatpush1.msra.mxu0 0.0
  %237 = vmatprep.subr.mxu0 0.0
  %238 = vmatpush1.msra.mxu0 0.0
  %239 = vmatprep.subr.mxu0 0.0
  %240 = vmatpush1.msra.mxu0 0.0
  %241 = vmatprep.subr.mxu0 0.0
  %242 = vmatpush1.msra.mxu0 0.0
  %243 = vmatprep.subr.mxu0 0.0
  %244 = vmatpush1.msra.mxu0 0.0
  %245 = vmatprep.subr.mxu0 0.0
  %246 = vmatpush1.msra.mxu0 0.0
  %247 = vmatprep.subr.mxu0 0.0
  %248 = vmatpush1.msra.mxu0 0.0
  %249 = vmatprep.subr.mxu0 0.0
  %250 = vmatpush1.msra.mxu0 0.0
  %251 = vmatprep.subr.mxu0 0.0
  %252 = vmatpush1.msra.mxu0 0.0
  %253 = vmatprep.subr.mxu0 0.0
  %254 = vmatpush1.msra.mxu0 0.0
  %255 = vmatprep.subr.mxu0 0.0
  %256 = vmatpush1.msra.mxu0 0.0
  %257 = vmatprep.subr.mxu0 0.0
  %258 = vmatpush1.msra.mxu0 0.0
  %259 = vmatprep.subr.mxu0 0.0
  %260 = vmatpush1.msra.mxu0 0.0
  %261 = vmatprep.subr.mxu0 0.0
  %262 = vmatpush1.msra.mxu0 0.0
  %263 = vmatprep.subr.mxu0 0.0
  %264 = vmatpush1.msra.mxu0 0.0
  %265 = vmatprep.mubr.f32.mxu0 0.0
  %266 = vmatmul.mubr.f32.gmra.mrb[0].mxu0 %v56
  %v267 = vpop.f32.mrb[0].mxu0
  %v268 = vadd.f32 %v196, %v267
  %v269 = vpop.f32.mrb[0].mxu0
  %270 = vmatprep.mubr.f32.mxu0 0.0
  %271 = vmatmul.mubr.f32.gmra.mrb[0].mxu0 %v59
  %v272 = vpop.f32.mrb[0].mxu0
  %v273 = vadd.f32 %v196, %v272
  %v274 = vpop.f32.mrb[0].mxu0
  %275 = vmatprep.mubr.f32.mxu0 0.0
  %276 = vmatmul.mubr.f32.gmra.mrb[0].mxu0 %v62
  %v277 = vpop.f32.mrb[0].mxu0
  %v278 = vadd.f32 %v196, %v277
  %v279 = vpop.f32.mrb[0].mxu0
  %280 = vmatprep.mubr.f32.mxu0 0.0
  %281 = vmatmul.mubr.f32.gmra.mrb[0].mxu0 %v65
  %v282 = vpop.f32.mrb[0].mxu0
  %v283 = vadd.f32 %v196, %v282
  %v284 = vpop.f32.mrb[0].mxu0
  %285 = vmatprep.mubr.f32.mxu0 0.0
  %286 = vmatmul.mubr.f32.gmra.mrb[0].mxu0 %v68
  %v287 = vpop.f32.mrb[0].mxu0
  %v288 = vadd.f32 %v196, %v287
  %v289 = vpop.f32.mrb[0].mxu0
  %290 = vmatprep.mubr.f32.mxu0 0.0
  %291 = vmatmul.mubr.f32.gmra.mrb[0].mxu0 %v71
  %v292 = vpop.f32.mrb[0].mxu0
  %v293 = vadd.f32 %v196, %v292
  %v294 = vpop.f32.mrb[0].mxu0
  %295 = vmatprep.mubr.f32.mxu0 0.0
  %296 = vmatmul.mubr.f32.gmra.mrb[0].mxu0 %v74
  %v297 = vpop.f32.mrb[0].mxu0
  %v298 = vadd.f32 %v196, %v297
  %v299 = vpop.f32.mrb[0].mxu0
  %300 = vmatprep.mubr.f32.mxu0 0.0
  %301 = vmatmul.mubr.f32.gmra.mrb[0].mxu0 %v77
  %v302 = vpop.f32.mrb[0].mxu0
  %v303 = vadd.f32 %v196, %v302
  %v304 = vpop.f32.mrb[0].mxu0
  %305 = vdwg.mxu0
  %s306 = scalar_lea.vmem %s1, 8
  %v307 = vld [vmem:[%s306] sm:$0xf]
  %s308 = scalar_lea.vmem %s3, 2
  %v309 = vld [vmem:[%s308] sm:$0x1]
  %v311 = vlaneseq
  %v312 = vshrl.u32 %v311, 7
  %v313 = vsub.s32 0, %v312
  %v314 = vrot.slane %v309, %v313
  %v317 = vsel %vm79, %v307, 0
  %319 = vmatprep.subr.mxu0 0.0
  %320 = vmatpush1.msra.mxu0 %v317
  %321 = vmatprep.subr.mxu0 0.0
  %322 = vmatpush1.msra.mxu0 0.0
  %323 = vmatprep.subr.mxu0 0.0
  %324 = vmatpush1.msra.mxu0 0.0
  %325 = vmatprep.subr.mxu0 0.0
  %326 = vmatpush1.msra.mxu0 0.0
  %327 = vmatprep.subr.mxu0 0.0
  %328 = vmatpush1.msra.mxu0 0.0
  %329 = vmatprep.subr.mxu0 0.0
  %330 = vmatpush1.msra.mxu0 0.0
  %331 = vmatprep.subr.mxu0 0.0
  %332 = vmatpush1.msra.mxu0 0.0
  %333 = vmatprep.subr.mxu0 0.0
  %334 = vmatpush1.msra.mxu0 0.0
  %335 = vmatprep.subr.mxu0 0.0
  %336 = vmatpush1.msra.mxu0 0.0
  %337 = vmatprep.subr.mxu0 0.0
  %338 = vmatpush1.msra.mxu0 0.0
  %339 = vmatprep.subr.mxu0 0.0
  %340 = vmatpush1.msra.mxu0 0.0
  %341 = vmatprep.subr.mxu0 0.0
  %342 = vmatpush1.msra.mxu0 0.0
  %343 = vmatprep.subr.mxu0 0.0
  %344 = vmatpush1.msra.mxu0 0.0
  %345 = vmatprep.subr.mxu0 0.0
  %346 = vmatpush1.msra.mxu0 0.0
  %347 = vmatprep.subr.mxu0 0.0
  %348 = vmatpush1.msra.mxu0 0.0
  %349 = vmatprep.subr.mxu0 0.0
  %350 = vmatpush1.msra.mxu0 0.0
  %351 = vmatprep.subr.mxu0 0.0
  %352 = vmatpush1.msra.mxu0 0.0
  %353 = vmatprep.subr.mxu0 0.0
  %354 = vmatpush1.msra.mxu0 0.0
  %355 = vmatprep.subr.mxu0 0.0
  %356 = vmatpush1.msra.mxu0 0.0
  %357 = vmatprep.subr.mxu0 0.0
  %358 = vmatpush1.msra.mxu0 0.0
  %359 = vmatprep.subr.mxu0 0.0
  %360 = vmatpush1.msra.mxu0 0.0
  %361 = vmatprep.subr.mxu0 0.0
  %362 = vmatpush1.msra.mxu0 0.0
  %363 = vmatprep.subr.mxu0 0.0
  %364 = vmatpush1.msra.mxu0 0.0
  %365 = vmatprep.subr.mxu0 0.0
  %366 = vmatpush1.msra.mxu0 0.0
  %367 = vmatprep.subr.mxu0 0.0
  %368 = vmatpush1.msra.mxu0 0.0
  %369 = vmatprep.subr.mxu0 0.0
  %370 = vmatpush1.msra.mxu0 0.0
  %371 = vmatprep.subr.mxu0 0.0
  %372 = vmatpush1.msra.mxu0 0.0
  %373 = vmatprep.subr.mxu0 0.0
  %374 = vmatpush1.msra.mxu0 0.0
  %375 = vmatprep.subr.mxu0 0.0
  %376 = vmatpush1.msra.mxu0 0.0
  %377 = vmatprep.subr.mxu0 0.0
  %378 = vmatpush1.msra.mxu0 0.0
  %379 = vmatprep.subr.mxu0 0.0
  %380 = vmatpush1.msra.mxu0 0.0
  %381 = vmatprep.subr.mxu0 0.0
  %382 = vmatpush1.msra.mxu0 0.0
  %383 = vmatprep.mubr.f32.mxu0 0.0
  %384 = vmatmul.mubr.f32.gmra.mrb[0].mxu0 %v56
  %v385 = vpop.f32.mrb[0].mxu0
  %v386 = vadd.f32 %v314, %v385
  %v387 = vpop.f32.mrb[0].mxu0
  %388 = vmatprep.mubr.f32.mxu0 0.0
  %389 = vmatmul.mubr.f32.gmra.mrb[0].mxu0 %v59
  %v390 = vpop.f32.mrb[0].mxu0
  %v391 = vadd.f32 %v314, %v390
  %v392 = vpop.f32.mrb[0].mxu0
  %393 = vmatprep.mubr.f32.mxu0 0.0
  %394 = vmatmul.mubr.f32.gmra.mrb[0].mxu0 %v62
  %v395 = vpop.f32.mrb[0].mxu0
  %v396 = vadd.f32 %v314, %v395
  %v397 = vpop.f32.mrb[0].mxu0
  %398 = vmatprep.mubr.f32.mxu0 0.0
  %399 = vmatmul.mubr.f32.gmra.mrb[0].mxu0 %v65
  %v400 = vpop.f32.mrb[0].mxu0
  %v401 = vadd.f32 %v314, %v400
  %v402 = vpop.f32.mrb[0].mxu0
  %403 = vmatprep.mubr.f32.mxu0 0.0
  %404 = vmatmul.mubr.f32.gmra.mrb[0].mxu0 %v68
  %v405 = vpop.f32.mrb[0].mxu0
  %v406 = vadd.f32 %v314, %v405
  %v407 = vpop.f32.mrb[0].mxu0
  %408 = vmatprep.mubr.f32.mxu0 0.0
  %409 = vmatmul.mubr.f32.gmra.mrb[0].mxu0 %v71
  %v410 = vpop.f32.mrb[0].mxu0
  %v411 = vadd.f32 %v314, %v410
  %v412 = vpop.f32.mrb[0].mxu0
  %413 = vmatprep.mubr.f32.mxu0 0.0
  %414 = vmatmul.mubr.f32.gmra.mrb[0].mxu0 %v74
  %v415 = vpop.f32.mrb[0].mxu0
  %v416 = vadd.f32 %v314, %v415
  %v417 = vpop.f32.mrb[0].mxu0
  %418 = vmatprep.mubr.f32.mxu0 0.0
  %419 = vmatmul.mubr.f32.gmra.mrb[0].mxu0 %v77
  %v420 = vpop.f32.mrb[0].mxu0
  %v421 = vadd.f32 %v314, %v420
  %v422 = vpop.f32.mrb[0].mxu0
  %423 = vdwg.mxu0
  %v424 = vld [vmem:[%s2] sm:$0xff]
  %v425 = vld [vmem:[%s2 + $0x8] sm:$0xff]
  %v426 = vld [vmem:[%s2 + $0x10] sm:$0xff]
  %v427 = vld [vmem:[%s2 + $0x18] sm:$0xff]
  %s428 = scalar_lea.vmem %s2, 32
  %v429 = vld [vmem:[%s428] sm:$0xff]
  %v430 = vld [vmem:[%s428 + $0x8] sm:$0xff]
  %v431 = vld [vmem:[%s428 + $0x10] sm:$0xff]
  %v432 = vld [vmem:[%s428 + $0x18] sm:$0xff]
  %s433 = scalar_lea.vmem %s2, 64
  %v434 = vld [vmem:[%s433] sm:$0xff]
  %v435 = vld [vmem:[%s433 + $0x8] sm:$0xff]
  %v436 = vld [vmem:[%s433 + $0x10] sm:$0xff]
  %v437 = vld [vmem:[%s433 + $0x18] sm:$0xff]
  %v438 = vld [vmem:[%s4] sm:$0x1]
  %vm439 = vcmask 261120
  %v441 = vsel %vm439, 0.0, 0
  %443 = vmatprep.subr.mxu0 0.0
  %444 = vmatpush1.msra.mxu0 %v424
  %445 = vmatprep.subr.mxu0 0.0
  %446 = vmatpush1.msra.mxu0 %v425
  %447 = vmatprep.subr.mxu0 0.0
  %448 = vmatpush1.msra.mxu0 %v426
  %449 = vmatprep.subr.mxu0 0.0
  %450 = vmatpush1.msra.mxu0 %v427
  %451 = vmatprep.subr.mxu0 0.0
  %452 = vmatpush1.msra.mxu0 0.0
  %453 = vmatprep.subr.mxu0 0.0
  %454 = vmatpush1.msra.mxu0 0.0
  %455 = vmatprep.subr.mxu0 0.0
  %456 = vmatpush1.msra.mxu0 0.0
  %457 = vmatprep.subr.mxu0 0.0
  %458 = vmatpush1.msra.mxu0 0.0
  %459 = vmatprep.subr.mxu0 0.0
  %460 = vmatpush1.msra.mxu0 0.0
  %461 = vmatprep.subr.mxu0 0.0
  %462 = vmatpush1.msra.mxu0 0.0
  %463 = vmatprep.subr.mxu0 0.0
  %464 = vmatpush1.msra.mxu0 0.0
  %465 = vmatprep.subr.mxu0 0.0
  %466 = vmatpush1.msra.mxu0 0.0
  %467 = vmatprep.subr.mxu0 0.0
  %468 = vmatpush1.msra.mxu0 0.0
  %469 = vmatprep.subr.mxu0 0.0
  %470 = vmatpush1.msra.mxu0 0.0
  %471 = vmatprep.subr.mxu0 0.0
  %472 = vmatpush1.msra.mxu0 0.0
  %473 = vmatprep.subr.mxu0 0.0
  %474 = vmatpush1.msra.mxu0 0.0
  %475 = vmatprep.subr.mxu0 0.0
  %476 = vmatpush1.msra.mxu0 0.0
  %477 = vmatprep.subr.mxu0 0.0
  %478 = vmatpush1.msra.mxu0 0.0
  %479 = vmatprep.subr.mxu0 0.0
  %480 = vmatpush1.msra.mxu0 0.0
  %481 = vmatprep.subr.mxu0 0.0
  %482 = vmatpush1.msra.mxu0 0.0
  %483 = vmatprep.subr.mxu0 0.0
  %484 = vmatpush1.msra.mxu0 0.0
  %485 = vmatprep.subr.mxu0 0.0
  %486 = vmatpush1.msra.mxu0 0.0
  %487 = vmatprep.subr.mxu0 0.0
  %488 = vmatpush1.msra.mxu0 0.0
  %489 = vmatprep.subr.mxu0 0.0
  %490 = vmatpush1.msra.mxu0 0.0
  %491 = vmatprep.subr.mxu0 0.0
  %492 = vmatpush1.msra.mxu0 0.0
  %493 = vmatprep.subr.mxu0 0.0
  %494 = vmatpush1.msra.mxu0 0.0
  %495 = vmatprep.subr.mxu0 0.0
  %496 = vmatpush1.msra.mxu0 0.0
  %497 = vmatprep.subr.mxu0 0.0
  %498 = vmatpush1.msra.mxu0 0.0
  %499 = vmatprep.subr.mxu0 0.0
  %500 = vmatpush1.msra.mxu0 0.0
  %501 = vmatprep.subr.mxu0 0.0
  %502 = vmatpush1.msra.mxu0 0.0
  %503 = vmatprep.subr.mxu0 0.0
  %504 = vmatpush1.msra.mxu0 0.0
  %505 = vmatprep.subr.mxu0 0.0
  %506 = vmatpush1.msra.mxu0 0.0
  %507 = vmatprep.mubr.f32.mxu0 0.0
  %508 = vmatmul.mubr.f32.gmra.mrb[0].mxu0 %v441
  %v509 = vpop.f32.mrb[0].mxu0
  %v510 = vadd.f32 0.0, %v509
  %v511 = vpop.f32.mrb[0].mxu0
  %512 = vdwg.mxu0
  %513 = vmatprep.subr.mxu0 0.0
  %514 = vmatpush1.msra.mxu0 %v429
  %515 = vmatprep.subr.mxu0 0.0
  %516 = vmatpush1.msra.mxu0 %v430
  %517 = vmatprep.subr.mxu0 0.0
  %518 = vmatpush1.msra.mxu0 %v431
  %519 = vmatprep.subr.mxu0 0.0
  %520 = vmatpush1.msra.mxu0 %v432
  %521 = vmatprep.subr.mxu0 0.0
  %522 = vmatpush1.msra.mxu0 0.0
  %523 = vmatprep.subr.mxu0 0.0
  %524 = vmatpush1.msra.mxu0 0.0
  %525 = vmatprep.subr.mxu0 0.0
  %526 = vmatpush1.msra.mxu0 0.0
  %527 = vmatprep.subr.mxu0 0.0
  %528 = vmatpush1.msra.mxu0 0.0
  %529 = vmatprep.subr.mxu0 0.0
  %530 = vmatpush1.msra.mxu0 0.0
  %531 = vmatprep.subr.mxu0 0.0
  %532 = vmatpush1.msra.mxu0 0.0
  %533 = vmatprep.subr.mxu0 0.0
  %534 = vmatpush1.msra.mxu0 0.0
  %535 = vmatprep.subr.mxu0 0.0
  %536 = vmatpush1.msra.mxu0 0.0
  %537 = vmatprep.subr.mxu0 0.0
  %538 = vmatpush1.msra.mxu0 0.0
  %539 = vmatprep.subr.mxu0 0.0
  %540 = vmatpush1.msra.mxu0 0.0
  %541 = vmatprep.subr.mxu0 0.0
  %542 = vmatpush1.msra.mxu0 0.0
  %543 = vmatprep.subr.mxu0 0.0
  %544 = vmatpush1.msra.mxu0 0.0
  %545 = vmatprep.subr.mxu0 0.0
  %546 = vmatpush1.msra.mxu0 0.0
  %547 = vmatprep.subr.mxu0 0.0
  %548 = vmatpush1.msra.mxu0 0.0
  %549 = vmatprep.subr.mxu0 0.0
  %550 = vmatpush1.msra.mxu0 0.0
  %551 = vmatprep.subr.mxu0 0.0
  %552 = vmatpush1.msra.mxu0 0.0
  %553 = vmatprep.subr.mxu0 0.0
  %554 = vmatpush1.msra.mxu0 0.0
  %555 = vmatprep.subr.mxu0 0.0
  %556 = vmatpush1.msra.mxu0 0.0
  %557 = vmatprep.subr.mxu0 0.0
  %558 = vmatpush1.msra.mxu0 0.0
  %559 = vmatprep.subr.mxu0 0.0
  %560 = vmatpush1.msra.mxu0 0.0
  %561 = vmatprep.subr.mxu0 0.0
  %562 = vmatpush1.msra.mxu0 0.0
  %563 = vmatprep.subr.mxu0 0.0
  %564 = vmatpush1.msra.mxu0 0.0
  %565 = vmatprep.subr.mxu0 0.0
  %566 = vmatpush1.msra.mxu0 0.0
  %567 = vmatprep.subr.mxu0 0.0
  %568 = vmatpush1.msra.mxu0 0.0
  %569 = vmatprep.subr.mxu0 0.0
  %570 = vmatpush1.msra.mxu0 0.0
  %571 = vmatprep.subr.mxu0 0.0
  %572 = vmatpush1.msra.mxu0 0.0
  %573 = vmatprep.subr.mxu0 0.0
  %574 = vmatpush1.msra.mxu0 0.0
  %575 = vmatprep.subr.mxu0 0.0
  %576 = vmatpush1.msra.mxu0 0.0
  %577 = vmatprep.mubr.f32.mxu0 0.0
  %578 = vmatmul.mubr.f32.gmra.mrb[0].mxu0 %v441
  %v579 = vpop.f32.mrb[0].mxu0
  %v580 = vadd.f32 0.0, %v579
  %v581 = vpop.f32.mrb[0].mxu0
  %582 = vdwg.mxu0
  %v583 = vadd.f32 %v150, %v510
  %v584 = vxor.u32 %v583, 2147483648
  %v585 = vmul.f32 %v584, 1.442695
  %v586 = vpow.pop %v585
  %v587 = vadd.f32 %v586, 1.0
  %v588 = vrcp.pop %v587
  %v589 = vmul.f32 1.0, %v588
  %v590 = vadd.f32 %v268, %v580
  %v591 = vxor.u32 %v590, 2147483648
  %v592 = vmul.f32 %v591, 1.442695
  %v593 = vpow.pop %v592
  %v594 = vadd.f32 %v593, 1.0
  %v595 = vrcp.pop %v594
  %v596 = vmul.f32 1.0, %v595
  %v598 = vlaneseq
  %v599 = vshrl.u32 %v598, 7
  %v600 = vsub.s32 0, %v599
  %v601 = vrot.slane %v438, %v600
  %603 = vmatprep.subr.mxu0 0.0
  %604 = vmatpush1.msra.mxu0 %v434
  %605 = vmatprep.subr.mxu0 0.0
  %606 = vmatpush1.msra.mxu0 %v435
  %607 = vmatprep.subr.mxu0 0.0
  %608 = vmatpush1.msra.mxu0 %v436
  %609 = vmatprep.subr.mxu0 0.0
  %610 = vmatpush1.msra.mxu0 %v437
  %611 = vmatprep.subr.mxu0 0.0
  %612 = vmatpush1.msra.mxu0 0.0
  %613 = vmatprep.subr.mxu0 0.0
  %614 = vmatpush1.msra.mxu0 0.0
  %615 = vmatprep.subr.mxu0 0.0
  %616 = vmatpush1.msra.mxu0 0.0
  %617 = vmatprep.subr.mxu0 0.0
  %618 = vmatpush1.msra.mxu0 0.0
  %619 = vmatprep.subr.mxu0 0.0
  %620 = vmatpush1.msra.mxu0 0.0
  %621 = vmatprep.subr.mxu0 0.0
  %622 = vmatpush1.msra.mxu0 0.0
  %623 = vmatprep.subr.mxu0 0.0
  %624 = vmatpush1.msra.mxu0 0.0
  %625 = vmatprep.subr.mxu0 0.0
  %626 = vmatpush1.msra.mxu0 0.0
  %627 = vmatprep.subr.mxu0 0.0
  %628 = vmatpush1.msra.mxu0 0.0
  %629 = vmatprep.subr.mxu0 0.0
  %630 = vmatpush1.msra.mxu0 0.0
  %631 = vmatprep.subr.mxu0 0.0
  %632 = vmatpush1.msra.mxu0 0.0
  %633 = vmatprep.subr.mxu0 0.0
  %634 = vmatpush1.msra.mxu0 0.0
  %635 = vmatprep.subr.mxu0 0.0
  %636 = vmatpush1.msra.mxu0 0.0
  %637 = vmatprep.subr.mxu0 0.0
  %638 = vmatpush1.msra.mxu0 0.0
  %639 = vmatprep.subr.mxu0 0.0
  %640 = vmatpush1.msra.mxu0 0.0
  %641 = vmatprep.subr.mxu0 0.0
  %642 = vmatpush1.msra.mxu0 0.0
  %643 = vmatprep.subr.mxu0 0.0
  %644 = vmatpush1.msra.mxu0 0.0
  %645 = vmatprep.subr.mxu0 0.0
  %646 = vmatpush1.msra.mxu0 0.0
  %647 = vmatprep.subr.mxu0 0.0
  %648 = vmatpush1.msra.mxu0 0.0
  %649 = vmatprep.subr.mxu0 0.0
  %650 = vmatpush1.msra.mxu0 0.0
  %651 = vmatprep.subr.mxu0 0.0
  %652 = vmatpush1.msra.mxu0 0.0
  %653 = vmatprep.subr.mxu0 0.0
  %654 = vmatpush1.msra.mxu0 0.0
  %655 = vmatprep.subr.mxu0 0.0
  %656 = vmatpush1.msra.mxu0 0.0
  %657 = vmatprep.subr.mxu0 0.0
  %658 = vmatpush1.msra.mxu0 0.0
  %659 = vmatprep.subr.mxu0 0.0
  %660 = vmatpush1.msra.mxu0 0.0
  %661 = vmatprep.subr.mxu0 0.0
  %662 = vmatpush1.msra.mxu0 0.0
  %663 = vmatprep.subr.mxu0 0.0
  %664 = vmatpush1.msra.mxu0 0.0
  %665 = vmatprep.subr.mxu0 0.0
  %666 = vmatpush1.msra.mxu0 0.0
  %667 = vmatprep.mubr.f32.mxu0 0.0
  %668 = vmatmul.mubr.f32.gmra.mrb[0].mxu0 %v441
  %v669 = vpop.f32.mrb[0].mxu0
  %v670 = vadd.f32 %v601, %v669
  %v671 = vpop.f32.mrb[0].mxu0
  %672 = vdwg.mxu0
  %v673 = vmul.f32 %v589, %v670
  %v674 = vadd.f32 %v386, %v673
  %v675 = vtanh.pop %v674
  %v676 = vsub.f32 1.0, %v596
  %v677 = vmul.f32 %v676, %v675
  %v678 = vmul.f32 %v596, 0.0
  %v679 = vadd.f32 %v677, %v678
  %v681 = vsel %vm439, %v679, 0
  %683 = vmatprep.subr.mxu0 0.0
  %684 = vmatpush1.msra.mxu0 %v424
  %685 = vmatprep.subr.mxu0 0.0
  %686 = vmatpush1.msra.mxu0 %v425
  %687 = vmatprep.subr.mxu0 0.0
  %688 = vmatpush1.msra.mxu0 %v426
  %689 = vmatprep.subr.mxu0 0.0
  %690 = vmatpush1.msra.mxu0 %v427
  %691 = vmatprep.subr.mxu0 0.0
  %692 = vmatpush1.msra.mxu0 0.0
  %693 = vmatprep.subr.mxu0 0.0
  %694 = vmatpush1.msra.mxu0 0.0
  %695 = vmatprep.subr.mxu0 0.0
  %696 = vmatpush1.msra.mxu0 0.0
  %697 = vmatprep.subr.mxu0 0.0
  %698 = vmatpush1.msra.mxu0 0.0
  %699 = vmatprep.subr.mxu0 0.0
  %700 = vmatpush1.msra.mxu0 0.0
  %701 = vmatprep.subr.mxu0 0.0
  %702 = vmatpush1.msra.mxu0 0.0
  %703 = vmatprep.subr.mxu0 0.0
  %704 = vmatpush1.msra.mxu0 0.0
  %705 = vmatprep.subr.mxu0 0.0
  %706 = vmatpush1.msra.mxu0 0.0
  %707 = vmatprep.subr.mxu0 0.0
  %708 = vmatpush1.msra.mxu0 0.0
  %709 = vmatprep.subr.mxu0 0.0
  %710 = vmatpush1.msra.mxu0 0.0
  %711 = vmatprep.subr.mxu0 0.0
  %712 = vmatpush1.msra.mxu0 0.0
  %713 = vmatprep.subr.mxu0 0.0
  %714 = vmatpush1.msra.mxu0 0.0
  %715 = vmatprep.subr.mxu0 0.0
  %716 = vmatpush1.msra.mxu0 0.0
  %717 = vmatprep.subr.mxu0 0.0
  %718 = vmatpush1.msra.mxu0 0.0
  %719 = vmatprep.subr.mxu0 0.0
  %720 = vmatpush1.msra.mxu0 0.0
  %721 = vmatprep.subr.mxu0 0.0
  %722 = vmatpush1.msra.mxu0 0.0
  %723 = vmatprep.subr.mxu0 0.0
  %724 = vmatpush1.msra.mxu0 0.0
  %725 = vmatprep.subr.mxu0 0.0
  %726 = vmatpush1.msra.mxu0 0.0
  %727 = vmatprep.subr.mxu0 0.0
  %728 = vmatpush1.msra.mxu0 0.0
  %729 = vmatprep.subr.mxu0 0.0
  %730 = vmatpush1.msra.mxu0 0.0
  %731 = vmatprep.subr.mxu0 0.0
  %732 = vmatpush1.msra.mxu0 0.0
  %733 = vmatprep.subr.mxu0 0.0
  %734 = vmatpush1.msra.mxu0 0.0
  %735 = vmatprep.subr.mxu0 0.0
  %736 = vmatpush1.msra.mxu0 0.0
  %737 = vmatprep.subr.mxu0 0.0
  %738 = vmatpush1.msra.mxu0 0.0
  %739 = vmatprep.subr.mxu0 0.0
  %740 = vmatpush1.msra.mxu0 0.0
  %741 = vmatprep.subr.mxu0 0.0
  %742 = vmatpush1.msra.mxu0 0.0
  %743 = vmatprep.subr.mxu0 0.0
  %744 = vmatpush1.msra.mxu0 0.0
  %745 = vmatprep.subr.mxu0 0.0
  %746 = vmatpush1.msra.mxu0 0.0
  %747 = vmatprep.mubr.f32.mxu0 0.0
  %748 = vmatmul.mubr.f32.gmra.mrb[0].mxu0 %v681
  %v749 = vpop.f32.mrb[0].mxu0
  %v750 = vadd.f32 0.0, %v749
  %v751 = vpop.f32.mrb[0].mxu0
  %752 = vdwg.mxu0
  %753 = vmatprep.subr.mxu0 0.0
  %754 = vmatpush1.msra.mxu0 %v429
  %755 = vmatprep.subr.mxu0 0.0
  %756 = vmatpush1.msra.mxu0 %v430
  %757 = vmatprep.subr.mxu0 0.0
  %758 = vmatpush1.msra.mxu0 %v431
  %759 = vmatprep.subr.mxu0 0.0
  %760 = vmatpush1.msra.mxu0 %v432
  %761 = vmatprep.subr.mxu0 0.0
  %762 = vmatpush1.msra.mxu0 0.0
  %763 = vmatprep.subr.mxu0 0.0
  %764 = vmatpush1.msra.mxu0 0.0
  %765 = vmatprep.subr.mxu0 0.0
  %766 = vmatpush1.msra.mxu0 0.0
  %767 = vmatprep.subr.mxu0 0.0
  %768 = vmatpush1.msra.mxu0 0.0
  %769 = vmatprep.subr.mxu0 0.0
  %770 = vmatpush1.msra.mxu0 0.0
  %771 = vmatprep.subr.mxu0 0.0
  %772 = vmatpush1.msra.mxu0 0.0
  %773 = vmatprep.subr.mxu0 0.0
  %774 = vmatpush1.msra.mxu0 0.0
  %775 = vmatprep.subr.mxu0 0.0
  %776 = vmatpush1.msra.mxu0 0.0
  %777 = vmatprep.subr.mxu0 0.0
  %778 = vmatpush1.msra.mxu0 0.0
  %779 = vmatprep.subr.mxu0 0.0
  %780 = vmatpush1.msra.mxu0 0.0
  %781 = vmatprep.subr.mxu0 0.0
  %782 = vmatpush1.msra.mxu0 0.0
  %783 = vmatprep.subr.mxu0 0.0
  %784 = vmatpush1.msra.mxu0 0.0
  %785 = vmatprep.subr.mxu0 0.0
  %786 = vmatpush1.msra.mxu0 0.0
  %787 = vmatprep.subr.mxu0 0.0
  %788 = vmatpush1.msra.mxu0 0.0
  %789 = vmatprep.subr.mxu0 0.0
  %790 = vmatpush1.msra.mxu0 0.0
  %791 = vmatprep.subr.mxu0 0.0
  %792 = vmatpush1.msra.mxu0 0.0
  %793 = vmatprep.subr.mxu0 0.0
  %794 = vmatpush1.msra.mxu0 0.0
  %795 = vmatprep.subr.mxu0 0.0
  %796 = vmatpush1.msra.mxu0 0.0
  %797 = vmatprep.subr.mxu0 0.0
  %798 = vmatpush1.msra.mxu0 0.0
  %799 = vmatprep.subr.mxu0 0.0
  %800 = vmatpush1.msra.mxu0 0.0
  %801 = vmatprep.subr.mxu0 0.0
  %802 = vmatpush1.msra.mxu0 0.0
  %803 = vmatprep.subr.mxu0 0.0
  %804 = vmatpush1.msra.mxu0 0.0
  %805 = vmatprep.subr.mxu0 0.0
  %806 = vmatpush1.msra.mxu0 0.0
  %807 = vmatprep.subr.mxu0 0.0
  %808 = vmatpush1.msra.mxu0 0.0
  %809 = vmatprep.subr.mxu0 0.0
  %810 = vmatpush1.msra.mxu0 0.0
  %811 = vmatprep.subr.mxu0 0.0
  %812 = vmatpush1.msra.mxu0 0.0
  %813 = vmatprep.subr.mxu0 0.0
  %814 = vmatpush1.msra.mxu0 0.0
  %815 = vmatprep.subr.mxu0 0.0
  %816 = vmatpush1.msra.mxu0 0.0
  %817 = vmatprep.mubr.f32.mxu0 0.0
  %818 = vmatmul.mubr.f32.gmra.mrb[0].mxu0 %v681
  %v819 = vpop.f32.mrb[0].mxu0
  %v820 = vadd.f32 0.0, %v819
  %v821 = vpop.f32.mrb[0].mxu0
  %822 = vdwg.mxu0
  %v823 = vadd.f32 %v155, %v750
  %v824 = vxor.u32 %v823, 2147483648
  %v825 = vmul.f32 %v824, 1.442695
  %v826 = vpow.pop %v825
  %v827 = vadd.f32 %v826, 1.0
  %v828 = vrcp.pop %v827
  %v829 = vmul.f32 1.0, %v828
  %v830 = vadd.f32 %v273, %v820
  %v831 = vxor.u32 %v830, 2147483648
  %v832 = vmul.f32 %v831, 1.442695
  %v833 = vpow.pop %v832
  %v834 = vadd.f32 %v833, 1.0
  %v835 = vrcp.pop %v834
  %v836 = vmul.f32 1.0, %v835
  %837 = vmatprep.subr.mxu0 0.0
  %838 = vmatpush1.msra.mxu0 %v434
  %839 = vmatprep.subr.mxu0 0.0
  %840 = vmatpush1.msra.mxu0 %v435
  %841 = vmatprep.subr.mxu0 0.0
  %842 = vmatpush1.msra.mxu0 %v436
  %843 = vmatprep.subr.mxu0 0.0
  %844 = vmatpush1.msra.mxu0 %v437
  %845 = vmatprep.subr.mxu0 0.0
  %846 = vmatpush1.msra.mxu0 0.0
  %847 = vmatprep.subr.mxu0 0.0
  %848 = vmatpush1.msra.mxu0 0.0
  %849 = vmatprep.subr.mxu0 0.0
  %850 = vmatpush1.msra.mxu0 0.0
  %851 = vmatprep.subr.mxu0 0.0
  %852 = vmatpush1.msra.mxu0 0.0
  %853 = vmatprep.subr.mxu0 0.0
  %854 = vmatpush1.msra.mxu0 0.0
  %855 = vmatprep.subr.mxu0 0.0
  %856 = vmatpush1.msra.mxu0 0.0
  %857 = vmatprep.subr.mxu0 0.0
  %858 = vmatpush1.msra.mxu0 0.0
  %859 = vmatprep.subr.mxu0 0.0
  %860 = vmatpush1.msra.mxu0 0.0
  %861 = vmatprep.subr.mxu0 0.0
  %862 = vmatpush1.msra.mxu0 0.0
  %863 = vmatprep.subr.mxu0 0.0
  %864 = vmatpush1.msra.mxu0 0.0
  %865 = vmatprep.subr.mxu0 0.0
  %866 = vmatpush1.msra.mxu0 0.0
  %867 = vmatprep.subr.mxu0 0.0
  %868 = vmatpush1.msra.mxu0 0.0
  %869 = vmatprep.subr.mxu0 0.0
  %870 = vmatpush1.msra.mxu0 0.0
  %871 = vmatprep.subr.mxu0 0.0
  %872 = vmatpush1.msra.mxu0 0.0
  %873 = vmatprep.subr.mxu0 0.0
  %874 = vmatpush1.msra.mxu0 0.0
  %875 = vmatprep.subr.mxu0 0.0
  %876 = vmatpush1.msra.mxu0 0.0
  %877 = vmatprep.subr.mxu0 0.0
  %878 = vmatpush1.msra.mxu0 0.0
  %879 = vmatprep.subr.mxu0 0.0
  %880 = vmatpush1.msra.mxu0 0.0
  %881 = vmatprep.subr.mxu0 0.0
  %882 = vmatpush1.msra.mxu0 0.0
  %883 = vmatprep.subr.mxu0 0.0
  %884 = vmatpush1.msra.mxu0 0.0
  %885 = vmatprep.subr.mxu0 0.0
  %886 = vmatpush1.msra.mxu0 0.0
  %887 = vmatprep.subr.mxu0 0.0
  %888 = vmatpush1.msra.mxu0 0.0
  %889 = vmatprep.subr.mxu0 0.0
  %890 = vmatpush1.msra.mxu0 0.0
  %891 = vmatprep.subr.mxu0 0.0
  %892 = vmatpush1.msra.mxu0 0.0
  %893 = vmatprep.subr.mxu0 0.0
  %894 = vmatpush1.msra.mxu0 0.0
  %895 = vmatprep.subr.mxu0 0.0
  %896 = vmatpush1.msra.mxu0 0.0
  %897 = vmatprep.subr.mxu0 0.0
  %898 = vmatpush1.msra.mxu0 0.0
  %899 = vmatprep.subr.mxu0 0.0
  %900 = vmatpush1.msra.mxu0 0.0
  %901 = vmatprep.mubr.f32.mxu0 0.0
  %902 = vmatmul.mubr.f32.gmra.mrb[0].mxu0 %v681
  %v903 = vpop.f32.mrb[0].mxu0
  %v904 = vadd.f32 %v601, %v903
  %v905 = vpop.f32.mrb[0].mxu0
  %906 = vdwg.mxu0
  %v907 = vmul.f32 %v829, %v904
  %v908 = vadd.f32 %v391, %v907
  %v909 = vtanh.pop %v908
  %v910 = vsub.f32 1.0, %v836
  %v911 = vmul.f32 %v910, %v909
  %v912 = vmul.f32 %v836, %v679
  %v913 = vadd.f32 %v911, %v912
  %v915 = vsel %vm439, %v913, 0
  %917 = vmatprep.subr.mxu0 0.0
  %918 = vmatpush1.msra.mxu0 %v424
  %919 = vmatprep.subr.mxu0 0.0
  %920 = vmatpush1.msra.mxu0 %v425
  %921 = vmatprep.subr.mxu0 0.0
  %922 = vmatpush1.msra.mxu0 %v426
  %923 = vmatprep.subr.mxu0 0.0
  %924 = vmatpush1.msra.mxu0 %v427
  %925 = vmatprep.subr.mxu0 0.0
  %926 = vmatpush1.msra.mxu0 0.0
  %927 = vmatprep.subr.mxu0 0.0
  %928 = vmatpush1.msra.mxu0 0.0
  %929 = vmatprep.subr.mxu0 0.0
  %930 = vmatpush1.msra.mxu0 0.0
  %931 = vmatprep.subr.mxu0 0.0
  %932 = vmatpush1.msra.mxu0 0.0
  %933 = vmatprep.subr.mxu0 0.0
  %934 = vmatpush1.msra.mxu0 0.0
  %935 = vmatprep.subr.mxu0 0.0
  %936 = vmatpush1.msra.mxu0 0.0
  %937 = vmatprep.subr.mxu0 0.0
  %938 = vmatpush1.msra.mxu0 0.0
  %939 = vmatprep.subr.mxu0 0.0
  %940 = vmatpush1.msra.mxu0 0.0
  %941 = vmatprep.subr.mxu0 0.0
  %942 = vmatpush1.msra.mxu0 0.0
  %943 = vmatprep.subr.mxu0 0.0
  %944 = vmatpush1.msra.mxu0 0.0
  %945 = vmatprep.subr.mxu0 0.0
  %946 = vmatpush1.msra.mxu0 0.0
  %947 = vmatprep.subr.mxu0 0.0
  %948 = vmatpush1.msra.mxu0 0.0
  %949 = vmatprep.subr.mxu0 0.0
  %950 = vmatpush1.msra.mxu0 0.0
  %951 = vmatprep.subr.mxu0 0.0
  %952 = vmatpush1.msra.mxu0 0.0
  %953 = vmatprep.subr.mxu0 0.0
  %954 = vmatpush1.msra.mxu0 0.0
  %955 = vmatprep.subr.mxu0 0.0
  %956 = vmatpush1.msra.mxu0 0.0
  %957 = vmatprep.subr.mxu0 0.0
  %958 = vmatpush1.msra.mxu0 0.0
  %959 = vmatprep.subr.mxu0 0.0
  %960 = vmatpush1.msra.mxu0 0.0
  %961 = vmatprep.subr.mxu0 0.0
  %962 = vmatpush1.msra.mxu0 0.0
  %963 = vmatprep.subr.mxu0 0.0
  %964 = vmatpush1.msra.mxu0 0.0
  %965 = vmatprep.subr.mxu0 0.0
  %966 = vmatpush1.msra.mxu0 0.0
  %967 = vmatprep.subr.mxu0 0.0
  %968 = vmatpush1.msra.mxu0 0.0
  %969 = vmatprep.subr.mxu0 0.0
  %970 = vmatpush1.msra.mxu0 0.0
  %971 = vmatprep.subr.mxu0 0.0
  %972 = vmatpush1.msra.mxu0 0.0
  %973 = vmatprep.subr.mxu0 0.0
  %974 = vmatpush1.msra.mxu0 0.0
  %975 = vmatprep.subr.mxu0 0.0
  %976 = vmatpush1.msra.mxu0 0.0
  %977 = vmatprep.subr.mxu0 0.0
  %978 = vmatpush1.msra.mxu0 0.0
  %979 = vmatprep.subr.mxu0 0.0
  %980 = vmatpush1.msra.mxu0 0.0
  %981 = vmatprep.mubr.f32.mxu0 0.0
  %982 = vmatmul.mubr.f32.gmra.mrb[0].mxu0 %v915
  %v983 = vpop.f32.mrb[0].mxu0
  %v984 = vadd.f32 0.0, %v983
  %v985 = vpop.f32.mrb[0].mxu0
  %986 = vdwg.mxu0
  %987 = vmatprep.subr.mxu0 0.0
  %988 = vmatpush1.msra.mxu0 %v429
  %989 = vmatprep.subr.mxu0 0.0
  %990 = vmatpush1.msra.mxu0 %v430
  %991 = vmatprep.subr.mxu0 0.0
  %992 = vmatpush1.msra.mxu0 %v431
  %993 = vmatprep.subr.mxu0 0.0
  %994 = vmatpush1.msra.mxu0 %v432
  %995 = vmatprep.subr.mxu0 0.0
  %996 = vmatpush1.msra.mxu0 0.0
  %997 = vmatprep.subr.mxu0 0.0
  %998 = vmatpush1.msra.mxu0 0.0
  %999 = vmatprep.subr.mxu0 0.0
  %1000 = vmatpush1.msra.mxu0 0.0
  %1001 = vmatprep.subr.mxu0 0.0
  %1002 = vmatpush1.msra.mxu0 0.0
  %1003 = vmatprep.subr.mxu0 0.0
  %1004 = vmatpush1.msra.mxu0 0.0
  %1005 = vmatprep.subr.mxu0 0.0
  %1006 = vmatpush1.msra.mxu0 0.0
  %1007 = vmatprep.subr.mxu0 0.0
  %1008 = vmatpush1.msra.mxu0 0.0
  %1009 = vmatprep.subr.mxu0 0.0
  %1010 = vmatpush1.msra.mxu0 0.0
  %1011 = vmatprep.subr.mxu0 0.0
  %1012 = vmatpush1.msra.mxu0 0.0
  %1013 = vmatprep.subr.mxu0 0.0
  %1014 = vmatpush1.msra.mxu0 0.0
  %1015 = vmatprep.subr.mxu0 0.0
  %1016 = vmatpush1.msra.mxu0 0.0
  %1017 = vmatprep.subr.mxu0 0.0
  %1018 = vmatpush1.msra.mxu0 0.0
  %1019 = vmatprep.subr.mxu0 0.0
  %1020 = vmatpush1.msra.mxu0 0.0
  %1021 = vmatprep.subr.mxu0 0.0
  %1022 = vmatpush1.msra.mxu0 0.0
  %1023 = vmatprep.subr.mxu0 0.0
  %1024 = vmatpush1.msra.mxu0 0.0
  %1025 = vmatprep.subr.mxu0 0.0
  %1026 = vmatpush1.msra.mxu0 0.0
  %1027 = vmatprep.subr.mxu0 0.0
  %1028 = vmatpush1.msra.mxu0 0.0
  %1029 = vmatprep.subr.mxu0 0.0
  %1030 = vmatpush1.msra.mxu0 0.0
  %1031 = vmatprep.subr.mxu0 0.0
  %1032 = vmatpush1.msra.mxu0 0.0
  %1033 = vmatprep.subr.mxu0 0.0
  %1034 = vmatpush1.msra.mxu0 0.0
  %1035 = vmatprep.subr.mxu0 0.0
  %1036 = vmatpush1.msra.mxu0 0.0
  %1037 = vmatprep.subr.mxu0 0.0
  %1038 = vmatpush1.msra.mxu0 0.0
  %1039 = vmatprep.subr.mxu0 0.0
  %1040 = vmatpush1.msra.mxu0 0.0
  %1041 = vmatprep.subr.mxu0 0.0
  %1042 = vmatpush1.msra.mxu0 0.0
  %1043 = vmatprep.subr.mxu0 0.0
  %1044 = vmatpush1.msra.mxu0 0.0
  %1045 = vmatprep.subr.mxu0 0.0
  %1046 = vmatpush1.msra.mxu0 0.0
  %1047 = vmatprep.subr.mxu0 0.0
  %1048 = vmatpush1.msra.mxu0 0.0
  %1049 = vmatprep.subr.mxu0 0.0
  %1050 = vmatpush1.msra.mxu0 0.0
  %1051 = vmatprep.mubr.f32.mxu0 0.0
  %1052 = vmatmul.mubr.f32.gmra.mrb[0].mxu0 %v915
  %v1053 = vpop.f32.mrb[0].mxu0
  %v1054 = vadd.f32 0.0, %v1053
  %v1055 = vpop.f32.mrb[0].mxu0
  %1056 = vdwg.mxu0
  %v1057 = vadd.f32 %v160, %v984
  %v1058 = vxor.u32 %v1057, 2147483648
  %v1059 = vmul.f32 %v1058, 1.442695
  %v1060 = vpow.pop %v1059
  %v1061 = vadd.f32 %v1060, 1.0
  %v1062 = vrcp.pop %v1061
  %v1063 = vmul.f32 1.0, %v1062
  %v1064 = vadd.f32 %v278, %v1054
  %v1065 = vxor.u32 %v1064, 2147483648
  %v1066 = vmul.f32 %v1065, 1.442695
  %v1067 = vpow.pop %v1066
  %v1068 = vadd.f32 %v1067, 1.0
  %v1069 = vrcp.pop %v1068
  %v1070 = vmul.f32 1.0, %v1069
  %1071 = vmatprep.subr.mxu0 0.0
  %1072 = vmatpush1.msra.mxu0 %v434
  %1073 = vmatprep.subr.mxu0 0.0
  %1074 = vmatpush1.msra.mxu0 %v435
  %1075 = vmatprep.subr.mxu0 0.0
  %1076 = vmatpush1.msra.mxu0 %v436
  %1077 = vmatprep.subr.mxu0 0.0
  %1078 = vmatpush1.msra.mxu0 %v437
  %1079 = vmatprep.subr.mxu0 0.0
  %1080 = vmatpush1.msra.mxu0 0.0
  %1081 = vmatprep.subr.mxu0 0.0
  %1082 = vmatpush1.msra.mxu0 0.0
  %1083 = vmatprep.subr.mxu0 0.0
  %1084 = vmatpush1.msra.mxu0 0.0
  %1085 = vmatprep.subr.mxu0 0.0
  %1086 = vmatpush1.msra.mxu0 0.0
  %1087 = vmatprep.subr.mxu0 0.0
  %1088 = vmatpush1.msra.mxu0 0.0
  %1089 = vmatprep.subr.mxu0 0.0
  %1090 = vmatpush1.msra.mxu0 0.0
  %1091 = vmatprep.subr.mxu0 0.0
  %1092 = vmatpush1.msra.mxu0 0.0
  %1093 = vmatprep.subr.mxu0 0.0
  %1094 = vmatpush1.msra.mxu0 0.0
  %1095 = vmatprep.subr.mxu0 0.0
  %1096 = vmatpush1.msra.mxu0 0.0
  %1097 = vmatprep.subr.mxu0 0.0
  %1098 = vmatpush1.msra.mxu0 0.0
  %1099 = vmatprep.subr.mxu0 0.0
  %1100 = vmatpush1.msra.mxu0 0.0
  %1101 = vmatprep.subr.mxu0 0.0
  %1102 = vmatpush1.msra.mxu0 0.0
  %1103 = vmatprep.subr.mxu0 0.0
  %1104 = vmatpush1.msra.mxu0 0.0
  %1105 = vmatprep.subr.mxu0 0.0
  %1106 = vmatpush1.msra.mxu0 0.0
  %1107 = vmatprep.subr.mxu0 0.0
  %1108 = vmatpush1.msra.mxu0 0.0
  %1109 = vmatprep.subr.mxu0 0.0
  %1110 = vmatpush1.msra.mxu0 0.0
  %1111 = vmatprep.subr.mxu0 0.0
  %1112 = vmatpush1.msra.mxu0 0.0
  %1113 = vmatprep.subr.mxu0 0.0
  %1114 = vmatpush1.msra.mxu0 0.0
  %1115 = vmatprep.subr.mxu0 0.0
  %1116 = vmatpush1.msra.mxu0 0.0
  %1117 = vmatprep.subr.mxu0 0.0
  %1118 = vmatpush1.msra.mxu0 0.0
  %1119 = vmatprep.subr.mxu0 0.0
  %1120 = vmatpush1.msra.mxu0 0.0
  %1121 = vmatprep.subr.mxu0 0.0
  %1122 = vmatpush1.msra.mxu0 0.0
  %1123 = vmatprep.subr.mxu0 0.0
  %1124 = vmatpush1.msra.mxu0 0.0
  %1125 = vmatprep.subr.mxu0 0.0
  %1126 = vmatpush1.msra.mxu0 0.0
  %1127 = vmatprep.subr.mxu0 0.0
  %1128 = vmatpush1.msra.mxu0 0.0
  %1129 = vmatprep.subr.mxu0 0.0
  %1130 = vmatpush1.msra.mxu0 0.0
  %1131 = vmatprep.subr.mxu0 0.0
  %1132 = vmatpush1.msra.mxu0 0.0
  %1133 = vmatprep.subr.mxu0 0.0
  %1134 = vmatpush1.msra.mxu0 0.0
  %1135 = vmatprep.mubr.f32.mxu0 0.0
  %1136 = vmatmul.mubr.f32.gmra.mrb[0].mxu0 %v915
  %v1137 = vpop.f32.mrb[0].mxu0
  %v1138 = vadd.f32 %v601, %v1137
  %v1139 = vpop.f32.mrb[0].mxu0
  %1140 = vdwg.mxu0
  %v1141 = vmul.f32 %v1063, %v1138
  %v1142 = vadd.f32 %v396, %v1141
  %v1143 = vtanh.pop %v1142
  %v1144 = vsub.f32 1.0, %v1070
  %v1145 = vmul.f32 %v1144, %v1143
  %v1146 = vmul.f32 %v1070, %v913
  %v1147 = vadd.f32 %v1145, %v1146
  %v1149 = vsel %vm439, %v1147, 0
  %1151 = vmatprep.subr.mxu0 0.0
  %1152 = vmatpush1.msra.mxu0 %v424
  %1153 = vmatprep.subr.mxu0 0.0
  %1154 = vmatpush1.msra.mxu0 %v425
  %1155 = vmatprep.subr.mxu0 0.0
  %1156 = vmatpush1.msra.mxu0 %v426
  %1157 = vmatprep.subr.mxu0 0.0
  %1158 = vmatpush1.msra.mxu0 %v427
  %1159 = vmatprep.subr.mxu0 0.0
  %1160 = vmatpush1.msra.mxu0 0.0
  %1161 = vmatprep.subr.mxu0 0.0
  %1162 = vmatpush1.msra.mxu0 0.0
  %1163 = vmatprep.subr.mxu0 0.0
  %1164 = vmatpush1.msra.mxu0 0.0
  %1165 = vmatprep.subr.mxu0 0.0
  %1166 = vmatpush1.msra.mxu0 0.0
  %1167 = vmatprep.subr.mxu0 0.0
  %1168 = vmatpush1.msra.mxu0 0.0
  %1169 = vmatprep.subr.mxu0 0.0
  %1170 = vmatpush1.msra.mxu0 0.0
  %1171 = vmatprep.subr.mxu0 0.0
  %1172 = vmatpush1.msra.mxu0 0.0
  %1173 = vmatprep.subr.mxu0 0.0
  %1174 = vmatpush1.msra.mxu0 0.0
  %1175 = vmatprep.subr.mxu0 0.0
  %1176 = vmatpush1.msra.mxu0 0.0
  %1177 = vmatprep.subr.mxu0 0.0
  %1178 = vmatpush1.msra.mxu0 0.0
  %1179 = vmatprep.subr.mxu0 0.0
  %1180 = vmatpush1.msra.mxu0 0.0
  %1181 = vmatprep.subr.mxu0 0.0
  %1182 = vmatpush1.msra.mxu0 0.0
  %1183 = vmatprep.subr.mxu0 0.0
  %1184 = vmatpush1.msra.mxu0 0.0
  %1185 = vmatprep.subr.mxu0 0.0
  %1186 = vmatpush1.msra.mxu0 0.0
  %1187 = vmatprep.subr.mxu0 0.0
  %1188 = vmatpush1.msra.mxu0 0.0
  %1189 = vmatprep.subr.mxu0 0.0
  %1190 = vmatpush1.msra.mxu0 0.0
  %1191 = vmatprep.subr.mxu0 0.0
  %1192 = vmatpush1.msra.mxu0 0.0
  %1193 = vmatprep.subr.mxu0 0.0
  %1194 = vmatpush1.msra.mxu0 0.0
  %1195 = vmatprep.subr.mxu0 0.0
  %1196 = vmatpush1.msra.mxu0 0.0
  %1197 = vmatprep.subr.mxu0 0.0
  %1198 = vmatpush1.msra.mxu0 0.0
  %1199 = vmatprep.subr.mxu0 0.0
  %1200 = vmatpush1.msra.mxu0 0.0
  %1201 = vmatprep.subr.mxu0 0.0
  %1202 = vmatpush1.msra.mxu0 0.0
  %1203 = vmatprep.subr.mxu0 0.0
  %1204 = vmatpush1.msra.mxu0 0.0
  %1205 = vmatprep.subr.mxu0 0.0
  %1206 = vmatpush1.msra.mxu0 0.0
  %1207 = vmatprep.subr.mxu0 0.0
  %1208 = vmatpush1.msra.mxu0 0.0
  %1209 = vmatprep.subr.mxu0 0.0
  %1210 = vmatpush1.msra.mxu0 0.0
  %1211 = vmatprep.subr.mxu0 0.0
  %1212 = vmatpush1.msra.mxu0 0.0
  %1213 = vmatprep.subr.mxu0 0.0
  %1214 = vmatpush1.msra.mxu0 0.0
  %1215 = vmatprep.mubr.f32.mxu0 0.0
  %1216 = vmatmul.mubr.f32.gmra.mrb[0].mxu0 %v1149
  %v1217 = vpop.f32.mrb[0].mxu0
  %v1218 = vadd.f32 0.0, %v1217
  %v1219 = vpop.f32.mrb[0].mxu0
  %1220 = vdwg.mxu0
  %1221 = vmatprep.subr.mxu0 0.0
  %1222 = vmatpush1.msra.mxu0 %v429
  %1223 = vmatprep.subr.mxu0 0.0
  %1224 = vmatpush1.msra.mxu0 %v430
  %1225 = vmatprep.subr.mxu0 0.0
  %1226 = vmatpush1.msra.mxu0 %v431
  %1227 = vmatprep.subr.mxu0 0.0
  %1228 = vmatpush1.msra.mxu0 %v432
  %1229 = vmatprep.subr.mxu0 0.0
  %1230 = vmatpush1.msra.mxu0 0.0
  %1231 = vmatprep.subr.mxu0 0.0
  %1232 = vmatpush1.msra.mxu0 0.0
  %1233 = vmatprep.subr.mxu0 0.0
  %1234 = vmatpush1.msra.mxu0 0.0
  %1235 = vmatprep.subr.mxu0 0.0
  %1236 = vmatpush1.msra.mxu0 0.0
  %1237 = vmatprep.subr.mxu0 0.0
  %1238 = vmatpush1.msra.mxu0 0.0
  %1239 = vmatprep.subr.mxu0 0.0
  %1240 = vmatpush1.msra.mxu0 0.0
  %1241 = vmatprep.subr.mxu0 0.0
  %1242 = vmatpush1.msra.mxu0 0.0
  %1243 = vmatprep.subr.mxu0 0.0
  %1244 = vmatpush1.msra.mxu0 0.0
  %1245 = vmatprep.subr.mxu0 0.0
  %1246 = vmatpush1.msra.mxu0 0.0
  %1247 = vmatprep.subr.mxu0 0.0
  %1248 = vmatpush1.msra.mxu0 0.0
  %1249 = vmatprep.subr.mxu0 0.0
  %1250 = vmatpush1.msra.mxu0 0.0
  %1251 = vmatprep.subr.mxu0 0.0
  %1252 = vmatpush1.msra.mxu0 0.0
  %1253 = vmatprep.subr.mxu0 0.0
  %1254 = vmatpush1.msra.mxu0 0.0
  %1255 = vmatprep.subr.mxu0 0.0
  %1256 = vmatpush1.msra.mxu0 0.0
  %1257 = vmatprep.subr.mxu0 0.0
  %1258 = vmatpush1.msra.mxu0 0.0
  %1259 = vmatprep.subr.mxu0 0.0
  %1260 = vmatpush1.msra.mxu0 0.0
  %1261 = vmatprep.subr.mxu0 0.0
  %1262 = vmatpush1.msra.mxu0 0.0
  %1263 = vmatprep.subr.mxu0 0.0
  %1264 = vmatpush1.msra.mxu0 0.0
  %1265 = vmatprep.subr.mxu0 0.0
  %1266 = vmatpush1.msra.mxu0 0.0
  %1267 = vmatprep.subr.mxu0 0.0
  %1268 = vmatpush1.msra.mxu0 0.0
  %1269 = vmatprep.subr.mxu0 0.0
  %1270 = vmatpush1.msra.mxu0 0.0
  %1271 = vmatprep.subr.mxu0 0.0
  %1272 = vmatpush1.msra.mxu0 0.0
  %1273 = vmatprep.subr.mxu0 0.0
  %1274 = vmatpush1.msra.mxu0 0.0
  %1275 = vmatprep.subr.mxu0 0.0
  %1276 = vmatpush1.msra.mxu0 0.0
  %1277 = vmatprep.subr.mxu0 0.0
  %1278 = vmatpush1.msra.mxu0 0.0
  %1279 = vmatprep.subr.mxu0 0.0
  %1280 = vmatpush1.msra.mxu0 0.0
  %1281 = vmatprep.subr.mxu0 0.0
  %1282 = vmatpush1.msra.mxu0 0.0
  %1283 = vmatprep.subr.mxu0 0.0
  %1284 = vmatpush1.msra.mxu0 0.0
  %1285 = vmatprep.mubr.f32.mxu0 0.0
  %1286 = vmatmul.mubr.f32.gmra.mrb[0].mxu0 %v1149
  %v1287 = vpop.f32.mrb[0].mxu0
  %v1288 = vadd.f32 0.0, %v1287
  %v1289 = vpop.f32.mrb[0].mxu0
  %1290 = vdwg.mxu0
  %v1291 = vadd.f32 %v165, %v1218
  %v1292 = vxor.u32 %v1291, 2147483648
  %v1293 = vmul.f32 %v1292, 1.442695
  %v1294 = vpow.pop %v1293
  %v1295 = vadd.f32 %v1294, 1.0
  %v1296 = vrcp.pop %v1295
  %v1297 = vmul.f32 1.0, %v1296
  %v1298 = vadd.f32 %v283, %v1288
  %v1299 = vxor.u32 %v1298, 2147483648
  %v1300 = vmul.f32 %v1299, 1.442695
  %v1301 = vpow.pop %v1300
  %v1302 = vadd.f32 %v1301, 1.0
  %v1303 = vrcp.pop %v1302
  %v1304 = vmul.f32 1.0, %v1303
  %1305 = vmatprep.subr.mxu0 0.0
  %1306 = vmatpush1.msra.mxu0 %v434
  %1307 = vmatprep.subr.mxu0 0.0
  %1308 = vmatpush1.msra.mxu0 %v435
  %1309 = vmatprep.subr.mxu0 0.0
  %1310 = vmatpush1.msra.mxu0 %v436
  %1311 = vmatprep.subr.mxu0 0.0
  %1312 = vmatpush1.msra.mxu0 %v437
  %1313 = vmatprep.subr.mxu0 0.0
  %1314 = vmatpush1.msra.mxu0 0.0
  %1315 = vmatprep.subr.mxu0 0.0
  %1316 = vmatpush1.msra.mxu0 0.0
  %1317 = vmatprep.subr.mxu0 0.0
  %1318 = vmatpush1.msra.mxu0 0.0
  %1319 = vmatprep.subr.mxu0 0.0
  %1320 = vmatpush1.msra.mxu0 0.0
  %1321 = vmatprep.subr.mxu0 0.0
  %1322 = vmatpush1.msra.mxu0 0.0
  %1323 = vmatprep.subr.mxu0 0.0
  %1324 = vmatpush1.msra.mxu0 0.0
  %1325 = vmatprep.subr.mxu0 0.0
  %1326 = vmatpush1.msra.mxu0 0.0
  %1327 = vmatprep.subr.mxu0 0.0
  %1328 = vmatpush1.msra.mxu0 0.0
  %1329 = vmatprep.subr.mxu0 0.0
  %1330 = vmatpush1.msra.mxu0 0.0
  %1331 = vmatprep.subr.mxu0 0.0
  %1332 = vmatpush1.msra.mxu0 0.0
  %1333 = vmatprep.subr.mxu0 0.0
  %1334 = vmatpush1.msra.mxu0 0.0
  %1335 = vmatprep.subr.mxu0 0.0
  %1336 = vmatpush1.msra.mxu0 0.0
  %1337 = vmatprep.subr.mxu0 0.0
  %1338 = vmatpush1.msra.mxu0 0.0
  %1339 = vmatprep.subr.mxu0 0.0
  %1340 = vmatpush1.msra.mxu0 0.0
  %1341 = vmatprep.subr.mxu0 0.0
  %1342 = vmatpush1.msra.mxu0 0.0
  %1343 = vmatprep.subr.mxu0 0.0
  %1344 = vmatpush1.msra.mxu0 0.0
  %1345 = vmatprep.subr.mxu0 0.0
  %1346 = vmatpush1.msra.mxu0 0.0
  %1347 = vmatprep.subr.mxu0 0.0
  %1348 = vmatpush1.msra.mxu0 0.0
  %1349 = vmatprep.subr.mxu0 0.0
  %1350 = vmatpush1.msra.mxu0 0.0
  %1351 = vmatprep.subr.mxu0 0.0
  %1352 = vmatpush1.msra.mxu0 0.0
  %1353 = vmatprep.subr.mxu0 0.0
  %1354 = vmatpush1.msra.mxu0 0.0
  %1355 = vmatprep.subr.mxu0 0.0
  %1356 = vmatpush1.msra.mxu0 0.0
  %1357 = vmatprep.subr.mxu0 0.0
  %1358 = vmatpush1.msra.mxu0 0.0
  %1359 = vmatprep.subr.mxu0 0.0
  %1360 = vmatpush1.msra.mxu0 0.0
  %1361 = vmatprep.subr.mxu0 0.0
  %1362 = vmatpush1.msra.mxu0 0.0
  %1363 = vmatprep.subr.mxu0 0.0
  %1364 = vmatpush1.msra.mxu0 0.0
  %1365 = vmatprep.subr.mxu0 0.0
  %1366 = vmatpush1.msra.mxu0 0.0
  %1367 = vmatprep.subr.mxu0 0.0
  %1368 = vmatpush1.msra.mxu0 0.0
  %1369 = vmatprep.mubr.f32.mxu0 0.0
  %1370 = vmatmul.mubr.f32.gmra.mrb[0].mxu0 %v1149
  %v1371 = vpop.f32.mrb[0].mxu0
  %v1372 = vadd.f32 %v601, %v1371
  %v1373 = vpop.f32.mrb[0].mxu0
  %1374 = vdwg.mxu0
  %v1375 = vmul.f32 %v1297, %v1372
  %v1376 = vadd.f32 %v401, %v1375
  %v1377 = vtanh.pop %v1376
  %v1378 = vsub.f32 1.0, %v1304
  %v1379 = vmul.f32 %v1378, %v1377
  %v1380 = vmul.f32 %v1304, %v1147
  %v1381 = vadd.f32 %v1379, %v1380
  %v1383 = vsel %vm439, %v1381, 0
  %1385 = vmatprep.subr.mxu0 0.0
  %1386 = vmatpush1.msra.mxu0 %v424
  %1387 = vmatprep.subr.mxu0 0.0
  %1388 = vmatpush1.msra.mxu0 %v425
  %1389 = vmatprep.subr.mxu0 0.0
  %1390 = vmatpush1.msra.mxu0 %v426
  %1391 = vmatprep.subr.mxu0 0.0
  %1392 = vmatpush1.msra.mxu0 %v427
  %1393 = vmatprep.subr.mxu0 0.0
  %1394 = vmatpush1.msra.mxu0 0.0
  %1395 = vmatprep.subr.mxu0 0.0
  %1396 = vmatpush1.msra.mxu0 0.0
  %1397 = vmatprep.subr.mxu0 0.0
  %1398 = vmatpush1.msra.mxu0 0.0
  %1399 = vmatprep.subr.mxu0 0.0
  %1400 = vmatpush1.msra.mxu0 0.0
  %1401 = vmatprep.subr.mxu0 0.0
  %1402 = vmatpush1.msra.mxu0 0.0
  %1403 = vmatprep.subr.mxu0 0.0
  %1404 = vmatpush1.msra.mxu0 0.0
  %1405 = vmatprep.subr.mxu0 0.0
  %1406 = vmatpush1.msra.mxu0 0.0
  %1407 = vmatprep.subr.mxu0 0.0
  %1408 = vmatpush1.msra.mxu0 0.0
  %1409 = vmatprep.subr.mxu0 0.0
  %1410 = vmatpush1.msra.mxu0 0.0
  %1411 = vmatprep.subr.mxu0 0.0
  %1412 = vmatpush1.msra.mxu0 0.0
  %1413 = vmatprep.subr.mxu0 0.0
  %1414 = vmatpush1.msra.mxu0 0.0
  %1415 = vmatprep.subr.mxu0 0.0
  %1416 = vmatpush1.msra.mxu0 0.0
  %1417 = vmatprep.subr.mxu0 0.0
  %1418 = vmatpush1.msra.mxu0 0.0
  %1419 = vmatprep.subr.mxu0 0.0
  %1420 = vmatpush1.msra.mxu0 0.0
  %1421 = vmatprep.subr.mxu0 0.0
  %1422 = vmatpush1.msra.mxu0 0.0
  %1423 = vmatprep.subr.mxu0 0.0
  %1424 = vmatpush1.msra.mxu0 0.0
  %1425 = vmatprep.subr.mxu0 0.0
  %1426 = vmatpush1.msra.mxu0 0.0
  %1427 = vmatprep.subr.mxu0 0.0
  %1428 = vmatpush1.msra.mxu0 0.0
  %1429 = vmatprep.subr.mxu0 0.0
  %1430 = vmatpush1.msra.mxu0 0.0
  %1431 = vmatprep.subr.mxu0 0.0
  %1432 = vmatpush1.msra.mxu0 0.0
  %1433 = vmatprep.subr.mxu0 0.0
  %1434 = vmatpush1.msra.mxu0 0.0
  %1435 = vmatprep.subr.mxu0 0.0
  %1436 = vmatpush1.msra.mxu0 0.0
  %1437 = vmatprep.subr.mxu0 0.0
  %1438 = vmatpush1.msra.mxu0 0.0
  %1439 = vmatprep.subr.mxu0 0.0
  %1440 = vmatpush1.msra.mxu0 0.0
  %1441 = vmatprep.subr.mxu0 0.0
  %1442 = vmatpush1.msra.mxu0 0.0
  %1443 = vmatprep.subr.mxu0 0.0
  %1444 = vmatpush1.msra.mxu0 0.0
  %1445 = vmatprep.subr.mxu0 0.0
  %1446 = vmatpush1.msra.mxu0 0.0
  %1447 = vmatprep.subr.mxu0 0.0
  %1448 = vmatpush1.msra.mxu0 0.0
  %1449 = vmatprep.mubr.f32.mxu0 0.0
  %1450 = vmatmul.mubr.f32.gmra.mrb[0].mxu0 %v1383
  %v1451 = vpop.f32.mrb[0].mxu0
  %v1452 = vadd.f32 0.0, %v1451
  %v1453 = vpop.f32.mrb[0].mxu0
  %1454 = vdwg.mxu0
  %1455 = vmatprep.subr.mxu0 0.0
  %1456 = vmatpush1.msra.mxu0 %v429
  %1457 = vmatprep.subr.mxu0 0.0
  %1458 = vmatpush1.msra.mxu0 %v430
  %1459 = vmatprep.subr.mxu0 0.0
  %1460 = vmatpush1.msra.mxu0 %v431
  %1461 = vmatprep.subr.mxu0 0.0
  %1462 = vmatpush1.msra.mxu0 %v432
  %1463 = vmatprep.subr.mxu0 0.0
  %1464 = vmatpush1.msra.mxu0 0.0
  %1465 = vmatprep.subr.mxu0 0.0
  %1466 = vmatpush1.msra.mxu0 0.0
  %1467 = vmatprep.subr.mxu0 0.0
  %1468 = vmatpush1.msra.mxu0 0.0
  %1469 = vmatprep.subr.mxu0 0.0
  %1470 = vmatpush1.msra.mxu0 0.0
  %1471 = vmatprep.subr.mxu0 0.0
  %1472 = vmatpush1.msra.mxu0 0.0
  %1473 = vmatprep.subr.mxu0 0.0
  %1474 = vmatpush1.msra.mxu0 0.0
  %1475 = vmatprep.subr.mxu0 0.0
  %1476 = vmatpush1.msra.mxu0 0.0
  %1477 = vmatprep.subr.mxu0 0.0
  %1478 = vmatpush1.msra.mxu0 0.0
  %1479 = vmatprep.subr.mxu0 0.0
  %1480 = vmatpush1.msra.mxu0 0.0
  %1481 = vmatprep.subr.mxu0 0.0
  %1482 = vmatpush1.msra.mxu0 0.0
  %1483 = vmatprep.subr.mxu0 0.0
  %1484 = vmatpush1.msra.mxu0 0.0
  %1485 = vmatprep.subr.mxu0 0.0
  %1486 = vmatpush1.msra.mxu0 0.0
  %1487 = vmatprep.subr.mxu0 0.0
  %1488 = vmatpush1.msra.mxu0 0.0
  %1489 = vmatprep.subr.mxu0 0.0
  %1490 = vmatpush1.msra.mxu0 0.0
  %1491 = vmatprep.subr.mxu0 0.0
  %1492 = vmatpush1.msra.mxu0 0.0
  %1493 = vmatprep.subr.mxu0 0.0
  %1494 = vmatpush1.msra.mxu0 0.0
  %1495 = vmatprep.subr.mxu0 0.0
  %1496 = vmatpush1.msra.mxu0 0.0
  %1497 = vmatprep.subr.mxu0 0.0
  %1498 = vmatpush1.msra.mxu0 0.0
  %1499 = vmatprep.subr.mxu0 0.0
  %1500 = vmatpush1.msra.mxu0 0.0
  %1501 = vmatprep.subr.mxu0 0.0
  %1502 = vmatpush1.msra.mxu0 0.0
  %1503 = vmatprep.subr.mxu0 0.0
  %1504 = vmatpush1.msra.mxu0 0.0
  %1505 = vmatprep.subr.mxu0 0.0
  %1506 = vmatpush1.msra.mxu0 0.0
  %1507 = vmatprep.subr.mxu0 0.0
  %1508 = vmatpush1.msra.mxu0 0.0
  %1509 = vmatprep.subr.mxu0 0.0
  %1510 = vmatpush1.msra.mxu0 0.0
  %1511 = vmatprep.subr.mxu0 0.0
  %1512 = vmatpush1.msra.mxu0 0.0
  %1513 = vmatprep.subr.mxu0 0.0
  %1514 = vmatpush1.msra.mxu0 0.0
  %1515 = vmatprep.subr.mxu0 0.0
  %1516 = vmatpush1.msra.mxu0 0.0
  %1517 = vmatprep.subr.mxu0 0.0
  %1518 = vmatpush1.msra.mxu0 0.0
  %1519 = vmatprep.mubr.f32.mxu0 0.0
  %1520 = vmatmul.mubr.f32.gmra.mrb[0].mxu0 %v1383
  %v1521 = vpop.f32.mrb[0].mxu0
  %v1522 = vadd.f32 0.0, %v1521
  %v1523 = vpop.f32.mrb[0].mxu0
  %1524 = vdwg.mxu0
  %v1525 = vadd.f32 %v170, %v1452
  %v1526 = vxor.u32 %v1525, 2147483648
  %v1527 = vmul.f32 %v1526, 1.442695
  %v1528 = vpow.pop %v1527
  %v1529 = vadd.f32 %v1528, 1.0
  %v1530 = vrcp.pop %v1529
  %v1531 = vmul.f32 1.0, %v1530
  %v1532 = vadd.f32 %v288, %v1522
  %v1533 = vxor.u32 %v1532, 2147483648
  %v1534 = vmul.f32 %v1533, 1.442695
  %v1535 = vpow.pop %v1534
  %v1536 = vadd.f32 %v1535, 1.0
  %v1537 = vrcp.pop %v1536
  %v1538 = vmul.f32 1.0, %v1537
  %1539 = vmatprep.subr.mxu0 0.0
  %1540 = vmatpush1.msra.mxu0 %v434
  %1541 = vmatprep.subr.mxu0 0.0
  %1542 = vmatpush1.msra.mxu0 %v435
  %1543 = vmatprep.subr.mxu0 0.0
  %1544 = vmatpush1.msra.mxu0 %v436
  %1545 = vmatprep.subr.mxu0 0.0
  %1546 = vmatpush1.msra.mxu0 %v437
  %1547 = vmatprep.subr.mxu0 0.0
  %1548 = vmatpush1.msra.mxu0 0.0
  %1549 = vmatprep.subr.mxu0 0.0
  %1550 = vmatpush1.msra.mxu0 0.0
  %1551 = vmatprep.subr.mxu0 0.0
  %1552 = vmatpush1.msra.mxu0 0.0
  %1553 = vmatprep.subr.mxu0 0.0
  %1554 = vmatpush1.msra.mxu0 0.0
  %1555 = vmatprep.subr.mxu0 0.0
  %1556 = vmatpush1.msra.mxu0 0.0
  %1557 = vmatprep.subr.mxu0 0.0
  %1558 = vmatpush1.msra.mxu0 0.0
  %1559 = vmatprep.subr.mxu0 0.0
  %1560 = vmatpush1.msra.mxu0 0.0
  %1561 = vmatprep.subr.mxu0 0.0
  %1562 = vmatpush1.msra.mxu0 0.0
  %1563 = vmatprep.subr.mxu0 0.0
  %1564 = vmatpush1.msra.mxu0 0.0
  %1565 = vmatprep.subr.mxu0 0.0
  %1566 = vmatpush1.msra.mxu0 0.0
  %1567 = vmatprep.subr.mxu0 0.0
  %1568 = vmatpush1.msra.mxu0 0.0
  %1569 = vmatprep.subr.mxu0 0.0
  %1570 = vmatpush1.msra.mxu0 0.0
  %1571 = vmatprep.subr.mxu0 0.0
  %1572 = vmatpush1.msra.mxu0 0.0
  %1573 = vmatprep.subr.mxu0 0.0
  %1574 = vmatpush1.msra.mxu0 0.0
  %1575 = vmatprep.subr.mxu0 0.0
  %1576 = vmatpush1.msra.mxu0 0.0
  %1577 = vmatprep.subr.mxu0 0.0
  %1578 = vmatpush1.msra.mxu0 0.0
  %1579 = vmatprep.subr.mxu0 0.0
  %1580 = vmatpush1.msra.mxu0 0.0
  %1581 = vmatprep.subr.mxu0 0.0
  %1582 = vmatpush1.msra.mxu0 0.0
  %1583 = vmatprep.subr.mxu0 0.0
  %1584 = vmatpush1.msra.mxu0 0.0
  %1585 = vmatprep.subr.mxu0 0.0
  %1586 = vmatpush1.msra.mxu0 0.0
  %1587 = vmatprep.subr.mxu0 0.0
  %1588 = vmatpush1.msra.mxu0 0.0
  %1589 = vmatprep.subr.mxu0 0.0
  %1590 = vmatpush1.msra.mxu0 0.0
  %1591 = vmatprep.subr.mxu0 0.0
  %1592 = vmatpush1.msra.mxu0 0.0
  %1593 = vmatprep.subr.mxu0 0.0
  %1594 = vmatpush1.msra.mxu0 0.0
  %1595 = vmatprep.subr.mxu0 0.0
  %1596 = vmatpush1.msra.mxu0 0.0
  %1597 = vmatprep.subr.mxu0 0.0
  %1598 = vmatpush1.msra.mxu0 0.0
  %1599 = vmatprep.subr.mxu0 0.0
  %1600 = vmatpush1.msra.mxu0 0.0
  %1601 = vmatprep.subr.mxu0 0.0
  %1602 = vmatpush1.msra.mxu0 0.0
  %1603 = vmatprep.mubr.f32.mxu0 0.0
  %1604 = vmatmul.mubr.f32.gmra.mrb[0].mxu0 %v1383
  %v1605 = vpop.f32.mrb[0].mxu0
  %v1606 = vadd.f32 %v601, %v1605
  %v1607 = vpop.f32.mrb[0].mxu0
  %1608 = vdwg.mxu0
  %v1609 = vmul.f32 %v1531, %v1606
  %v1610 = vadd.f32 %v406, %v1609
  %v1611 = vtanh.pop %v1610
  %v1612 = vsub.f32 1.0, %v1538
  %v1613 = vmul.f32 %v1612, %v1611
  %v1614 = vmul.f32 %v1538, %v1381
  %v1615 = vadd.f32 %v1613, %v1614
  %v1617 = vsel %vm439, %v1615, 0
  %1619 = vmatprep.subr.mxu0 0.0
  %1620 = vmatpush1.msra.mxu0 %v424
  %1621 = vmatprep.subr.mxu0 0.0
  %1622 = vmatpush1.msra.mxu0 %v425
  %1623 = vmatprep.subr.mxu0 0.0
  %1624 = vmatpush1.msra.mxu0 %v426
  %1625 = vmatprep.subr.mxu0 0.0
  %1626 = vmatpush1.msra.mxu0 %v427
  %1627 = vmatprep.subr.mxu0 0.0
  %1628 = vmatpush1.msra.mxu0 0.0
  %1629 = vmatprep.subr.mxu0 0.0
  %1630 = vmatpush1.msra.mxu0 0.0
  %1631 = vmatprep.subr.mxu0 0.0
  %1632 = vmatpush1.msra.mxu0 0.0
  %1633 = vmatprep.subr.mxu0 0.0
  %1634 = vmatpush1.msra.mxu0 0.0
  %1635 = vmatprep.subr.mxu0 0.0
  %1636 = vmatpush1.msra.mxu0 0.0
  %1637 = vmatprep.subr.mxu0 0.0
  %1638 = vmatpush1.msra.mxu0 0.0
  %1639 = vmatprep.subr.mxu0 0.0
  %1640 = vmatpush1.msra.mxu0 0.0
  %1641 = vmatprep.subr.mxu0 0.0
  %1642 = vmatpush1.msra.mxu0 0.0
  %1643 = vmatprep.subr.mxu0 0.0
  %1644 = vmatpush1.msra.mxu0 0.0
  %1645 = vmatprep.subr.mxu0 0.0
  %1646 = vmatpush1.msra.mxu0 0.0
  %1647 = vmatprep.subr.mxu0 0.0
  %1648 = vmatpush1.msra.mxu0 0.0
  %1649 = vmatprep.subr.mxu0 0.0
  %1650 = vmatpush1.msra.mxu0 0.0
  %1651 = vmatprep.subr.mxu0 0.0
  %1652 = vmatpush1.msra.mxu0 0.0
  %1653 = vmatprep.subr.mxu0 0.0
  %1654 = vmatpush1.msra.mxu0 0.0
  %1655 = vmatprep.subr.mxu0 0.0
  %1656 = vmatpush1.msra.mxu0 0.0
  %1657 = vmatprep.subr.mxu0 0.0
  %1658 = vmatpush1.msra.mxu0 0.0
  %1659 = vmatprep.subr.mxu0 0.0
  %1660 = vmatpush1.msra.mxu0 0.0
  %1661 = vmatprep.subr.mxu0 0.0
  %1662 = vmatpush1.msra.mxu0 0.0
  %1663 = vmatprep.subr.mxu0 0.0
  %1664 = vmatpush1.msra.mxu0 0.0
  %1665 = vmatprep.subr.mxu0 0.0
  %1666 = vmatpush1.msra.mxu0 0.0
  %1667 = vmatprep.subr.mxu0 0.0
  %1668 = vmatpush1.msra.mxu0 0.0
  %1669 = vmatprep.subr.mxu0 0.0
  %1670 = vmatpush1.msra.mxu0 0.0
  %1671 = vmatprep.subr.mxu0 0.0
  %1672 = vmatpush1.msra.mxu0 0.0
  %1673 = vmatprep.subr.mxu0 0.0
  %1674 = vmatpush1.msra.mxu0 0.0
  %1675 = vmatprep.subr.mxu0 0.0
  %1676 = vmatpush1.msra.mxu0 0.0
  %1677 = vmatprep.subr.mxu0 0.0
  %1678 = vmatpush1.msra.mxu0 0.0
  %1679 = vmatprep.subr.mxu0 0.0
  %1680 = vmatpush1.msra.mxu0 0.0
  %1681 = vmatprep.subr.mxu0 0.0
  %1682 = vmatpush1.msra.mxu0 0.0
  %1683 = vmatprep.mubr.f32.mxu0 0.0
  %1684 = vmatmul.mubr.f32.gmra.mrb[0].mxu0 %v1617
  %v1685 = vpop.f32.mrb[0].mxu0
  %v1686 = vadd.f32 0.0, %v1685
  %v1687 = vpop.f32.mrb[0].mxu0
  %1688 = vdwg.mxu0
  %1689 = vmatprep.subr.mxu0 0.0
  %1690 = vmatpush1.msra.mxu0 %v429
  %1691 = vmatprep.subr.mxu0 0.0
  %1692 = vmatpush1.msra.mxu0 %v430
  %1693 = vmatprep.subr.mxu0 0.0
  %1694 = vmatpush1.msra.mxu0 %v431
  %1695 = vmatprep.subr.mxu0 0.0
  %1696 = vmatpush1.msra.mxu0 %v432
  %1697 = vmatprep.subr.mxu0 0.0
  %1698 = vmatpush1.msra.mxu0 0.0
  %1699 = vmatprep.subr.mxu0 0.0
  %1700 = vmatpush1.msra.mxu0 0.0
  %1701 = vmatprep.subr.mxu0 0.0
  %1702 = vmatpush1.msra.mxu0 0.0
  %1703 = vmatprep.subr.mxu0 0.0
  %1704 = vmatpush1.msra.mxu0 0.0
  %1705 = vmatprep.subr.mxu0 0.0
  %1706 = vmatpush1.msra.mxu0 0.0
  %1707 = vmatprep.subr.mxu0 0.0
  %1708 = vmatpush1.msra.mxu0 0.0
  %1709 = vmatprep.subr.mxu0 0.0
  %1710 = vmatpush1.msra.mxu0 0.0
  %1711 = vmatprep.subr.mxu0 0.0
  %1712 = vmatpush1.msra.mxu0 0.0
  %1713 = vmatprep.subr.mxu0 0.0
  %1714 = vmatpush1.msra.mxu0 0.0
  %1715 = vmatprep.subr.mxu0 0.0
  %1716 = vmatpush1.msra.mxu0 0.0
  %1717 = vmatprep.subr.mxu0 0.0
  %1718 = vmatpush1.msra.mxu0 0.0
  %1719 = vmatprep.subr.mxu0 0.0
  %1720 = vmatpush1.msra.mxu0 0.0
  %1721 = vmatprep.subr.mxu0 0.0
  %1722 = vmatpush1.msra.mxu0 0.0
  %1723 = vmatprep.subr.mxu0 0.0
  %1724 = vmatpush1.msra.mxu0 0.0
  %1725 = vmatprep.subr.mxu0 0.0
  %1726 = vmatpush1.msra.mxu0 0.0
  %1727 = vmatprep.subr.mxu0 0.0
  %1728 = vmatpush1.msra.mxu0 0.0
  %1729 = vmatprep.subr.mxu0 0.0
  %1730 = vmatpush1.msra.mxu0 0.0
  %1731 = vmatprep.subr.mxu0 0.0
  %1732 = vmatpush1.msra.mxu0 0.0
  %1733 = vmatprep.subr.mxu0 0.0
  %1734 = vmatpush1.msra.mxu0 0.0
  %1735 = vmatprep.subr.mxu0 0.0
  %1736 = vmatpush1.msra.mxu0 0.0
  %1737 = vmatprep.subr.mxu0 0.0
  %1738 = vmatpush1.msra.mxu0 0.0
  %1739 = vmatprep.subr.mxu0 0.0
  %1740 = vmatpush1.msra.mxu0 0.0
  %1741 = vmatprep.subr.mxu0 0.0
  %1742 = vmatpush1.msra.mxu0 0.0
  %1743 = vmatprep.subr.mxu0 0.0
  %1744 = vmatpush1.msra.mxu0 0.0
  %1745 = vmatprep.subr.mxu0 0.0
  %1746 = vmatpush1.msra.mxu0 0.0
  %1747 = vmatprep.subr.mxu0 0.0
  %1748 = vmatpush1.msra.mxu0 0.0
  %1749 = vmatprep.subr.mxu0 0.0
  %1750 = vmatpush1.msra.mxu0 0.0
  %1751 = vmatprep.subr.mxu0 0.0
  %1752 = vmatpush1.msra.mxu0 0.0
  %1753 = vmatprep.mubr.f32.mxu0 0.0
  %1754 = vmatmul.mubr.f32.gmra.mrb[0].mxu0 %v1617
  %v1755 = vpop.f32.mrb[0].mxu0
  %v1756 = vadd.f32 0.0, %v1755
  %v1757 = vpop.f32.mrb[0].mxu0
  %1758 = vdwg.mxu0
  %v1759 = vadd.f32 %v175, %v1686
  %v1760 = vxor.u32 %v1759, 2147483648
  %v1761 = vmul.f32 %v1760, 1.442695
  %v1762 = vpow.pop %v1761
  %v1763 = vadd.f32 %v1762, 1.0
  %v1764 = vrcp.pop %v1763
  %v1765 = vmul.f32 1.0, %v1764
  %v1766 = vadd.f32 %v293, %v1756
  %v1767 = vxor.u32 %v1766, 2147483648
  %v1768 = vmul.f32 %v1767, 1.442695
  %v1769 = vpow.pop %v1768
  %v1770 = vadd.f32 %v1769, 1.0
  %v1771 = vrcp.pop %v1770
  %v1772 = vmul.f32 1.0, %v1771
  %1773 = vmatprep.subr.mxu0 0.0
  %1774 = vmatpush1.msra.mxu0 %v434
  %1775 = vmatprep.subr.mxu0 0.0
  %1776 = vmatpush1.msra.mxu0 %v435
  %1777 = vmatprep.subr.mxu0 0.0
  %1778 = vmatpush1.msra.mxu0 %v436
  %1779 = vmatprep.subr.mxu0 0.0
  %1780 = vmatpush1.msra.mxu0 %v437
  %1781 = vmatprep.subr.mxu0 0.0
  %1782 = vmatpush1.msra.mxu0 0.0
  %1783 = vmatprep.subr.mxu0 0.0
  %1784 = vmatpush1.msra.mxu0 0.0
  %1785 = vmatprep.subr.mxu0 0.0
  %1786 = vmatpush1.msra.mxu0 0.0
  %1787 = vmatprep.subr.mxu0 0.0
  %1788 = vmatpush1.msra.mxu0 0.0
  %1789 = vmatprep.subr.mxu0 0.0
  %1790 = vmatpush1.msra.mxu0 0.0
  %1791 = vmatprep.subr.mxu0 0.0
  %1792 = vmatpush1.msra.mxu0 0.0
  %1793 = vmatprep.subr.mxu0 0.0
  %1794 = vmatpush1.msra.mxu0 0.0
  %1795 = vmatprep.subr.mxu0 0.0
  %1796 = vmatpush1.msra.mxu0 0.0
  %1797 = vmatprep.subr.mxu0 0.0
  %1798 = vmatpush1.msra.mxu0 0.0
  %1799 = vmatprep.subr.mxu0 0.0
  %1800 = vmatpush1.msra.mxu0 0.0
  %1801 = vmatprep.subr.mxu0 0.0
  %1802 = vmatpush1.msra.mxu0 0.0
  %1803 = vmatprep.subr.mxu0 0.0
  %1804 = vmatpush1.msra.mxu0 0.0
  %1805 = vmatprep.subr.mxu0 0.0
  %1806 = vmatpush1.msra.mxu0 0.0
  %1807 = vmatprep.subr.mxu0 0.0
  %1808 = vmatpush1.msra.mxu0 0.0
  %1809 = vmatprep.subr.mxu0 0.0
  %1810 = vmatpush1.msra.mxu0 0.0
  %1811 = vmatprep.subr.mxu0 0.0
  %1812 = vmatpush1.msra.mxu0 0.0
  %1813 = vmatprep.subr.mxu0 0.0
  %1814 = vmatpush1.msra.mxu0 0.0
  %1815 = vmatprep.subr.mxu0 0.0
  %1816 = vmatpush1.msra.mxu0 0.0
  %1817 = vmatprep.subr.mxu0 0.0
  %1818 = vmatpush1.msra.mxu0 0.0
  %1819 = vmatprep.subr.mxu0 0.0
  %1820 = vmatpush1.msra.mxu0 0.0
  %1821 = vmatprep.subr.mxu0 0.0
  %1822 = vmatpush1.msra.mxu0 0.0
  %1823 = vmatprep.subr.mxu0 0.0
  %1824 = vmatpush1.msra.mxu0 0.0
  %1825 = vmatprep.subr.mxu0 0.0
  %1826 = vmatpush1.msra.mxu0 0.0
  %1827 = vmatprep.subr.mxu0 0.0
  %1828 = vmatpush1.msra.mxu0 0.0
  %1829 = vmatprep.subr.mxu0 0.0
  %1830 = vmatpush1.msra.mxu0 0.0
  %1831 = vmatprep.subr.mxu0 0.0
  %1832 = vmatpush1.msra.mxu0 0.0
  %1833 = vmatprep.subr.mxu0 0.0
  %1834 = vmatpush1.msra.mxu0 0.0
  %1835 = vmatprep.subr.mxu0 0.0
  %1836 = vmatpush1.msra.mxu0 0.0
  %1837 = vmatprep.mubr.f32.mxu0 0.0
  %1838 = vmatmul.mubr.f32.gmra.mrb[0].mxu0 %v1617
  %v1839 = vpop.f32.mrb[0].mxu0
  %v1840 = vadd.f32 %v601, %v1839
  %v1841 = vpop.f32.mrb[0].mxu0
  %1842 = vdwg.mxu0
  %v1843 = vmul.f32 %v1765, %v1840
  %v1844 = vadd.f32 %v411, %v1843
  %v1845 = vtanh.pop %v1844
  %v1846 = vsub.f32 1.0, %v1772
  %v1847 = vmul.f32 %v1846, %v1845
  %v1848 = vmul.f32 %v1772, %v1615
  %v1849 = vadd.f32 %v1847, %v1848
  %v1851 = vsel %vm439, %v1849, 0
  %1853 = vmatprep.subr.mxu0 0.0
  %1854 = vmatpush1.msra.mxu0 %v424
  %1855 = vmatprep.subr.mxu0 0.0
  %1856 = vmatpush1.msra.mxu0 %v425
  %1857 = vmatprep.subr.mxu0 0.0
  %1858 = vmatpush1.msra.mxu0 %v426
  %1859 = vmatprep.subr.mxu0 0.0
  %1860 = vmatpush1.msra.mxu0 %v427
  %1861 = vmatprep.subr.mxu0 0.0
  %1862 = vmatpush1.msra.mxu0 0.0
  %1863 = vmatprep.subr.mxu0 0.0
  %1864 = vmatpush1.msra.mxu0 0.0
  %1865 = vmatprep.subr.mxu0 0.0
  %1866 = vmatpush1.msra.mxu0 0.0
  %1867 = vmatprep.subr.mxu0 0.0
  %1868 = vmatpush1.msra.mxu0 0.0
  %1869 = vmatprep.subr.mxu0 0.0
  %1870 = vmatpush1.msra.mxu0 0.0
  %1871 = vmatprep.subr.mxu0 0.0
  %1872 = vmatpush1.msra.mxu0 0.0
  %1873 = vmatprep.subr.mxu0 0.0
  %1874 = vmatpush1.msra.mxu0 0.0
  %1875 = vmatprep.subr.mxu0 0.0
  %1876 = vmatpush1.msra.mxu0 0.0
  %1877 = vmatprep.subr.mxu0 0.0
  %1878 = vmatpush1.msra.mxu0 0.0
  %1879 = vmatprep.subr.mxu0 0.0
  %1880 = vmatpush1.msra.mxu0 0.0
  %1881 = vmatprep.subr.mxu0 0.0
  %1882 = vmatpush1.msra.mxu0 0.0
  %1883 = vmatprep.subr.mxu0 0.0
  %1884 = vmatpush1.msra.mxu0 0.0
  %1885 = vmatprep.subr.mxu0 0.0
  %1886 = vmatpush1.msra.mxu0 0.0
  %1887 = vmatprep.subr.mxu0 0.0
  %1888 = vmatpush1.msra.mxu0 0.0
  %1889 = vmatprep.subr.mxu0 0.0
  %1890 = vmatpush1.msra.mxu0 0.0
  %1891 = vmatprep.subr.mxu0 0.0
  %1892 = vmatpush1.msra.mxu0 0.0
  %1893 = vmatprep.subr.mxu0 0.0
  %1894 = vmatpush1.msra.mxu0 0.0
  %1895 = vmatprep.subr.mxu0 0.0
  %1896 = vmatpush1.msra.mxu0 0.0
  %1897 = vmatprep.subr.mxu0 0.0
  %1898 = vmatpush1.msra.mxu0 0.0
  %1899 = vmatprep.subr.mxu0 0.0
  %1900 = vmatpush1.msra.mxu0 0.0
  %1901 = vmatprep.subr.mxu0 0.0
  %1902 = vmatpush1.msra.mxu0 0.0
  %1903 = vmatprep.subr.mxu0 0.0
  %1904 = vmatpush1.msra.mxu0 0.0
  %1905 = vmatprep.subr.mxu0 0.0
  %1906 = vmatpush1.msra.mxu0 0.0
  %1907 = vmatprep.subr.mxu0 0.0
  %1908 = vmatpush1.msra.mxu0 0.0
  %1909 = vmatprep.subr.mxu0 0.0
  %1910 = vmatpush1.msra.mxu0 0.0
  %1911 = vmatprep.subr.mxu0 0.0
  %1912 = vmatpush1.msra.mxu0 0.0
  %1913 = vmatprep.subr.mxu0 0.0
  %1914 = vmatpush1.msra.mxu0 0.0
  %1915 = vmatprep.subr.mxu0 0.0
  %1916 = vmatpush1.msra.mxu0 0.0
  %1917 = vmatprep.mubr.f32.mxu0 0.0
  %1918 = vmatmul.mubr.f32.gmra.mrb[0].mxu0 %v1851
  %v1919 = vpop.f32.mrb[0].mxu0
  %v1920 = vadd.f32 0.0, %v1919
  %v1921 = vpop.f32.mrb[0].mxu0
  %1922 = vdwg.mxu0
  %1923 = vmatprep.subr.mxu0 0.0
  %1924 = vmatpush1.msra.mxu0 %v429
  %1925 = vmatprep.subr.mxu0 0.0
  %1926 = vmatpush1.msra.mxu0 %v430
  %1927 = vmatprep.subr.mxu0 0.0
  %1928 = vmatpush1.msra.mxu0 %v431
  %1929 = vmatprep.subr.mxu0 0.0
  %1930 = vmatpush1.msra.mxu0 %v432
  %1931 = vmatprep.subr.mxu0 0.0
  %1932 = vmatpush1.msra.mxu0 0.0
  %1933 = vmatprep.subr.mxu0 0.0
  %1934 = vmatpush1.msra.mxu0 0.0
  %1935 = vmatprep.subr.mxu0 0.0
  %1936 = vmatpush1.msra.mxu0 0.0
  %1937 = vmatprep.subr.mxu0 0.0
  %1938 = vmatpush1.msra.mxu0 0.0
  %1939 = vmatprep.subr.mxu0 0.0
  %1940 = vmatpush1.msra.mxu0 0.0
  %1941 = vmatprep.subr.mxu0 0.0
  %1942 = vmatpush1.msra.mxu0 0.0
  %1943 = vmatprep.subr.mxu0 0.0
  %1944 = vmatpush1.msra.mxu0 0.0
  %1945 = vmatprep.subr.mxu0 0.0
  %1946 = vmatpush1.msra.mxu0 0.0
  %1947 = vmatprep.subr.mxu0 0.0
  %1948 = vmatpush1.msra.mxu0 0.0
  %1949 = vmatprep.subr.mxu0 0.0
  %1950 = vmatpush1.msra.mxu0 0.0
  %1951 = vmatprep.subr.mxu0 0.0
  %1952 = vmatpush1.msra.mxu0 0.0
  %1953 = vmatprep.subr.mxu0 0.0
  %1954 = vmatpush1.msra.mxu0 0.0
  %1955 = vmatprep.subr.mxu0 0.0
  %1956 = vmatpush1.msra.mxu0 0.0
  %1957 = vmatprep.subr.mxu0 0.0
  %1958 = vmatpush1.msra.mxu0 0.0
  %1959 = vmatprep.subr.mxu0 0.0
  %1960 = vmatpush1.msra.mxu0 0.0
  %1961 = vmatprep.subr.mxu0 0.0
  %1962 = vmatpush1.msra.mxu0 0.0
  %1963 = vmatprep.subr.mxu0 0.0
  %1964 = vmatpush1.msra.mxu0 0.0
  %1965 = vmatprep.subr.mxu0 0.0
  %1966 = vmatpush1.msra.mxu0 0.0
  %1967 = vmatprep.subr.mxu0 0.0
  %1968 = vmatpush1.msra.mxu0 0.0
  %1969 = vmatprep.subr.mxu0 0.0
  %1970 = vmatpush1.msra.mxu0 0.0
  %1971 = vmatprep.subr.mxu0 0.0
  %1972 = vmatpush1.msra.mxu0 0.0
  %1973 = vmatprep.subr.mxu0 0.0
  %1974 = vmatpush1.msra.mxu0 0.0
  %1975 = vmatprep.subr.mxu0 0.0
  %1976 = vmatpush1.msra.mxu0 0.0
  %1977 = vmatprep.subr.mxu0 0.0
  %1978 = vmatpush1.msra.mxu0 0.0
  %1979 = vmatprep.subr.mxu0 0.0
  %1980 = vmatpush1.msra.mxu0 0.0
  %1981 = vmatprep.subr.mxu0 0.0
  %1982 = vmatpush1.msra.mxu0 0.0
  %1983 = vmatprep.subr.mxu0 0.0
  %1984 = vmatpush1.msra.mxu0 0.0
  %1985 = vmatprep.subr.mxu0 0.0
  %1986 = vmatpush1.msra.mxu0 0.0
  %1987 = vmatprep.mubr.f32.mxu0 0.0
  %1988 = vmatmul.mubr.f32.gmra.mrb[0].mxu0 %v1851
  %v1989 = vpop.f32.mrb[0].mxu0
  %v1990 = vadd.f32 0.0, %v1989
  %v1991 = vpop.f32.mrb[0].mxu0
  %1992 = vdwg.mxu0
  %v1993 = vadd.f32 %v180, %v1920
  %v1994 = vxor.u32 %v1993, 2147483648
  %v1995 = vmul.f32 %v1994, 1.442695
  %v1996 = vpow.pop %v1995
  %v1997 = vadd.f32 %v1996, 1.0
  %v1998 = vrcp.pop %v1997
  %v1999 = vmul.f32 1.0, %v1998
  %v2000 = vadd.f32 %v298, %v1990
  %v2001 = vxor.u32 %v2000, 2147483648
  %v2002 = vmul.f32 %v2001, 1.442695
  %v2003 = vpow.pop %v2002
  %v2004 = vadd.f32 %v2003, 1.0
  %v2005 = vrcp.pop %v2004
  %v2006 = vmul.f32 1.0, %v2005
  %2007 = vmatprep.subr.mxu0 0.0
  %2008 = vmatpush1.msra.mxu0 %v434
  %2009 = vmatprep.subr.mxu0 0.0
  %2010 = vmatpush1.msra.mxu0 %v435
  %2011 = vmatprep.subr.mxu0 0.0
  %2012 = vmatpush1.msra.mxu0 %v436
  %2013 = vmatprep.subr.mxu0 0.0
  %2014 = vmatpush1.msra.mxu0 %v437
  %2015 = vmatprep.subr.mxu0 0.0
  %2016 = vmatpush1.msra.mxu0 0.0
  %2017 = vmatprep.subr.mxu0 0.0
  %2018 = vmatpush1.msra.mxu0 0.0
  %2019 = vmatprep.subr.mxu0 0.0
  %2020 = vmatpush1.msra.mxu0 0.0
  %2021 = vmatprep.subr.mxu0 0.0
  %2022 = vmatpush1.msra.mxu0 0.0
  %2023 = vmatprep.subr.mxu0 0.0
  %2024 = vmatpush1.msra.mxu0 0.0
  %2025 = vmatprep.subr.mxu0 0.0
  %2026 = vmatpush1.msra.mxu0 0.0
  %2027 = vmatprep.subr.mxu0 0.0
  %2028 = vmatpush1.msra.mxu0 0.0
  %2029 = vmatprep.subr.mxu0 0.0
  %2030 = vmatpush1.msra.mxu0 0.0
  %2031 = vmatprep.subr.mxu0 0.0
  %2032 = vmatpush1.msra.mxu0 0.0
  %2033 = vmatprep.subr.mxu0 0.0
  %2034 = vmatpush1.msra.mxu0 0.0
  %2035 = vmatprep.subr.mxu0 0.0
  %2036 = vmatpush1.msra.mxu0 0.0
  %2037 = vmatprep.subr.mxu0 0.0
  %2038 = vmatpush1.msra.mxu0 0.0
  %2039 = vmatprep.subr.mxu0 0.0
  %2040 = vmatpush1.msra.mxu0 0.0
  %2041 = vmatprep.subr.mxu0 0.0
  %2042 = vmatpush1.msra.mxu0 0.0
  %2043 = vmatprep.subr.mxu0 0.0
  %2044 = vmatpush1.msra.mxu0 0.0
  %2045 = vmatprep.subr.mxu0 0.0
  %2046 = vmatpush1.msra.mxu0 0.0
  %2047 = vmatprep.subr.mxu0 0.0
  %2048 = vmatpush1.msra.mxu0 0.0
  %2049 = vmatprep.subr.mxu0 0.0
  %2050 = vmatpush1.msra.mxu0 0.0
  %2051 = vmatprep.subr.mxu0 0.0
  %2052 = vmatpush1.msra.mxu0 0.0
  %2053 = vmatprep.subr.mxu0 0.0
  %2054 = vmatpush1.msra.mxu0 0.0
  %2055 = vmatprep.subr.mxu0 0.0
  %2056 = vmatpush1.msra.mxu0 0.0
  %2057 = vmatprep.subr.mxu0 0.0
  %2058 = vmatpush1.msra.mxu0 0.0
  %2059 = vmatprep.subr.mxu0 0.0
  %2060 = vmatpush1.msra.mxu0 0.0
  %2061 = vmatprep.subr.mxu0 0.0
  %2062 = vmatpush1.msra.mxu0 0.0
  %2063 = vmatprep.subr.mxu0 0.0
  %2064 = vmatpush1.msra.mxu0 0.0
  %2065 = vmatprep.subr.mxu0 0.0
  %2066 = vmatpush1.msra.mxu0 0.0
  %2067 = vmatprep.subr.mxu0 0.0
  %2068 = vmatpush1.msra.mxu0 0.0
  %2069 = vmatprep.subr.mxu0 0.0
  %2070 = vmatpush1.msra.mxu0 0.0
  %2071 = vmatprep.mubr.f32.mxu0 0.0
  %2072 = vmatmul.mubr.f32.gmra.mrb[0].mxu0 %v1851
  %v2073 = vpop.f32.mrb[0].mxu0
  %v2074 = vadd.f32 %v601, %v2073
  %v2075 = vpop.f32.mrb[0].mxu0
  %2076 = vdwg.mxu0
  %v2077 = vmul.f32 %v1999, %v2074
  %v2078 = vadd.f32 %v416, %v2077
  %v2079 = vtanh.pop %v2078
  %v2080 = vsub.f32 1.0, %v2006
  %v2081 = vmul.f32 %v2080, %v2079
  %v2082 = vmul.f32 %v2006, %v1849
  %v2083 = vadd.f32 %v2081, %v2082
  %v2085 = vsel %vm439, %v2083, 0
  %2087 = vmatprep.subr.mxu0 0.0
  %2088 = vmatpush1.msra.mxu0 %v424
  %2089 = vmatprep.subr.mxu0 0.0
  %2090 = vmatpush1.msra.mxu0 %v425
  %2091 = vmatprep.subr.mxu0 0.0
  %2092 = vmatpush1.msra.mxu0 %v426
  %2093 = vmatprep.subr.mxu0 0.0
  %2094 = vmatpush1.msra.mxu0 %v427
  %2095 = vmatprep.subr.mxu0 0.0
  %2096 = vmatpush1.msra.mxu0 0.0
  %2097 = vmatprep.subr.mxu0 0.0
  %2098 = vmatpush1.msra.mxu0 0.0
  %2099 = vmatprep.subr.mxu0 0.0
  %2100 = vmatpush1.msra.mxu0 0.0
  %2101 = vmatprep.subr.mxu0 0.0
  %2102 = vmatpush1.msra.mxu0 0.0
  %2103 = vmatprep.subr.mxu0 0.0
  %2104 = vmatpush1.msra.mxu0 0.0
  %2105 = vmatprep.subr.mxu0 0.0
  %2106 = vmatpush1.msra.mxu0 0.0
  %2107 = vmatprep.subr.mxu0 0.0
  %2108 = vmatpush1.msra.mxu0 0.0
  %2109 = vmatprep.subr.mxu0 0.0
  %2110 = vmatpush1.msra.mxu0 0.0
  %2111 = vmatprep.subr.mxu0 0.0
  %2112 = vmatpush1.msra.mxu0 0.0
  %2113 = vmatprep.subr.mxu0 0.0
  %2114 = vmatpush1.msra.mxu0 0.0
  %2115 = vmatprep.subr.mxu0 0.0
  %2116 = vmatpush1.msra.mxu0 0.0
  %2117 = vmatprep.subr.mxu0 0.0
  %2118 = vmatpush1.msra.mxu0 0.0
  %2119 = vmatprep.subr.mxu0 0.0
  %2120 = vmatpush1.msra.mxu0 0.0
  %2121 = vmatprep.subr.mxu0 0.0
  %2122 = vmatpush1.msra.mxu0 0.0
  %2123 = vmatprep.subr.mxu0 0.0
  %2124 = vmatpush1.msra.mxu0 0.0
  %2125 = vmatprep.subr.mxu0 0.0
  %2126 = vmatpush1.msra.mxu0 0.0
  %2127 = vmatprep.subr.mxu0 0.0
  %2128 = vmatpush1.msra.mxu0 0.0
  %2129 = vmatprep.subr.mxu0 0.0
  %2130 = vmatpush1.msra.mxu0 0.0
  %2131 = vmatprep.subr.mxu0 0.0
  %2132 = vmatpush1.msra.mxu0 0.0
  %2133 = vmatprep.subr.mxu0 0.0
  %2134 = vmatpush1.msra.mxu0 0.0
  %2135 = vmatprep.subr.mxu0 0.0
  %2136 = vmatpush1.msra.mxu0 0.0
  %2137 = vmatprep.subr.mxu0 0.0
  %2138 = vmatpush1.msra.mxu0 0.0
  %2139 = vmatprep.subr.mxu0 0.0
  %2140 = vmatpush1.msra.mxu0 0.0
  %2141 = vmatprep.subr.mxu0 0.0
  %2142 = vmatpush1.msra.mxu0 0.0
  %2143 = vmatprep.subr.mxu0 0.0
  %2144 = vmatpush1.msra.mxu0 0.0
  %2145 = vmatprep.subr.mxu0 0.0
  %2146 = vmatpush1.msra.mxu0 0.0
  %2147 = vmatprep.subr.mxu0 0.0
  %2148 = vmatpush1.msra.mxu0 0.0
  %2149 = vmatprep.subr.mxu0 0.0
  %2150 = vmatpush1.msra.mxu0 0.0
  %2151 = vmatprep.mubr.f32.mxu0 0.0
  %2152 = vmatmul.mubr.f32.gmra.mrb[0].mxu0 %v2085
  %v2153 = vpop.f32.mrb[0].mxu0
  %v2154 = vadd.f32 0.0, %v2153
  %v2155 = vpop.f32.mrb[0].mxu0
  %2156 = vdwg.mxu0
  %2157 = vmatprep.subr.mxu0 0.0
  %2158 = vmatpush1.msra.mxu0 %v429
  %2159 = vmatprep.subr.mxu0 0.0
  %2160 = vmatpush1.msra.mxu0 %v430
  %2161 = vmatprep.subr.mxu0 0.0
  %2162 = vmatpush1.msra.mxu0 %v431
  %2163 = vmatprep.subr.mxu0 0.0
  %2164 = vmatpush1.msra.mxu0 %v432
  %2165 = vmatprep.subr.mxu0 0.0
  %2166 = vmatpush1.msra.mxu0 0.0
  %2167 = vmatprep.subr.mxu0 0.0
  %2168 = vmatpush1.msra.mxu0 0.0
  %2169 = vmatprep.subr.mxu0 0.0
  %2170 = vmatpush1.msra.mxu0 0.0
  %2171 = vmatprep.subr.mxu0 0.0
  %2172 = vmatpush1.msra.mxu0 0.0
  %2173 = vmatprep.subr.mxu0 0.0
  %2174 = vmatpush1.msra.mxu0 0.0
  %2175 = vmatprep.subr.mxu0 0.0
  %2176 = vmatpush1.msra.mxu0 0.0
  %2177 = vmatprep.subr.mxu0 0.0
  %2178 = vmatpush1.msra.mxu0 0.0
  %2179 = vmatprep.subr.mxu0 0.0
  %2180 = vmatpush1.msra.mxu0 0.0
  %2181 = vmatprep.subr.mxu0 0.0
  %2182 = vmatpush1.msra.mxu0 0.0
  %2183 = vmatprep.subr.mxu0 0.0
  %2184 = vmatpush1.msra.mxu0 0.0
  %2185 = vmatprep.subr.mxu0 0.0
  %2186 = vmatpush1.msra.mxu0 0.0
  %2187 = vmatprep.subr.mxu0 0.0
  %2188 = vmatpush1.msra.mxu0 0.0
  %2189 = vmatprep.subr.mxu0 0.0
  %2190 = vmatpush1.msra.mxu0 0.0
  %2191 = vmatprep.subr.mxu0 0.0
  %2192 = vmatpush1.msra.mxu0 0.0
  %2193 = vmatprep.subr.mxu0 0.0
  %2194 = vmatpush1.msra.mxu0 0.0
  %2195 = vmatprep.subr.mxu0 0.0
  %2196 = vmatpush1.msra.mxu0 0.0
  %2197 = vmatprep.subr.mxu0 0.0
  %2198 = vmatpush1.msra.mxu0 0.0
  %2199 = vmatprep.subr.mxu0 0.0
  %2200 = vmatpush1.msra.mxu0 0.0
  %2201 = vmatprep.subr.mxu0 0.0
  %2202 = vmatpush1.msra.mxu0 0.0
  %2203 = vmatprep.subr.mxu0 0.0
  %2204 = vmatpush1.msra.mxu0 0.0
  %2205 = vmatprep.subr.mxu0 0.0
  %2206 = vmatpush1.msra.mxu0 0.0
  %2207 = vmatprep.subr.mxu0 0.0
  %2208 = vmatpush1.msra.mxu0 0.0
  %2209 = vmatprep.subr.mxu0 0.0
  %2210 = vmatpush1.msra.mxu0 0.0
  %2211 = vmatprep.subr.mxu0 0.0
  %2212 = vmatpush1.msra.mxu0 0.0
  %2213 = vmatprep.subr.mxu0 0.0
  %2214 = vmatpush1.msra.mxu0 0.0
  %2215 = vmatprep.subr.mxu0 0.0
  %2216 = vmatpush1.msra.mxu0 0.0
  %2217 = vmatprep.subr.mxu0 0.0
  %2218 = vmatpush1.msra.mxu0 0.0
  %2219 = vmatprep.subr.mxu0 0.0
  %2220 = vmatpush1.msra.mxu0 0.0
  %2221 = vmatprep.mubr.f32.mxu0 0.0
  %2222 = vmatmul.mubr.f32.gmra.mrb[0].mxu0 %v2085
  %v2223 = vpop.f32.mrb[0].mxu0
  %v2224 = vadd.f32 0.0, %v2223
  %v2225 = vpop.f32.mrb[0].mxu0
  %2226 = vdwg.mxu0
  %v2227 = vadd.f32 %v185, %v2154
  %v2228 = vxor.u32 %v2227, 2147483648
  %v2229 = vmul.f32 %v2228, 1.442695
  %v2230 = vpow.pop %v2229
  %v2231 = vadd.f32 %v2230, 1.0
  %v2232 = vrcp.pop %v2231
  %v2233 = vmul.f32 1.0, %v2232
  %v2234 = vadd.f32 %v303, %v2224
  %v2235 = vxor.u32 %v2234, 2147483648
  %v2236 = vmul.f32 %v2235, 1.442695
  %v2237 = vpow.pop %v2236
  %v2238 = vadd.f32 %v2237, 1.0
  %v2239 = vrcp.pop %v2238
  %v2240 = vmul.f32 1.0, %v2239
  %2241 = vmatprep.subr.mxu0 0.0
  %2242 = vmatpush1.msra.mxu0 %v434
  %2243 = vmatprep.subr.mxu0 0.0
  %2244 = vmatpush1.msra.mxu0 %v435
  %2245 = vmatprep.subr.mxu0 0.0
  %2246 = vmatpush1.msra.mxu0 %v436
  %2247 = vmatprep.subr.mxu0 0.0
  %2248 = vmatpush1.msra.mxu0 %v437
  %2249 = vmatprep.subr.mxu0 0.0
  %2250 = vmatpush1.msra.mxu0 0.0
  %2251 = vmatprep.subr.mxu0 0.0
  %2252 = vmatpush1.msra.mxu0 0.0
  %2253 = vmatprep.subr.mxu0 0.0
  %2254 = vmatpush1.msra.mxu0 0.0
  %2255 = vmatprep.subr.mxu0 0.0
  %2256 = vmatpush1.msra.mxu0 0.0
  %2257 = vmatprep.subr.mxu0 0.0
  %2258 = vmatpush1.msra.mxu0 0.0
  %2259 = vmatprep.subr.mxu0 0.0
  %2260 = vmatpush1.msra.mxu0 0.0
  %2261 = vmatprep.subr.mxu0 0.0
  %2262 = vmatpush1.msra.mxu0 0.0
  %2263 = vmatprep.subr.mxu0 0.0
  %2264 = vmatpush1.msra.mxu0 0.0
  %2265 = vmatprep.subr.mxu0 0.0
  %2266 = vmatpush1.msra.mxu0 0.0
  %2267 = vmatprep.subr.mxu0 0.0
  %2268 = vmatpush1.msra.mxu0 0.0
  %2269 = vmatprep.subr.mxu0 0.0
  %2270 = vmatpush1.msra.mxu0 0.0
  %2271 = vmatprep.subr.mxu0 0.0
  %2272 = vmatpush1.msra.mxu0 0.0
  %2273 = vmatprep.subr.mxu0 0.0
  %2274 = vmatpush1.msra.mxu0 0.0
  %2275 = vmatprep.subr.mxu0 0.0
  %2276 = vmatpush1.msra.mxu0 0.0
  %2277 = vmatprep.subr.mxu0 0.0
  %2278 = vmatpush1.msra.mxu0 0.0
  %2279 = vmatprep.subr.mxu0 0.0
  %2280 = vmatpush1.msra.mxu0 0.0
  %2281 = vmatprep.subr.mxu0 0.0
  %2282 = vmatpush1.msra.mxu0 0.0
  %2283 = vmatprep.subr.mxu0 0.0
  %2284 = vmatpush1.msra.mxu0 0.0
  %2285 = vmatprep.subr.mxu0 0.0
  %2286 = vmatpush1.msra.mxu0 0.0
  %2287 = vmatprep.subr.mxu0 0.0
  %2288 = vmatpush1.msra.mxu0 0.0
  %2289 = vmatprep.subr.mxu0 0.0
  %2290 = vmatpush1.msra.mxu0 0.0
  %2291 = vmatprep.subr.mxu0 0.0
  %2292 = vmatpush1.msra.mxu0 0.0
  %2293 = vmatprep.subr.mxu0 0.0
  %2294 = vmatpush1.msra.mxu0 0.0
  %2295 = vmatprep.subr.mxu0 0.0
  %2296 = vmatpush1.msra.mxu0 0.0
  %2297 = vmatprep.subr.mxu0 0.0
  %2298 = vmatpush1.msra.mxu0 0.0
  %2299 = vmatprep.subr.mxu0 0.0
  %2300 = vmatpush1.msra.mxu0 0.0
  %2301 = vmatprep.subr.mxu0 0.0
  %2302 = vmatpush1.msra.mxu0 0.0
  %2303 = vmatprep.subr.mxu0 0.0
  %2304 = vmatpush1.msra.mxu0 0.0
  %2305 = vmatprep.mubr.f32.mxu0 0.0
  %2306 = vmatmul.mubr.f32.gmra.mrb[0].mxu0 %v2085
  %v2307 = vpop.f32.mrb[0].mxu0
  %v2308 = vadd.f32 %v601, %v2307
  %v2309 = vpop.f32.mrb[0].mxu0
  %2310 = vdwg.mxu0
  %v2311 = vmul.f32 %v2233, %v2308
  %v2312 = vadd.f32 %v421, %v2311
  %v2313 = vtanh.pop %v2312
  %v2314 = vsub.f32 1.0, %v2240
  %v2315 = vmul.f32 %v2314, %v2313
  %v2316 = vmul.f32 %v2240, %v2083
  %v2317 = vadd.f32 %v2315, %v2316
  %s2318 = scalar_lea.vmem %s0, 56
  %v2319 = vld [vmem:[%s2318] sm:$0xff]
  %v2320 = vld [vmem:[%s5] sm:$0xf]
  %v2321 = vld [vmem:[%s6] sm:$0x1]
  %v2323 = vlaneseq
  %v2324 = vshrl.u32 %v2323, 7
  %v2325 = vsub.s32 0, %v2324
  %v2326 = vrot.slane %v2321, %v2325
  %v2329 = vsel %vm54, %v2319, 0
  %v2332 = vsel %vm79, %v2320, 0
  %2334 = vmatprep.subr.mxu0 0.0
  %2335 = vmatpush1.msra.mxu0 %v2332
  %2336 = vmatprep.subr.mxu0 0.0
  %2337 = vmatpush1.msra.mxu0 0.0
  %2338 = vmatprep.subr.mxu0 0.0
  %2339 = vmatpush1.msra.mxu0 0.0
  %2340 = vmatprep.subr.mxu0 0.0
  %2341 = vmatpush1.msra.mxu0 0.0
  %2342 = vmatprep.subr.mxu0 0.0
  %2343 = vmatpush1.msra.mxu0 0.0
  %2344 = vmatprep.subr.mxu0 0.0
  %2345 = vmatpush1.msra.mxu0 0.0
  %2346 = vmatprep.subr.mxu0 0.0
  %2347 = vmatpush1.msra.mxu0 0.0
  %2348 = vmatprep.subr.mxu0 0.0
  %2349 = vmatpush1.msra.mxu0 0.0
  %2350 = vmatprep.subr.mxu0 0.0
  %2351 = vmatpush1.msra.mxu0 0.0
  %2352 = vmatprep.subr.mxu0 0.0
  %2353 = vmatpush1.msra.mxu0 0.0
  %2354 = vmatprep.subr.mxu0 0.0
  %2355 = vmatpush1.msra.mxu0 0.0
  %2356 = vmatprep.subr.mxu0 0.0
  %2357 = vmatpush1.msra.mxu0 0.0
  %2358 = vmatprep.subr.mxu0 0.0
  %2359 = vmatpush1.msra.mxu0 0.0
  %2360 = vmatprep.subr.mxu0 0.0
  %2361 = vmatpush1.msra.mxu0 0.0
  %2362 = vmatprep.subr.mxu0 0.0
  %2363 = vmatpush1.msra.mxu0 0.0
  %2364 = vmatprep.subr.mxu0 0.0
  %2365 = vmatpush1.msra.mxu0 0.0
  %2366 = vmatprep.subr.mxu0 0.0
  %2367 = vmatpush1.msra.mxu0 0.0
  %2368 = vmatprep.subr.mxu0 0.0
  %2369 = vmatpush1.msra.mxu0 0.0
  %2370 = vmatprep.subr.mxu0 0.0
  %2371 = vmatpush1.msra.mxu0 0.0
  %2372 = vmatprep.subr.mxu0 0.0
  %2373 = vmatpush1.msra.mxu0 0.0
  %2374 = vmatprep.subr.mxu0 0.0
  %2375 = vmatpush1.msra.mxu0 0.0
  %2376 = vmatprep.subr.mxu0 0.0
  %2377 = vmatpush1.msra.mxu0 0.0
  %2378 = vmatprep.subr.mxu0 0.0
  %2379 = vmatpush1.msra.mxu0 0.0
  %2380 = vmatprep.subr.mxu0 0.0
  %2381 = vmatpush1.msra.mxu0 0.0
  %2382 = vmatprep.subr.mxu0 0.0
  %2383 = vmatpush1.msra.mxu0 0.0
  %2384 = vmatprep.subr.mxu0 0.0
  %2385 = vmatpush1.msra.mxu0 0.0
  %2386 = vmatprep.subr.mxu0 0.0
  %2387 = vmatpush1.msra.mxu0 0.0
  %2388 = vmatprep.subr.mxu0 0.0
  %2389 = vmatpush1.msra.mxu0 0.0
  %2390 = vmatprep.subr.mxu0 0.0
  %2391 = vmatpush1.msra.mxu0 0.0
  %2392 = vmatprep.subr.mxu0 0.0
  %2393 = vmatpush1.msra.mxu0 0.0
  %2394 = vmatprep.subr.mxu0 0.0
  %2395 = vmatpush1.msra.mxu0 0.0
  %2396 = vmatprep.subr.mxu0 0.0
  %2397 = vmatpush1.msra.mxu0 0.0
  %2398 = vmatprep.mubr.f32.mxu0 0.0
  %2399 = vmatmul.mubr.f32.gmra.mrb[0].mxu0 %v2329
  %v2400 = vpop.f32.mrb[0].mxu0
  %v2401 = vadd.f32 %v2326, %v2400
  %v2402 = vpop.f32.mrb[0].mxu0
  %2403 = vdwg.mxu0
  %s2404 = scalar_lea.vmem %s5, 4
  %v2405 = vld [vmem:[%s2404] sm:$0xf]
  %s2406 = scalar_lea.vmem %s6, 1
  %v2407 = vld [vmem:[%s2406] sm:$0x1]
  %v2409 = vlaneseq
  %v2410 = vshrl.u32 %v2409, 7
  %v2411 = vsub.s32 0, %v2410
  %v2412 = vrot.slane %v2407, %v2411
  %v2415 = vsel %vm79, %v2405, 0
  %2417 = vmatprep.subr.mxu0 0.0
  %2418 = vmatpush1.msra.mxu0 %v2415
  %2419 = vmatprep.subr.mxu0 0.0
  %2420 = vmatpush1.msra.mxu0 0.0
  %2421 = vmatprep.subr.mxu0 0.0
  %2422 = vmatpush1.msra.mxu0 0.0
  %2423 = vmatprep.subr.mxu0 0.0
  %2424 = vmatpush1.msra.mxu0 0.0
  %2425 = vmatprep.subr.mxu0 0.0
  %2426 = vmatpush1.msra.mxu0 0.0
  %2427 = vmatprep.subr.mxu0 0.0
  %2428 = vmatpush1.msra.mxu0 0.0
  %2429 = vmatprep.subr.mxu0 0.0
  %2430 = vmatpush1.msra.mxu0 0.0
  %2431 = vmatprep.subr.mxu0 0.0
  %2432 = vmatpush1.msra.mxu0 0.0
  %2433 = vmatprep.subr.mxu0 0.0
  %2434 = vmatpush1.msra.mxu0 0.0
  %2435 = vmatprep.subr.mxu0 0.0
  %2436 = vmatpush1.msra.mxu0 0.0
  %2437 = vmatprep.subr.mxu0 0.0
  %2438 = vmatpush1.msra.mxu0 0.0
  %2439 = vmatprep.subr.mxu0 0.0
  %2440 = vmatpush1.msra.mxu0 0.0
  %2441 = vmatprep.subr.mxu0 0.0
  %2442 = vmatpush1.msra.mxu0 0.0
  %2443 = vmatprep.subr.mxu0 0.0
  %2444 = vmatpush1.msra.mxu0 0.0
  %2445 = vmatprep.subr.mxu0 0.0
  %2446 = vmatpush1.msra.mxu0 0.0
  %2447 = vmatprep.subr.mxu0 0.0
  %2448 = vmatpush1.msra.mxu0 0.0
  %2449 = vmatprep.subr.mxu0 0.0
  %2450 = vmatpush1.msra.mxu0 0.0
  %2451 = vmatprep.subr.mxu0 0.0
  %2452 = vmatpush1.msra.mxu0 0.0
  %2453 = vmatprep.subr.mxu0 0.0
  %2454 = vmatpush1.msra.mxu0 0.0
  %2455 = vmatprep.subr.mxu0 0.0
  %2456 = vmatpush1.msra.mxu0 0.0
  %2457 = vmatprep.subr.mxu0 0.0
  %2458 = vmatpush1.msra.mxu0 0.0
  %2459 = vmatprep.subr.mxu0 0.0
  %2460 = vmatpush1.msra.mxu0 0.0
  %2461 = vmatprep.subr.mxu0 0.0
  %2462 = vmatpush1.msra.mxu0 0.0
  %2463 = vmatprep.subr.mxu0 0.0
  %2464 = vmatpush1.msra.mxu0 0.0
  %2465 = vmatprep.subr.mxu0 0.0
  %2466 = vmatpush1.msra.mxu0 0.0
  %2467 = vmatprep.subr.mxu0 0.0
  %2468 = vmatpush1.msra.mxu0 0.0
  %2469 = vmatprep.subr.mxu0 0.0
  %2470 = vmatpush1.msra.mxu0 0.0
  %2471 = vmatprep.subr.mxu0 0.0
  %2472 = vmatpush1.msra.mxu0 0.0
  %2473 = vmatprep.subr.mxu0 0.0
  %2474 = vmatpush1.msra.mxu0 0.0
  %2475 = vmatprep.subr.mxu0 0.0
  %2476 = vmatpush1.msra.mxu0 0.0
  %2477 = vmatprep.subr.mxu0 0.0
  %2478 = vmatpush1.msra.mxu0 0.0
  %2479 = vmatprep.subr.mxu0 0.0
  %2480 = vmatpush1.msra.mxu0 0.0
  %2481 = vmatprep.mubr.f32.mxu0 0.0
  %2482 = vmatmul.mubr.f32.gmra.mrb[0].mxu0 %v2329
  %v2483 = vpop.f32.mrb[0].mxu0
  %v2484 = vadd.f32 %v2412, %v2483
  %v2485 = vpop.f32.mrb[0].mxu0
  %2486 = vdwg.mxu0
  %s2487 = scalar_lea.vmem %s5, 8
  %v2488 = vld [vmem:[%s2487] sm:$0xf]
  %s2489 = scalar_lea.vmem %s6, 2
  %v2490 = vld [vmem:[%s2489] sm:$0x1]
  %v2492 = vlaneseq
  %v2493 = vshrl.u32 %v2492, 7
  %v2494 = vsub.s32 0, %v2493
  %v2495 = vrot.slane %v2490, %v2494
  %v2498 = vsel %vm79, %v2488, 0
  %2500 = vmatprep.subr.mxu0 0.0
  %2501 = vmatpush1.msra.mxu0 %v2498
  %2502 = vmatprep.subr.mxu0 0.0
  %2503 = vmatpush1.msra.mxu0 0.0
  %2504 = vmatprep.subr.mxu0 0.0
  %2505 = vmatpush1.msra.mxu0 0.0
  %2506 = vmatprep.subr.mxu0 0.0
  %2507 = vmatpush1.msra.mxu0 0.0
  %2508 = vmatprep.subr.mxu0 0.0
  %2509 = vmatpush1.msra.mxu0 0.0
  %2510 = vmatprep.subr.mxu0 0.0
  %2511 = vmatpush1.msra.mxu0 0.0
  %2512 = vmatprep.subr.mxu0 0.0
  %2513 = vmatpush1.msra.mxu0 0.0
  %2514 = vmatprep.subr.mxu0 0.0
  %2515 = vmatpush1.msra.mxu0 0.0
  %2516 = vmatprep.subr.mxu0 0.0
  %2517 = vmatpush1.msra.mxu0 0.0
  %2518 = vmatprep.subr.mxu0 0.0
  %2519 = vmatpush1.msra.mxu0 0.0
  %2520 = vmatprep.subr.mxu0 0.0
  %2521 = vmatpush1.msra.mxu0 0.0
  %2522 = vmatprep.subr.mxu0 0.0
  %2523 = vmatpush1.msra.mxu0 0.0
  %2524 = vmatprep.subr.mxu0 0.0
  %2525 = vmatpush1.msra.mxu0 0.0
  %2526 = vmatprep.subr.mxu0 0.0
  %2527 = vmatpush1.msra.mxu0 0.0
  %2528 = vmatprep.subr.mxu0 0.0
  %2529 = vmatpush1.msra.mxu0 0.0
  %2530 = vmatprep.subr.mxu0 0.0
  %2531 = vmatpush1.msra.mxu0 0.0
  %2532 = vmatprep.subr.mxu0 0.0
  %2533 = vmatpush1.msra.mxu0 0.0
  %2534 = vmatprep.subr.mxu0 0.0
  %2535 = vmatpush1.msra.mxu0 0.0
  %2536 = vmatprep.subr.mxu0 0.0
  %2537 = vmatpush1.msra.mxu0 0.0
  %2538 = vmatprep.subr.mxu0 0.0
  %2539 = vmatpush1.msra.mxu0 0.0
  %2540 = vmatprep.subr.mxu0 0.0
  %2541 = vmatpush1.msra.mxu0 0.0
  %2542 = vmatprep.subr.mxu0 0.0
  %2543 = vmatpush1.msra.mxu0 0.0
  %2544 = vmatprep.subr.mxu0 0.0
  %2545 = vmatpush1.msra.mxu0 0.0
  %2546 = vmatprep.subr.mxu0 0.0
  %2547 = vmatpush1.msra.mxu0 0.0
  %2548 = vmatprep.subr.mxu0 0.0
  %2549 = vmatpush1.msra.mxu0 0.0
  %2550 = vmatprep.subr.mxu0 0.0
  %2551 = vmatpush1.msra.mxu0 0.0
  %2552 = vmatprep.subr.mxu0 0.0
  %2553 = vmatpush1.msra.mxu0 0.0
  %2554 = vmatprep.subr.mxu0 0.0
  %2555 = vmatpush1.msra.mxu0 0.0
  %2556 = vmatprep.subr.mxu0 0.0
  %2557 = vmatpush1.msra.mxu0 0.0
  %2558 = vmatprep.subr.mxu0 0.0
  %2559 = vmatpush1.msra.mxu0 0.0
  %2560 = vmatprep.subr.mxu0 0.0
  %2561 = vmatpush1.msra.mxu0 0.0
  %2562 = vmatprep.subr.mxu0 0.0
  %2563 = vmatpush1.msra.mxu0 0.0
  %2564 = vmatprep.mubr.f32.mxu0 0.0
  %2565 = vmatmul.mubr.f32.gmra.mrb[0].mxu0 %v2329
  %v2566 = vpop.f32.mrb[0].mxu0
  %v2567 = vadd.f32 %v2495, %v2566
  %v2568 = vpop.f32.mrb[0].mxu0
  %2569 = vdwg.mxu0
  %v2570 = vxor.u32 %v2401, 2147483648
  %v2571 = vmul.f32 %v2570, 1.442695
  %v2572 = vpow.pop %v2571
  %v2573 = vadd.f32 %v2572, 1.0
  %v2574 = vrcp.pop %v2573
  %v2575 = vmul.f32 1.0, %v2574
  %v2576 = vxor.u32 %v2484, 2147483648
  %v2577 = vmul.f32 %v2576, 1.442695
  %v2578 = vpow.pop %v2577
  %v2579 = vadd.f32 %v2578, 1.0
  %v2580 = vrcp.pop %v2579
  %v2581 = vmul.f32 1.0, %v2580
  %v2582 = vld [vmem:[%s7] sm:$0x1]
  %v2584 = vlaneseq
  %v2585 = vshrl.u32 %v2584, 7
  %v2586 = vsub.s32 0, %v2585
  %v2587 = vrot.slane %v2582, %v2586
  %v2589 = vmul.f32 %v2575, %v2587
  %v2590 = vadd.f32 %v2567, %v2589
  %v2591 = vtanh.pop %v2590
  %v2592 = vsub.f32 1.0, %v2581
  %v2593 = vmul.f32 %v2592, %v2591
  %v2594 = vld [vmem:[%s8] sm:$0xff]
  %v2595 = vld [vmem:[%s8 + $0x8] sm:$0xff]
  %v2596 = vld [vmem:[%s8 + $0x10] sm:$0xff]
  %v2597 = vld [vmem:[%s8 + $0x18] sm:$0xff]
  %v2598 = vld [vmem:[%s9] sm:$0xff]
  %v2599 = vld [vmem:[%s9 + $0x8] sm:$0xff]
  %v2600 = vld [vmem:[%s9 + $0x10] sm:$0xff]
  %v2601 = vld [vmem:[%s9 + $0x18] sm:$0xff]
  %v2603 = vsel %vm439, %v2593, 0
  %2605 = vmatprep.subr.mxu0 0.0
  %2606 = vmatpush1.msra.mxu0 %v2598
  %2607 = vmatprep.subr.mxu0 0.0
  %2608 = vmatpush1.msra.mxu0 %v2599
  %2609 = vmatprep.subr.mxu0 0.0
  %2610 = vmatpush1.msra.mxu0 %v2600
  %2611 = vmatprep.subr.mxu0 0.0
  %2612 = vmatpush1.msra.mxu0 %v2601
  %2613 = vmatprep.subr.mxu0 0.0
  %2614 = vmatpush1.msra.mxu0 0.0
  %2615 = vmatprep.subr.mxu0 0.0
  %2616 = vmatpush1.msra.mxu0 0.0
  %2617 = vmatprep.subr.mxu0 0.0
  %2618 = vmatpush1.msra.mxu0 0.0
  %2619 = vmatprep.subr.mxu0 0.0
  %2620 = vmatpush1.msra.mxu0 0.0
  %2621 = vmatprep.subr.mxu0 0.0
  %2622 = vmatpush1.msra.mxu0 0.0
  %2623 = vmatprep.subr.mxu0 0.0
  %2624 = vmatpush1.msra.mxu0 0.0
  %2625 = vmatprep.subr.mxu0 0.0
  %2626 = vmatpush1.msra.mxu0 0.0
  %2627 = vmatprep.subr.mxu0 0.0
  %2628 = vmatpush1.msra.mxu0 0.0
  %2629 = vmatprep.subr.mxu0 0.0
  %2630 = vmatpush1.msra.mxu0 0.0
  %2631 = vmatprep.subr.mxu0 0.0
  %2632 = vmatpush1.msra.mxu0 0.0
  %2633 = vmatprep.subr.mxu0 0.0
  %2634 = vmatpush1.msra.mxu0 0.0
  %2635 = vmatprep.subr.mxu0 0.0
  %2636 = vmatpush1.msra.mxu0 0.0
  %2637 = vmatprep.subr.mxu0 0.0
  %2638 = vmatpush1.msra.mxu0 0.0
  %2639 = vmatprep.subr.mxu0 0.0
  %2640 = vmatpush1.msra.mxu0 0.0
  %2641 = vmatprep.subr.mxu0 0.0
  %2642 = vmatpush1.msra.mxu0 0.0
  %2643 = vmatprep.subr.mxu0 0.0
  %2644 = vmatpush1.msra.mxu0 0.0
  %2645 = vmatprep.subr.mxu0 0.0
  %2646 = vmatpush1.msra.mxu0 0.0
  %2647 = vmatprep.subr.mxu0 0.0
  %2648 = vmatpush1.msra.mxu0 0.0
  %2649 = vmatprep.subr.mxu0 0.0
  %2650 = vmatpush1.msra.mxu0 0.0
  %2651 = vmatprep.subr.mxu0 0.0
  %2652 = vmatpush1.msra.mxu0 0.0
  %2653 = vmatprep.subr.mxu0 0.0
  %2654 = vmatpush1.msra.mxu0 0.0
  %2655 = vmatprep.subr.mxu0 0.0
  %2656 = vmatpush1.msra.mxu0 0.0
  %2657 = vmatprep.subr.mxu0 0.0
  %2658 = vmatpush1.msra.mxu0 0.0
  %2659 = vmatprep.subr.mxu0 0.0
  %2660 = vmatpush1.msra.mxu0 0.0
  %2661 = vmatprep.subr.mxu0 0.0
  %2662 = vmatpush1.msra.mxu0 0.0
  %2663 = vmatprep.subr.mxu0 0.0
  %2664 = vmatpush1.msra.mxu0 0.0
  %2665 = vmatprep.subr.mxu0 0.0
  %2666 = vmatpush1.msra.mxu0 0.0
  %2667 = vmatprep.subr.mxu0 0.0
  %2668 = vmatpush1.msra.mxu0 0.0
  %2669 = vmatprep.mubr.f32.mxu0 0.0
  %2670 = vmatmul.mubr.f32.gmra.mrb[0].mxu0 %v2603
  %v2671 = vpop.f32.mrb[0].mxu0
  %v2672 = vadd.f32 0.0, %v2671
  %v2673 = vpop.f32.mrb[0].mxu0
  %2674 = vdwg.mxu0
  %v2676 = vsel %vm439, %v2317, 0
  %2678 = vmatprep.subr.mxu0 0.0
  %2679 = vmatpush1.msra.mxu0 %v2594
  %2680 = vmatprep.subr.mxu0 0.0
  %2681 = vmatpush1.msra.mxu0 %v2595
  %2682 = vmatprep.subr.mxu0 0.0
  %2683 = vmatpush1.msra.mxu0 %v2596
  %2684 = vmatprep.subr.mxu0 0.0
  %2685 = vmatpush1.msra.mxu0 %v2597
  %2686 = vmatprep.subr.mxu0 0.0
  %2687 = vmatpush1.msra.mxu0 0.0
  %2688 = vmatprep.subr.mxu0 0.0
  %2689 = vmatpush1.msra.mxu0 0.0
  %2690 = vmatprep.subr.mxu0 0.0
  %2691 = vmatpush1.msra.mxu0 0.0
  %2692 = vmatprep.subr.mxu0 0.0
  %2693 = vmatpush1.msra.mxu0 0.0
  %2694 = vmatprep.subr.mxu0 0.0
  %2695 = vmatpush1.msra.mxu0 0.0
  %2696 = vmatprep.subr.mxu0 0.0
  %2697 = vmatpush1.msra.mxu0 0.0
  %2698 = vmatprep.subr.mxu0 0.0
  %2699 = vmatpush1.msra.mxu0 0.0
  %2700 = vmatprep.subr.mxu0 0.0
  %2701 = vmatpush1.msra.mxu0 0.0
  %2702 = vmatprep.subr.mxu0 0.0
  %2703 = vmatpush1.msra.mxu0 0.0
  %2704 = vmatprep.subr.mxu0 0.0
  %2705 = vmatpush1.msra.mxu0 0.0
  %2706 = vmatprep.subr.mxu0 0.0
  %2707 = vmatpush1.msra.mxu0 0.0
  %2708 = vmatprep.subr.mxu0 0.0
  %2709 = vmatpush1.msra.mxu0 0.0
  %2710 = vmatprep.subr.mxu0 0.0
  %2711 = vmatpush1.msra.mxu0 0.0
  %2712 = vmatprep.subr.mxu0 0.0
  %2713 = vmatpush1.msra.mxu0 0.0
  %2714 = vmatprep.subr.mxu0 0.0
  %2715 = vmatpush1.msra.mxu0 0.0
  %2716 = vmatprep.subr.mxu0 0.0
  %2717 = vmatpush1.msra.mxu0 0.0
  %2718 = vmatprep.subr.mxu0 0.0
  %2719 = vmatpush1.msra.mxu0 0.0
  %2720 = vmatprep.subr.mxu0 0.0
  %2721 = vmatpush1.msra.mxu0 0.0
  %2722 = vmatprep.subr.mxu0 0.0
  %2723 = vmatpush1.msra.mxu0 0.0
  %2724 = vmatprep.subr.mxu0 0.0
  %2725 = vmatpush1.msra.mxu0 0.0
  %2726 = vmatprep.subr.mxu0 0.0
  %2727 = vmatpush1.msra.mxu0 0.0
  %2728 = vmatprep.subr.mxu0 0.0
  %2729 = vmatpush1.msra.mxu0 0.0
  %2730 = vmatprep.subr.mxu0 0.0
  %2731 = vmatpush1.msra.mxu0 0.0
  %2732 = vmatprep.subr.mxu0 0.0
  %2733 = vmatpush1.msra.mxu0 0.0
  %2734 = vmatprep.subr.mxu0 0.0
  %2735 = vmatpush1.msra.mxu0 0.0
  %2736 = vmatprep.subr.mxu0 0.0
  %2737 = vmatpush1.msra.mxu0 0.0
  %2738 = vmatprep.subr.mxu0 0.0
  %2739 = vmatpush1.msra.mxu0 0.0
  %2740 = vmatprep.subr.mxu0 0.0
  %2741 = vmatpush1.msra.mxu0 0.0
  %2742 = vmatprep.mubr.f32.mxu0 0.0
  %2743 = vmatmul.mubr.f32.gmra.mrb[0].mxu0 %v2676
  %v2744 = vpop.f32.mrb[0].mxu0
  %v2745 = vadd.f32 %v2672, %v2744
  %v2746 = vpop.f32.mrb[0].mxu0
  %2747 = vdwg.mxu0
  %v2748 = vld [vmem:[%s10] sm:$0x1]
  %v2750 = vlaneseq
  %v2751 = vshrl.u32 %v2750, 7
  %v2752 = vsub.s32 0, %v2751
  %v2753 = vrot.slane %v2748, %v2752
  %v2755 = vadd.f32 %v2745, %v2753
  %2756 = vst.msk [vmem:[%s11] sm:$0xff] %vm54, %v2755
  // Predicated region
  $region46: #{bigru_forward.1} parent=0 // pred_check
    _
  $region47: #{bigru_forward.1} parent=0 // pred_check_branch
    %2758 = sbr.rel (0) target = $region49
  $region48: #{bigru_forward.1} parent=0 // pred_region
    _
  $region49: #{bigru_forward.1} parent=0 // pred_fallthru
    _
  // Predicated region
  $region50: #{bigru_forward.1} parent=0 // pred_check
    _
  $region51: #{bigru_forward.1} parent=0 // pred_check_branch
    %2760 = sbr.rel (0) target = $region53
  $region52: #{bigru_forward.1} parent=0 // pred_region
    _
  $region53: #{bigru_forward.1} parent=0 // pred_fallthru
    _

</llo_original>
